<compile_context>
chip_gen: v7x
topology: tpu7x:2x2x1
jax: 0.10.0
libtpu: 0.0.40
codegen_flags: <defaults>
</compile_context>

<pallas_src>
import math

import numpy as np
import jax
import jax.numpy as jnp
from jax import lax
from jax.experimental import pallas as pl
from jax.experimental.pallas import tpu as pltpu

N_LAYERS = 8  # fixed by GREED.setup_layers


# ----------------------------------------------------------------------------- kernel
def greed_batch_kernel(x_ref, a_ref, seg_ref, avgv_ref,
                       wpre_ref, bpre_ref,
                       w1_ref, b1_ref, w2_ref, b2_ref,
                       wp1_ref, bp1_ref, wp2_ref, bp2_ref,
                       score_ref, pre_ged_ref,
                       emb_ref):
    """One grid step = B graph pairs packed along the node/row axis.

    x_ref   : [1, M, D]      bf16  M = 2*B*Nmax node rows (graph-1 rows of all pairs first,
                                   then graph-2 rows; zero-padded per graph)
    a_ref   : [1, M, M]      bf16  block-diagonal (I + A); A[dst, src] = multiplicity
    seg_ref : [1, 2B, M]     bf16  pooling matrix: row p = graph-1 of pair p, row B+p = graph-2
    avgv_ref: [1, 1, B]      f32   per-pair avg_v
    weights : bf16 ([in, out] layout), biases f32.
    outputs : score [1,1,B] f32, pre_ged [1,1,B] f32
    emb_ref : VMEM scratch [M, 9H] f32 for the concatenated embeddings.
    """
    f32 = jnp.float32
    bf16 = jnp.bfloat16

    x = x_ref[0]            # [M, D]  bf16
    a = a_ref[0]            # [M, M]  bf16 (already contains the GIN self term: I + A)
    seg = seg_ref[0]        # [2B, M] bf16
    hdim = bpre_ref.shape[-1]

    # pre: Linear(in_dim, hidden)
    h = jnp.dot(x, wpre_ref[...], preferred_element_type=f32) + bpre_ref[...]   # [M, H] f32
    emb_ref[:, 0:hdim] = h

    xcur = h
    xres = h
    for i in range(N_LAYERS):
        # GINConv (eps=0): nn( x + sum_{j in N(i)} x_j ) == nn( (I + A) @ x )
        s = jnp.dot(a, xcur.astype(bf16), preferred_element_type=f32).astype(bf16)
        h1 = jnp.maximum(
            jnp.dot(s, w1_ref[i], preferred_element_type=f32) + b1_ref[i], 0.0)
        xn = (jnp.dot(h1.astype(bf16), w2_ref[i], preferred_element_type=f32)
              + b2_ref[i])
        if i & 1:                         # residual every other layer (pre-relu value kept)
            xn = xn + xres
            xres = xn
        xcur = jnp.maximum(xn, 0.0)       # relu
        emb_ref[:, (i + 1) * hdim:(i + 2) * hdim] = xcur

    # global_add_pool + post Linear(9H, H) collapsed into two matmuls:
    #   pooled = S @ emb_cat   (masks padded rows, separates graphs & pairs)  [2B, 9H]
    #   post_h = relu(pooled @ Wp1 + bp1)                                     [2B, H]
    emb_cat = emb_ref[...].astype(bf16)                                        # [M, 9H]
    pooled = jnp.dot(seg, emb_cat, preferred_element_type=f32)                 # [2B, 9H]
    post_h = jnp.maximum(
        jnp.dot(pooled.astype(bf16), wp1_ref[...], preferred_element_type=f32)
        + bp1_ref[...], 0.0)
    g = (jnp.dot(post_h.astype(bf16), wp2_ref[...], preferred_element_type=f32)
         + bp2_ref[...])                                                       # [2B, H]

    # Per-pair L2 distance, produced directly in lane layout [1, B]:
    #   diff[p]   = g1_p - g2_p
    #   score^2   = diag(diff @ diff^T)  -> masked sublane reduce gives a lane row.
    b = seg_ref.shape[1] // 2
    diff = g[:b] - g[b:]                                                       # [B, H] f32
    gram = lax.dot_general(diff, diff, (((1,), (1,)), ((), ())),
                           preferred_element_type=f32)                         # [B, B]
    eye = (lax.broadcasted_iota(jnp.int32, (b, b), 0) ==
           lax.broadcasted_iota(jnp.int32, (b, b), 1)).astype(f32)
    score = jnp.sqrt(jnp.sum(gram * eye, axis=0, keepdims=True))               # [1, B]

    score_ref[0] = score
    # Mirrors the reference exactly; score == 0 gives -inf/inf just like torch.log.
    pre_ged_ref[0] = -jnp.log(score) * avgv_ref[0]


# ----------------------------------------------------------------------------- wrapper
def greed_forward_pairs(x, a, seg, avgv, params):
    """Single pallas_call over all pair groups.

    x    : [S, M, D]   bf16   a: [S, M, M] bf16 (I + A, block-diagonal)
    seg  : [S, 2B, M]  bf16   avgv: [S, 1, B] f32
    Returns flattened (score [S*B], pre_ged [S*B]).
    """
    S, M, D = x.shape
    twob = seg.shape[1]
    B = avgv.shape[-1]
    H = params["bpre"].shape[-1]

    def resident(arr):
        # full-array block + constant index map -> fetched once, VMEM-resident for the grid
        nd = arr.ndim
        return pl.BlockSpec(arr.shape, lambda s, _n=nd: (0,) * _n)

    inputs = (x, a, seg, avgv,
              params["wpre"], params["bpre"],
              params["w1"], params["b1"], params["w2"], params["b2"],
              params["wp1"], params["bp1"], params["wp2"], params["bp2"])

    in_specs = [
        pl.BlockSpec((1, M, D), lambda s: (s, 0, 0)),
        pl.BlockSpec((1, M, M), lambda s: (s, 0, 0)),
        pl.BlockSpec((1, twob, M), lambda s: (s, 0, 0)),
        pl.BlockSpec((1, 1, B), lambda s: (s, 0, 0)),
    ] + [resident(w) for w in inputs[4:]]

    out_specs = (pl.BlockSpec((1, 1, B), lambda s: (s, 0, 0)),
                 pl.BlockSpec((1, 1, B), lambda s: (s, 0, 0)))
    out_shape = (jax.ShapeDtypeStruct((S, 1, B), jnp.float32),
                 jax.ShapeDtypeStruct((S, 1, B), jnp.float32))

    score, pre_ged = pl.pallas_call(
        greed_batch_kernel,
        grid=(S,),
        in_specs=in_specs,
        out_specs=out_specs,
        out_shape=out_shape,
        scratch_shapes=[pltpu.VMEM((M, (N_LAYERS + 1) * H), jnp.float32)],
        compiler_params=pltpu.CompilerParams(
            dimension_semantics=("parallel",)),   # shards pair groups across TCs on v7x
        # TODO(synk): for much larger graphs (Nmax >~ 1.5k) the dense (I+A) block no longer
        # fits comfortably; tile the aggregation over node blocks and set vmem_limit_bytes.
    )(*inputs)

    return score.reshape(-1), pre_ged.reshape(-1)


# ----------------------------------------------------------------------------- host-side prep
def edges_to_adj_np(edge_index, n):
    """edge_index: [2, E] (src, dst). A[dst, src] += 1 so (A @ x)[i] = sum over in-neighbors."""
    a = np.zeros((n, n), np.float32)
    src = np.asarray(edge_index[0])
    dst = np.asarray(edge_index[1])
    np.add.at(a, (dst, src), 1.0)
    return a


def build_pair_batch(pairs, avg_vs, nmax, pairs_per_step, in_dim):
    """Build the stacked per-step slabs (numpy, one-time; no per-pair XLA scatter/launch).

    pairs: list of (features_1 [n1,D], edge_index_1 [2,E1], features_2, edge_index_2).
    Returns (x bf16, a bf16, seg bf16, avgv f32, n_valid_pairs).
    """
    P = len(pairs)
    B = pairs_per_step
    S = -(-P // B)
    M = 2 * B * nmax

    x = np.zeros((S, M, in_dim), np.float32)
    a = np.zeros((S, M, M), np.float32)
    seg = np.zeros((S, 2 * B, M), np.float32)
    avgv = np.zeros((S, 1, B), np.float32)

    for p, (f1, e1, f2, e2) in enumerate(pairs):
        s, b = divmod(p, B)
        n1, n2 = f1.shape[0], f2.shape[0]
        r1 = b * nmax                 # graph-1 rows for pair slot b
        r2 = B * nmax + b * nmax      # graph-2 rows for pair slot b
        x[s, r1:r1 + n1] = f1
        x[s, r2:r2 + n2] = f2
        # fold the GIN self term: A' = I + A  (exact in bf16)
        a[s, r1:r1 + n1, r1:r1 + n1] = edges_to_adj_np(e1, n1) + np.eye(n1, dtype=np.float32)
        a[s, r2:r2 + n2, r2:r2 + n2] = edges_to_adj_np(e2, n2) + np.eye(n2, dtype=np.float32)
        seg[s, b, r1:r1 + n1] = 1.0
        seg[s, B + b, r2:r2 + n2] = 1.0
        avgv[s, 0, b] = avg_vs[p]

    return (jnp.asarray(x, jnp.bfloat16), jnp.asarray(a, jnp.bfloat16),
            jnp.asarray(seg, jnp.bfloat16), jnp.asarray(avgv, jnp.float32), P)


def init_params(key, in_dim, hidden):
    """Deterministic synthetic parameters (PyTorch Linear fan-in init, stored as [in, out]).
    Weights bf16 (MXU-native), biases f32; all matmuls accumulate in f32 in the kernel."""
    def lin(k, fan_in, fan_out):
        kw, kb = jax.random.split(k)
        bound = 1.0 / math.sqrt(fan_in)
        w = jax.random.uniform(kw, (fan_in, fan_out), jnp.float32, -bound, bound)
        b = jax.random.uniform(kb, (1, fan_out), jnp.float32, -bound, bound)
        return w.astype(jnp.bfloat16), b

    ks = jax.random.split(key, 4)
    wpre, bpre = lin(ks[0], in_dim, hidden)

    w1s, b1s, w2s, b2s = [], [], [], []
    lks = jax.random.split(ks[1], 2 * N_LAYERS)
    for i in range(N_LAYERS):
        w1, b1 = lin(lks[2 * i], hidden, hidden)
        w2, b2 = lin(lks[2 * i + 1], hidden, hidden)
        w1s.append(w1); b1s.append(b1)
        w2s.append(w2); b2s.append(b2)

    wp1, bp1 = lin(ks[2], hidden * (N_LAYERS + 1), hidden)   # kept FLAT [9H, H]
    wp2, bp2 = lin(ks[3], hidden, hidden)

    return dict(
        wpre=wpre, bpre=bpre,
        w1=jnp.stack(w1s), b1=jnp.stack(b1s),   # [8,H,H] bf16, [8,1,H] f32
        w2=jnp.stack(w2s), b2=jnp.stack(b2s),
        wp1=wp1, bp1=bp1, wp2=wp2, bp2=bp2,     # wp1 [9H,H] bf16
    )


def _ring_edges_np(n, extra=()):
    src = list(range(n)); dst = [(i + 1) % n for i in range(n)]
    s = src + dst
    d = dst + src
    for u, v in extra:
        s += [u, v]; d += [v, u]
    return np.array([s, d], dtype=np.int32)


# ----------------------------------------------------------------------------- demo
if __name__ == "__main__":
    key = jax.random.PRNGKey(0)
    in_dim, hidden = 16, 32
    nmax = 8
    pairs_per_step = 8          # B pairs packed per grid step -> M = 2*B*nmax = 128 rows
    n_pairs = 32                # total pairs -> grid of 4 steps

    keys = jax.random.split(key, 2 * n_pairs + 1)
    params = init_params(keys[-1], in_dim, hidden)

    pairs, avg_vs = [], []
    for p in range(n_pairs):
        n1 = 5 + (p % 4)            # 5..8 nodes
        n2 = 6 + ((p + 1) % 3)      # 6..8 nodes
        f1 = np.asarray(jax.random.normal(keys[2 * p], (n1, in_dim), jnp.float32))
        f2 = np.asarray(jax.random.normal(keys[2 * p + 1], (n2, in_dim), jnp.float32))
        e1 = _ring_edges_np(n1)
        e2 = _ring_edges_np(n2, extra=[(0, n2 // 2)])
        pairs.append((f1, e1, f2, e2))
        avg_vs.append(0.5 * (n1 + n2))

    x, a, seg, avgv, P = build_pair_batch(pairs, avg_vs, nmax, pairs_per_step, in_dim)

    score, pre_ged = greed_forward_pairs(x, a, seg, avgv, params)
    score, pre_ged = jax.block_until_ready((score, pre_ged))

    # mirrors: (score.view(-1), pre_ged.item()) per pair — drop padded pair slots
    score = np.asarray(score)[:P]
    pre_ged = np.asarray(pre_ged)[:P]
    # TODO(synk): non-homo init_map path (per-type fc_list + dropout), the mlp_model branch
    # (l2=False) and target_mode='linear' are not exercised by this config.
    print("KERNEL_OK")
</pallas_src>

<mosaic_0001>
module attributes {stable_mosaic.version = 11 : i64} {
  func.func @greed_batch_kernel(%arg0: i32, %arg1: memref<1x128x16xbf16, #tpu.memory_space<vmem>>, %arg2: memref<1x128x128xbf16, #tpu.memory_space<vmem>>, %arg3: memref<1x16x128xbf16, #tpu.memory_space<vmem>>, %arg4: memref<1x1x8xf32, #tpu.memory_space<vmem>>, %arg5: memref<16x32xbf16, #tpu.memory_space<vmem>>, %arg6: memref<1x32xf32, #tpu.memory_space<vmem>>, %arg7: memref<8x32x32xbf16, #tpu.memory_space<vmem>>, %arg8: memref<8x1x32xf32, #tpu.memory_space<vmem>>, %arg9: memref<8x32x32xbf16, #tpu.memory_space<vmem>>, %arg10: memref<8x1x32xf32, #tpu.memory_space<vmem>>, %arg11: memref<288x32xbf16, #tpu.memory_space<vmem>>, %arg12: memref<1x32xf32, #tpu.memory_space<vmem>>, %arg13: memref<32x32xbf16, #tpu.memory_space<vmem>>, %arg14: memref<1x32xf32, #tpu.memory_space<vmem>>, %arg15: memref<1x1x8xf32, #tpu.memory_space<vmem>>, %arg16: memref<1x1x8xf32, #tpu.memory_space<vmem>>, %arg17: memref<128x288xf32, #tpu.memory_space<vmem>>) attributes {dimension_semantics = [#tpu.dimension_semantics<parallel>], iteration_bounds = array<i64: 4>, scalar_prefetch = 0 : i64, scratch_operands = 1 : i64, tpu.core_type = #tpu.core_type<tc>, window_params = [{transform_indices = @transform_0, window_bounds = array<i64: 1, 128, 16>}, {transform_indices = @transform_1, window_bounds = array<i64: 1, 128, 128>}, {transform_indices = @transform_2, window_bounds = array<i64: 1, 16, 128>}, {transform_indices = @transform_3, window_bounds = array<i64: 1, 1, 8>}, {pipeline_mode = #tpu.pipeline_mode<synchronous>, transform_indices = @transform_4, window_bounds = array<i64: 16, 32>}, {pipeline_mode = #tpu.pipeline_mode<synchronous>, transform_indices = @transform_5, window_bounds = array<i64: 1, 32>}, {pipeline_mode = #tpu.pipeline_mode<synchronous>, transform_indices = @transform_6, window_bounds = array<i64: 8, 32, 32>}, {pipeline_mode = #tpu.pipeline_mode<synchronous>, transform_indices = @transform_7, window_bounds = array<i64: 8, 1, 32>}, {pipeline_mode = #tpu.pipeline_mode<synchronous>, transform_indices = @transform_8, window_bounds = array<i64: 8, 32, 32>}, {pipeline_mode = #tpu.pipeline_mode<synchronous>, transform_indices = @transform_9, window_bounds = array<i64: 8, 1, 32>}, {pipeline_mode = #tpu.pipeline_mode<synchronous>, transform_indices = @transform_10, window_bounds = array<i64: 288, 32>}, {pipeline_mode = #tpu.pipeline_mode<synchronous>, transform_indices = @transform_11, window_bounds = array<i64: 1, 32>}, {pipeline_mode = #tpu.pipeline_mode<synchronous>, transform_indices = @transform_12, window_bounds = array<i64: 32, 32>}, {pipeline_mode = #tpu.pipeline_mode<synchronous>, transform_indices = @transform_13, window_bounds = array<i64: 1, 32>}, {transform_indices = @transform_14, window_bounds = array<i64: 1, 1, 8>}, {transform_indices = @transform_15, window_bounds = array<i64: 1, 1, 8>}]} {
    %c0 = arith.constant 0 : index
    %c0_0 = arith.constant 0 : index
    %c0_1 = arith.constant 0 : index
    %0 = vector.load %arg1[%c0, %c0_0, %c0_1] : memref<1x128x16xbf16, #tpu.memory_space<vmem>>, vector<1x128x16xbf16>
    %1 = vector.shape_cast %0 : vector<1x128x16xbf16> to vector<128x16xbf16>
    %c0_2 = arith.constant 0 : index
    %c0_3 = arith.constant 0 : index
    %c0_4 = arith.constant 0 : index
    %2 = vector.load %arg2[%c0_2, %c0_3, %c0_4] : memref<1x128x128xbf16, #tpu.memory_space<vmem>>, vector<1x128x128xbf16>
    %3 = vector.shape_cast %2 : vector<1x128x128xbf16> to vector<128x128xbf16>
    %c0_5 = arith.constant 0 : index
    %c0_6 = arith.constant 0 : index
    %c0_7 = arith.constant 0 : index
    %4 = vector.load %arg3[%c0_5, %c0_6, %c0_7] : memref<1x16x128xbf16, #tpu.memory_space<vmem>>, vector<1x16x128xbf16>
    %5 = vector.shape_cast %4 : vector<1x16x128xbf16> to vector<16x128xbf16>
    %c0_8 = arith.constant 0 : index
    %c0_9 = arith.constant 0 : index
    %6 = vector.load %arg5[%c0_8, %c0_9] : memref<16x32xbf16, #tpu.memory_space<vmem>>, vector<16x32xbf16>
    %cst = arith.constant dense<0.000000e+00> : vector<128x32xf32>
    %7 = tpu.matmul %1, %6, %cst {dimension_numbers = #tpu.dot_dimension_numbers<[1], [0], [0], [1], [0, 0, 1, 1], [], []>} : vector<128x16xbf16>, vector<16x32xbf16>, vector<128x32xf32> -> vector<128x32xf32>
    %c0_10 = arith.constant 0 : index
    %c0_11 = arith.constant 0 : index
    %8 = vector.load %arg6[%c0_10, %c0_11] : memref<1x32xf32, #tpu.memory_space<vmem>>, vector<1x32xf32>
    %9 = vector.broadcast %8 : vector<1x32xf32> to vector<128x32xf32>
    %10 = arith.addf %7, %9 : vector<128x32xf32>
    %c0_12 = arith.constant 0 : index
    %c0_13 = arith.constant 0 : index
    %11 = vector.load %arg17[%c0_12, %c0_13] : memref<128x288xf32, #tpu.memory_space<vmem>>, vector<128x32xf32>
    tpu.vector_store %arg17[%c0_12, %c0_13], %10 {strides = array<i32>} : memref<128x288xf32, #tpu.memory_space<vmem>>, vector<128x32xf32>,
    %12 = arith.truncf %10 : vector<128x32xf32> to vector<128x32xbf16>
    %cst_14 = arith.constant dense<0.000000e+00> : vector<128x32xf32>
    %13 = tpu.matmul %3, %12, %cst_14 {dimension_numbers = #tpu.dot_dimension_numbers<[1], [0], [0], [1], [0, 0, 1, 1], [], []>} : vector<128x128xbf16>, vector<128x32xbf16>, vector<128x32xf32> -> vector<128x32xf32>
    %14 = arith.truncf %13 : vector<128x32xf32> to vector<128x32xbf16>
    %c0_15 = arith.constant 0 : index
    %c0_16 = arith.constant 0 : index
    %c0_17 = arith.constant 0 : index
    %15 = vector.load %arg7[%c0_15, %c0_16, %c0_17] : memref<8x32x32xbf16, #tpu.memory_space<vmem>>, vector<1x32x32xbf16>
    %16 = vector.shape_cast %15 : vector<1x32x32xbf16> to vector<32x32xbf16>
    %cst_18 = arith.constant dense<0.000000e+00> : vector<128x32xf32>
    %17 = tpu.matmul %14, %16, %cst_18 {dimension_numbers = #tpu.dot_dimension_numbers<[1], [0], [0], [1], [0, 0, 1, 1], [], []>} : vector<128x32xbf16>, vector<32x32xbf16>, vector<128x32xf32> -> vector<128x32xf32>
    %c0_19 = arith.constant 0 : index
    %c0_20 = arith.constant 0 : index
    %c0_21 = arith.constant 0 : index
    %18 = vector.load %arg8[%c0_19, %c0_20, %c0_21] : memref<8x1x32xf32, #tpu.memory_space<vmem>>, vector<1x1x32xf32>
    %19 = vector.shape_cast %18 : vector<1x1x32xf32> to vector<1x32xf32>
    %20 = vector.broadcast %19 : vector<1x32xf32> to vector<128x32xf32>
    %21 = arith.addf %17, %20 : vector<128x32xf32>
    %cst_22 = arith.constant 0.000000e+00 : f32
    %22 = vector.broadcast %cst_22 : f32 to vector<128x32xf32>
    %23 = arith.maximumf %21, %22 : vector<128x32xf32>
    %24 = arith.truncf %23 : vector<128x32xf32> to vector<128x32xbf16>
    %c0_23 = arith.constant 0 : index
    %c0_24 = arith.constant 0 : index
    %c0_25 = arith.constant 0 : index
    %25 = vector.load %arg9[%c0_23, %c0_24, %c0_25] : memref<8x32x32xbf16, #tpu.memory_space<vmem>>, vector<1x32x32xbf16>
    %26 = vector.shape_cast %25 : vector<1x32x32xbf16> to vector<32x32xbf16>
    %cst_26 = arith.constant dense<0.000000e+00> : vector<128x32xf32>
    %27 = tpu.matmul %24, %26, %cst_26 {dimension_numbers = #tpu.dot_dimension_numbers<[1], [0], [0], [1], [0, 0, 1, 1], [], []>} : vector<128x32xbf16>, vector<32x32xbf16>, vector<128x32xf32> -> vector<128x32xf32>
    %c0_27 = arith.constant 0 : index
    %c0_28 = arith.constant 0 : index
    %c0_29 = arith.constant 0 : index
    %28 = vector.load %arg10[%c0_27, %c0_28, %c0_29] : memref<8x1x32xf32, #tpu.memory_space<vmem>>, vector<1x1x32xf32>
    %29 = vector.shape_cast %28 : vector<1x1x32xf32> to vector<1x32xf32>
    %30 = vector.broadcast %29 : vector<1x32xf32> to vector<128x32xf32>
    %31 = arith.addf %27, %30 : vector<128x32xf32>
    %cst_30 = arith.constant 0.000000e+00 : f32
    %32 = vector.broadcast %cst_30 : f32 to vector<128x32xf32>
    %33 = arith.maximumf %31, %32 : vector<128x32xf32>
    %c0_31 = arith.constant 0 : index
    %c32 = arith.constant 32 : index
    %34 = vector.load %arg17[%c0_31, %c32] : memref<128x288xf32, #tpu.memory_space<vmem>>, vector<128x32xf32>
    tpu.vector_store %arg17[%c0_31, %c32], %33 {strides = array<i32>} : memref<128x288xf32, #tpu.memory_space<vmem>>, vector<128x32xf32>,
    %35 = arith.truncf %33 : vector<128x32xf32> to vector<128x32xbf16>
    %cst_32 = arith.constant dense<0.000000e+00> : vector<128x32xf32>
    %36 = tpu.matmul %3, %35, %cst_32 {dimension_numbers = #tpu.dot_dimension_numbers<[1], [0], [0], [1], [0, 0, 1, 1], [], []>} : vector<128x128xbf16>, vector<128x32xbf16>, vector<128x32xf32> -> vector<128x32xf32>
    %37 = arith.truncf %36 : vector<128x32xf32> to vector<128x32xbf16>
    %c1 = arith.constant 1 : index
    %c0_33 = arith.constant 0 : index
    %c0_34 = arith.constant 0 : index
    %38 = vector.load %arg7[%c1, %c0_33, %c0_34] : memref<8x32x32xbf16, #tpu.memory_space<vmem>>, vector<1x32x32xbf16>
    %39 = vector.shape_cast %38 : vector<1x32x32xbf16> to vector<32x32xbf16>
    %cst_35 = arith.constant dense<0.000000e+00> : vector<128x32xf32>
    %40 = tpu.matmul %37, %39, %cst_35 {dimension_numbers = #tpu.dot_dimension_numbers<[1], [0], [0], [1], [0, 0, 1, 1], [], []>} : vector<128x32xbf16>, vector<32x32xbf16>, vector<128x32xf32> -> vector<128x32xf32>
    %c1_36 = arith.constant 1 : index
    %c0_37 = arith.constant 0 : index
    %c0_38 = arith.constant 0 : index
    %41 = vector.load %arg8[%c1_36, %c0_37, %c0_38] : memref<8x1x32xf32, #tpu.memory_space<vmem>>, vector<1x1x32xf32>
    %42 = vector.shape_cast %41 : vector<1x1x32xf32> to vector<1x32xf32>
    %43 = vector.broadcast %42 : vector<1x32xf32> to vector<128x32xf32>
    %44 = arith.addf %40, %43 : vector<128x32xf32>
    %cst_39 = arith.constant 0.000000e+00 : f32
    %45 = vector.broadcast %cst_39 : f32 to vector<128x32xf32>
    %46 = arith.maximumf %44, %45 : vector<128x32xf32>
    %47 = arith.truncf %46 : vector<128x32xf32> to vector<128x32xbf16>
    %c1_40 = arith.constant 1 : index
    %c0_41 = arith.constant 0 : index
    %c0_42 = arith.constant 0 : index
    %48 = vector.load %arg9[%c1_40, %c0_41, %c0_42] : memref<8x32x32xbf16, #tpu.memory_space<vmem>>, vector<1x32x32xbf16>
    %49 = vector.shape_cast %48 : vector<1x32x32xbf16> to vector<32x32xbf16>
    %cst_43 = arith.constant dense<0.000000e+00> : vector<128x32xf32>
    %50 = tpu.matmul %47, %49, %cst_43 {dimension_numbers = #tpu.dot_dimension_numbers<[1], [0], [0], [1], [0, 0, 1, 1], [], []>} : vector<128x32xbf16>, vector<32x32xbf16>, vector<128x32xf32> -> vector<128x32xf32>
    %c1_44 = arith.constant 1 : index
    %c0_45 = arith.constant 0 : index
    %c0_46 = arith.constant 0 : index
    %51 = vector.load %arg10[%c1_44, %c0_45, %c0_46] : memref<8x1x32xf32, #tpu.memory_space<vmem>>, vector<1x1x32xf32>
    %52 = vector.shape_cast %51 : vector<1x1x32xf32> to vector<1x32xf32>
    %53 = vector.broadcast %52 : vector<1x32xf32> to vector<128x32xf32>
    %54 = arith.addf %50, %53 : vector<128x32xf32>
    %55 = arith.addf %54, %10 : vector<128x32xf32>
    %cst_47 = arith.constant 0.000000e+00 : f32
    %56 = vector.broadcast %cst_47 : f32 to vector<128x32xf32>
    %57 = arith.maximumf %55, %56 : vector<128x32xf32>
    %c0_48 = arith.constant 0 : index
    %c64 = arith.constant 64 : index
    %58 = vector.load %arg17[%c0_48, %c64] : memref<128x288xf32, #tpu.memory_space<vmem>>, vector<128x32xf32>
    tpu.vector_store %arg17[%c0_48, %c64], %57 {strides = array<i32>} : memref<128x288xf32, #tpu.memory_space<vmem>>, vector<128x32xf32>,
    %59 = arith.truncf %57 : vector<128x32xf32> to vector<128x32xbf16>
    %cst_49 = arith.constant dense<0.000000e+00> : vector<128x32xf32>
    %60 = tpu.matmul %3, %59, %cst_49 {dimension_numbers = #tpu.dot_dimension_numbers<[1], [0], [0], [1], [0, 0, 1, 1], [], []>} : vector<128x128xbf16>, vector<128x32xbf16>, vector<128x32xf32> -> vector<128x32xf32>
    %61 = arith.truncf %60 : vector<128x32xf32> to vector<128x32xbf16>
    %c2 = arith.constant 2 : index
    %c0_50 = arith.constant 0 : index
    %c0_51 = arith.constant 0 : index
    %62 = vector.load %arg7[%c2, %c0_50, %c0_51] : memref<8x32x32xbf16, #tpu.memory_space<vmem>>, vector<1x32x32xbf16>
    %63 = vector.shape_cast %62 : vector<1x32x32xbf16> to vector<32x32xbf16>
    %cst_52 = arith.constant dense<0.000000e+00> : vector<128x32xf32>
    %64 = tpu.matmul %61, %63, %cst_52 {dimension_numbers = #tpu.dot_dimension_numbers<[1], [0], [0], [1], [0, 0, 1, 1], [], []>} : vector<128x32xbf16>, vector<32x32xbf16>, vector<128x32xf32> -> vector<128x32xf32>
    %c2_53 = arith.constant 2 : index
    %c0_54 = arith.constant 0 : index
    %c0_55 = arith.constant 0 : index
    %65 = vector.load %arg8[%c2_53, %c0_54, %c0_55] : memref<8x1x32xf32, #tpu.memory_space<vmem>>, vector<1x1x32xf32>
    %66 = vector.shape_cast %65 : vector<1x1x32xf32> to vector<1x32xf32>
    %67 = vector.broadcast %66 : vector<1x32xf32> to vector<128x32xf32>
    %68 = arith.addf %64, %67 : vector<128x32xf32>
    %cst_56 = arith.constant 0.000000e+00 : f32
    %69 = vector.broadcast %cst_56 : f32 to vector<128x32xf32>
    %70 = arith.maximumf %68, %69 : vector<128x32xf32>
    %71 = arith.truncf %70 : vector<128x32xf32> to vector<128x32xbf16>
    %c2_57 = arith.constant 2 : index
    %c0_58 = arith.constant 0 : index
    %c0_59 = arith.constant 0 : index
    %72 = vector.load %arg9[%c2_57, %c0_58, %c0_59] : memref<8x32x32xbf16, #tpu.memory_space<vmem>>, vector<1x32x32xbf16>
    %73 = vector.shape_cast %72 : vector<1x32x32xbf16> to vector<32x32xbf16>
    %cst_60 = arith.constant dense<0.000000e+00> : vector<128x32xf32>
    %74 = tpu.matmul %71, %73, %cst_60 {dimension_numbers = #tpu.dot_dimension_numbers<[1], [0], [0], [1], [0, 0, 1, 1], [], []>} : vector<128x32xbf16>, vector<32x32xbf16>, vector<128x32xf32> -> vector<128x32xf32>
    %c2_61 = arith.constant 2 : index
    %c0_62 = arith.constant 0 : index
    %c0_63 = arith.constant 0 : index
    %75 = vector.load %arg10[%c2_61, %c0_62, %c0_63] : memref<8x1x32xf32, #tpu.memory_space<vmem>>, vector<1x1x32xf32>
    %76 = vector.shape_cast %75 : vector<1x1x32xf32> to vector<1x32xf32>
    %77 = vector.broadcast %76 : vector<1x32xf32> to vector<128x32xf32>
    %78 = arith.addf %74, %77 : vector<128x32xf32>
    %cst_64 = arith.constant 0.000000e+00 : f32
    %79 = vector.broadcast %cst_64 : f32 to vector<128x32xf32>
    %80 = arith.maximumf %78, %79 : vector<128x32xf32>
    %c0_65 = arith.constant 0 : index
    %c96 = arith.constant 96 : index
    %81 = vector.load %arg17[%c0_65, %c96] : memref<128x288xf32, #tpu.memory_space<vmem>>, vector<128x32xf32>
    tpu.vector_store %arg17[%c0_65, %c96], %80 {strides = array<i32>} : memref<128x288xf32, #tpu.memory_space<vmem>>, vector<128x32xf32>,
    %82 = arith.truncf %80 : vector<128x32xf32> to vector<128x32xbf16>
    %cst_66 = arith.constant dense<0.000000e+00> : vector<128x32xf32>
    %83 = tpu.matmul %3, %82, %cst_66 {dimension_numbers = #tpu.dot_dimension_numbers<[1], [0], [0], [1], [0, 0, 1, 1], [], []>} : vector<128x128xbf16>, vector<128x32xbf16>, vector<128x32xf32> -> vector<128x32xf32>
    %84 = arith.truncf %83 : vector<128x32xf32> to vector<128x32xbf16>
    %c3 = arith.constant 3 : index
    %c0_67 = arith.constant 0 : index
    %c0_68 = arith.constant 0 : index
    %85 = vector.load %arg7[%c3, %c0_67, %c0_68] : memref<8x32x32xbf16, #tpu.memory_space<vmem>>, vector<1x32x32xbf16>
    %86 = vector.shape_cast %85 : vector<1x32x32xbf16> to vector<32x32xbf16>
    %cst_69 = arith.constant dense<0.000000e+00> : vector<128x32xf32>
    %87 = tpu.matmul %84, %86, %cst_69 {dimension_numbers = #tpu.dot_dimension_numbers<[1], [0], [0], [1], [0, 0, 1, 1], [], []>} : vector<128x32xbf16>, vector<32x32xbf16>, vector<128x32xf32> -> vector<128x32xf32>
    %c3_70 = arith.constant 3 : index
    %c0_71 = arith.constant 0 : index
    %c0_72 = arith.constant 0 : index
    %88 = vector.load %arg8[%c3_70, %c0_71, %c0_72] : memref<8x1x32xf32, #tpu.memory_space<vmem>>, vector<1x1x32xf32>
    %89 = vector.shape_cast %88 : vector<1x1x32xf32> to vector<1x32xf32>
    %90 = vector.broadcast %89 : vector<1x32xf32> to vector<128x32xf32>
    %91 = arith.addf %87, %90 : vector<128x32xf32>
    %cst_73 = arith.constant 0.000000e+00 : f32
    %92 = vector.broadcast %cst_73 : f32 to vector<128x32xf32>
    %93 = arith.maximumf %91, %92 : vector<128x32xf32>
    %94 = arith.truncf %93 : vector<128x32xf32> to vector<128x32xbf16>
    %c3_74 = arith.constant 3 : index
    %c0_75 = arith.constant 0 : index
    %c0_76 = arith.constant 0 : index
    %95 = vector.load %arg9[%c3_74, %c0_75, %c0_76] : memref<8x32x32xbf16, #tpu.memory_space<vmem>>, vector<1x32x32xbf16>
    %96 = vector.shape_cast %95 : vector<1x32x32xbf16> to vector<32x32xbf16>
    %cst_77 = arith.constant dense<0.000000e+00> : vector<128x32xf32>
    %97 = tpu.matmul %94, %96, %cst_77 {dimension_numbers = #tpu.dot_dimension_numbers<[1], [0], [0], [1], [0, 0, 1, 1], [], []>} : vector<128x32xbf16>, vector<32x32xbf16>, vector<128x32xf32> -> vector<128x32xf32>
    %c3_78 = arith.constant 3 : index
    %c0_79 = arith.constant 0 : index
    %c0_80 = arith.constant 0 : index
    %98 = vector.load %arg10[%c3_78, %c0_79, %c0_80] : memref<8x1x32xf32, #tpu.memory_space<vmem>>, vector<1x1x32xf32>
    %99 = vector.shape_cast %98 : vector<1x1x32xf32> to vector<1x32xf32>
    %100 = vector.broadcast %99 : vector<1x32xf32> to vector<128x32xf32>
    %101 = arith.addf %97, %100 : vector<128x32xf32>
    %102 = arith.addf %101, %55 : vector<128x32xf32>
    %cst_81 = arith.constant 0.000000e+00 : f32
    %103 = vector.broadcast %cst_81 : f32 to vector<128x32xf32>
    %104 = arith.maximumf %102, %103 : vector<128x32xf32>
    %c0_82 = arith.constant 0 : index
    %c128 = arith.constant 128 : index
    %105 = vector.load %arg17[%c0_82, %c128] : memref<128x288xf32, #tpu.memory_space<vmem>>, vector<128x32xf32>
    tpu.vector_store %arg17[%c0_82, %c128], %104 {strides = array<i32>} : memref<128x288xf32, #tpu.memory_space<vmem>>, vector<128x32xf32>,
    %106 = arith.truncf %104 : vector<128x32xf32> to vector<128x32xbf16>
    %cst_83 = arith.constant dense<0.000000e+00> : vector<128x32xf32>
    %107 = tpu.matmul %3, %106, %cst_83 {dimension_numbers = #tpu.dot_dimension_numbers<[1], [0], [0], [1], [0, 0, 1, 1], [], []>} : vector<128x128xbf16>, vector<128x32xbf16>, vector<128x32xf32> -> vector<128x32xf32>
    %108 = arith.truncf %107 : vector<128x32xf32> to vector<128x32xbf16>
    %c4 = arith.constant 4 : index
    %c0_84 = arith.constant 0 : index
    %c0_85 = arith.constant 0 : index
    %109 = vector.load %arg7[%c4, %c0_84, %c0_85] : memref<8x32x32xbf16, #tpu.memory_space<vmem>>, vector<1x32x32xbf16>
    %110 = vector.shape_cast %109 : vector<1x32x32xbf16> to vector<32x32xbf16>
    %cst_86 = arith.constant dense<0.000000e+00> : vector<128x32xf32>
    %111 = tpu.matmul %108, %110, %cst_86 {dimension_numbers = #tpu.dot_dimension_numbers<[1], [0], [0], [1], [0, 0, 1, 1], [], []>} : vector<128x32xbf16>, vector<32x32xbf16>, vector<128x32xf32> -> vector<128x32xf32>
    %c4_87 = arith.constant 4 : index
    %c0_88 = arith.constant 0 : index
    %c0_89 = arith.constant 0 : index
    %112 = vector.load %arg8[%c4_87, %c0_88, %c0_89] : memref<8x1x32xf32, #tpu.memory_space<vmem>>, vector<1x1x32xf32>
    %113 = vector.shape_cast %112 : vector<1x1x32xf32> to vector<1x32xf32>
    %114 = vector.broadcast %113 : vector<1x32xf32> to vector<128x32xf32>
    %115 = arith.addf %111, %114 : vector<128x32xf32>
    %cst_90 = arith.constant 0.000000e+00 : f32
    %116 = vector.broadcast %cst_90 : f32 to vector<128x32xf32>
    %117 = arith.maximumf %115, %116 : vector<128x32xf32>
    %118 = arith.truncf %117 : vector<128x32xf32> to vector<128x32xbf16>
    %c4_91 = arith.constant 4 : index
    %c0_92 = arith.constant 0 : index
    %c0_93 = arith.constant 0 : index
    %119 = vector.load %arg9[%c4_91, %c0_92, %c0_93] : memref<8x32x32xbf16, #tpu.memory_space<vmem>>, vector<1x32x32xbf16>
    %120 = vector.shape_cast %119 : vector<1x32x32xbf16> to vector<32x32xbf16>
    %cst_94 = arith.constant dense<0.000000e+00> : vector<128x32xf32>
    %121 = tpu.matmul %118, %120, %cst_94 {dimension_numbers = #tpu.dot_dimension_numbers<[1], [0], [0], [1], [0, 0, 1, 1], [], []>} : vector<128x32xbf16>, vector<32x32xbf16>, vector<128x32xf32> -> vector<128x32xf32>
    %c4_95 = arith.constant 4 : index
    %c0_96 = arith.constant 0 : index
    %c0_97 = arith.constant 0 : index
    %122 = vector.load %arg10[%c4_95, %c0_96, %c0_97] : memref<8x1x32xf32, #tpu.memory_space<vmem>>, vector<1x1x32xf32>
    %123 = vector.shape_cast %122 : vector<1x1x32xf32> to vector<1x32xf32>
    %124 = vector.broadcast %123 : vector<1x32xf32> to vector<128x32xf32>
    %125 = arith.addf %121, %124 : vector<128x32xf32>
    %cst_98 = arith.constant 0.000000e+00 : f32
    %126 = vector.broadcast %cst_98 : f32 to vector<128x32xf32>
    %127 = arith.maximumf %125, %126 : vector<128x32xf32>
    %c0_99 = arith.constant 0 : index
    %c160 = arith.constant 160 : index
    %128 = vector.load %arg17[%c0_99, %c160] : memref<128x288xf32, #tpu.memory_space<vmem>>, vector<128x32xf32>
    tpu.vector_store %arg17[%c0_99, %c160], %127 {strides = array<i32>} : memref<128x288xf32, #tpu.memory_space<vmem>>, vector<128x32xf32>,
    %129 = arith.truncf %127 : vector<128x32xf32> to vector<128x32xbf16>
    %cst_100 = arith.constant dense<0.000000e+00> : vector<128x32xf32>
    %130 = tpu.matmul %3, %129, %cst_100 {dimension_numbers = #tpu.dot_dimension_numbers<[1], [0], [0], [1], [0, 0, 1, 1], [], []>} : vector<128x128xbf16>, vector<128x32xbf16>, vector<128x32xf32> -> vector<128x32xf32>
    %131 = arith.truncf %130 : vector<128x32xf32> to vector<128x32xbf16>
    %c5 = arith.constant 5 : index
    %c0_101 = arith.constant 0 : index
    %c0_102 = arith.constant 0 : index
    %132 = vector.load %arg7[%c5, %c0_101, %c0_102] : memref<8x32x32xbf16, #tpu.memory_space<vmem>>, vector<1x32x32xbf16>
    %133 = vector.shape_cast %132 : vector<1x32x32xbf16> to vector<32x32xbf16>
    %cst_103 = arith.constant dense<0.000000e+00> : vector<128x32xf32>
    %134 = tpu.matmul %131, %133, %cst_103 {dimension_numbers = #tpu.dot_dimension_numbers<[1], [0], [0], [1], [0, 0, 1, 1], [], []>} : vector<128x32xbf16>, vector<32x32xbf16>, vector<128x32xf32> -> vector<128x32xf32>
    %c5_104 = arith.constant 5 : index
    %c0_105 = arith.constant 0 : index
    %c0_106 = arith.constant 0 : index
    %135 = vector.load %arg8[%c5_104, %c0_105, %c0_106] : memref<8x1x32xf32, #tpu.memory_space<vmem>>, vector<1x1x32xf32>
    %136 = vector.shape_cast %135 : vector<1x1x32xf32> to vector<1x32xf32>
    %137 = vector.broadcast %136 : vector<1x32xf32> to vector<128x32xf32>
    %138 = arith.addf %134, %137 : vector<128x32xf32>
    %cst_107 = arith.constant 0.000000e+00 : f32
    %139 = vector.broadcast %cst_107 : f32 to vector<128x32xf32>
    %140 = arith.maximumf %138, %139 : vector<128x32xf32>
    %141 = arith.truncf %140 : vector<128x32xf32> to vector<128x32xbf16>
    %c5_108 = arith.constant 5 : index
    %c0_109 = arith.constant 0 : index
    %c0_110 = arith.constant 0 : index
    %142 = vector.load %arg9[%c5_108, %c0_109, %c0_110] : memref<8x32x32xbf16, #tpu.memory_space<vmem>>, vector<1x32x32xbf16>
    %143 = vector.shape_cast %142 : vector<1x32x32xbf16> to vector<32x32xbf16>
    %cst_111 = arith.constant dense<0.000000e+00> : vector<128x32xf32>
    %144 = tpu.matmul %141, %143, %cst_111 {dimension_numbers = #tpu.dot_dimension_numbers<[1], [0], [0], [1], [0, 0, 1, 1], [], []>} : vector<128x32xbf16>, vector<32x32xbf16>, vector<128x32xf32> -> vector<128x32xf32>
    %c5_112 = arith.constant 5 : index
    %c0_113 = arith.constant 0 : index
    %c0_114 = arith.constant 0 : index
    %145 = vector.load %arg10[%c5_112, %c0_113, %c0_114] : memref<8x1x32xf32, #tpu.memory_space<vmem>>, vector<1x1x32xf32>
    %146 = vector.shape_cast %145 : vector<1x1x32xf32> to vector<1x32xf32>
    %147 = vector.broadcast %146 : vector<1x32xf32> to vector<128x32xf32>
    %148 = arith.addf %144, %147 : vector<128x32xf32>
    %149 = arith.addf %148, %102 : vector<128x32xf32>
    %cst_115 = arith.constant 0.000000e+00 : f32
    %150 = vector.broadcast %cst_115 : f32 to vector<128x32xf32>
    %151 = arith.maximumf %149, %150 : vector<128x32xf32>
    %c0_116 = arith.constant 0 : index
    %c192 = arith.constant 192 : index
    %152 = vector.load %arg17[%c0_116, %c192] : memref<128x288xf32, #tpu.memory_space<vmem>>, vector<128x32xf32>
    tpu.vector_store %arg17[%c0_116, %c192], %151 {strides = array<i32>} : memref<128x288xf32, #tpu.memory_space<vmem>>, vector<128x32xf32>,
    %153 = arith.truncf %151 : vector<128x32xf32> to vector<128x32xbf16>
    %cst_117 = arith.constant dense<0.000000e+00> : vector<128x32xf32>
    %154 = tpu.matmul %3, %153, %cst_117 {dimension_numbers = #tpu.dot_dimension_numbers<[1], [0], [0], [1], [0, 0, 1, 1], [], []>} : vector<128x128xbf16>, vector<128x32xbf16>, vector<128x32xf32> -> vector<128x32xf32>
    %155 = arith.truncf %154 : vector<128x32xf32> to vector<128x32xbf16>
    %c6 = arith.constant 6 : index
    %c0_118 = arith.constant 0 : index
    %c0_119 = arith.constant 0 : index
    %156 = vector.load %arg7[%c6, %c0_118, %c0_119] : memref<8x32x32xbf16, #tpu.memory_space<vmem>>, vector<1x32x32xbf16>
    %157 = vector.shape_cast %156 : vector<1x32x32xbf16> to vector<32x32xbf16>
    %cst_120 = arith.constant dense<0.000000e+00> : vector<128x32xf32>
    %158 = tpu.matmul %155, %157, %cst_120 {dimension_numbers = #tpu.dot_dimension_numbers<[1], [0], [0], [1], [0, 0, 1, 1], [], []>} : vector<128x32xbf16>, vector<32x32xbf16>, vector<128x32xf32> -> vector<128x32xf32>
    %c6_121 = arith.constant 6 : index
    %c0_122 = arith.constant 0 : index
    %c0_123 = arith.constant 0 : index
    %159 = vector.load %arg8[%c6_121, %c0_122, %c0_123] : memref<8x1x32xf32, #tpu.memory_space<vmem>>, vector<1x1x32xf32>
    %160 = vector.shape_cast %159 : vector<1x1x32xf32> to vector<1x32xf32>
    %161 = vector.broadcast %160 : vector<1x32xf32> to vector<128x32xf32>
    %162 = arith.addf %158, %161 : vector<128x32xf32>
    %cst_124 = arith.constant 0.000000e+00 : f32
    %163 = vector.broadcast %cst_124 : f32 to vector<128x32xf32>
    %164 = arith.maximumf %162, %163 : vector<128x32xf32>
    %165 = arith.truncf %164 : vector<128x32xf32> to vector<128x32xbf16>
    %c6_125 = arith.constant 6 : index
    %c0_126 = arith.constant 0 : index
    %c0_127 = arith.constant 0 : index
    %166 = vector.load %arg9[%c6_125, %c0_126, %c0_127] : memref<8x32x32xbf16, #tpu.memory_space<vmem>>, vector<1x32x32xbf16>
    %167 = vector.shape_cast %166 : vector<1x32x32xbf16> to vector<32x32xbf16>
    %cst_128 = arith.constant dense<0.000000e+00> : vector<128x32xf32>
    %168 = tpu.matmul %165, %167, %cst_128 {dimension_numbers = #tpu.dot_dimension_numbers<[1], [0], [0], [1], [0, 0, 1, 1], [], []>} : vector<128x32xbf16>, vector<32x32xbf16>, vector<128x32xf32> -> vector<128x32xf32>
    %c6_129 = arith.constant 6 : index
    %c0_130 = arith.constant 0 : index
    %c0_131 = arith.constant 0 : index
    %169 = vector.load %arg10[%c6_129, %c0_130, %c0_131] : memref<8x1x32xf32, #tpu.memory_space<vmem>>, vector<1x1x32xf32>
    %170 = vector.shape_cast %169 : vector<1x1x32xf32> to vector<1x32xf32>
    %171 = vector.broadcast %170 : vector<1x32xf32> to vector<128x32xf32>
    %172 = arith.addf %168, %171 : vector<128x32xf32>
    %cst_132 = arith.constant 0.000000e+00 : f32
    %173 = vector.broadcast %cst_132 : f32 to vector<128x32xf32>
    %174 = arith.maximumf %172, %173 : vector<128x32xf32>
    %c0_133 = arith.constant 0 : index
    %c224 = arith.constant 224 : index
    %175 = vector.load %arg17[%c0_133, %c224] : memref<128x288xf32, #tpu.memory_space<vmem>>, vector<128x32xf32>
    tpu.vector_store %arg17[%c0_133, %c224], %174 {strides = array<i32>} : memref<128x288xf32, #tpu.memory_space<vmem>>, vector<128x32xf32>,
    %176 = arith.truncf %174 : vector<128x32xf32> to vector<128x32xbf16>
    %cst_134 = arith.constant dense<0.000000e+00> : vector<128x32xf32>
    %177 = tpu.matmul %3, %176, %cst_134 {dimension_numbers = #tpu.dot_dimension_numbers<[1], [0], [0], [1], [0, 0, 1, 1], [], []>} : vector<128x128xbf16>, vector<128x32xbf16>, vector<128x32xf32> -> vector<128x32xf32>
    %178 = arith.truncf %177 : vector<128x32xf32> to vector<128x32xbf16>
    %c7 = arith.constant 7 : index
    %c0_135 = arith.constant 0 : index
    %c0_136 = arith.constant 0 : index
    %179 = vector.load %arg7[%c7, %c0_135, %c0_136] : memref<8x32x32xbf16, #tpu.memory_space<vmem>>, vector<1x32x32xbf16>
    %180 = vector.shape_cast %179 : vector<1x32x32xbf16> to vector<32x32xbf16>
    %cst_137 = arith.constant dense<0.000000e+00> : vector<128x32xf32>
    %181 = tpu.matmul %178, %180, %cst_137 {dimension_numbers = #tpu.dot_dimension_numbers<[1], [0], [0], [1], [0, 0, 1, 1], [], []>} : vector<128x32xbf16>, vector<32x32xbf16>, vector<128x32xf32> -> vector<128x32xf32>
    %c7_138 = arith.constant 7 : index
    %c0_139 = arith.constant 0 : index
    %c0_140 = arith.constant 0 : index
    %182 = vector.load %arg8[%c7_138, %c0_139, %c0_140] : memref<8x1x32xf32, #tpu.memory_space<vmem>>, vector<1x1x32xf32>
    %183 = vector.shape_cast %182 : vector<1x1x32xf32> to vector<1x32xf32>
    %184 = vector.broadcast %183 : vector<1x32xf32> to vector<128x32xf32>
    %185 = arith.addf %181, %184 : vector<128x32xf32>
    %cst_141 = arith.constant 0.000000e+00 : f32
    %186 = vector.broadcast %cst_141 : f32 to vector<128x32xf32>
    %187 = arith.maximumf %185, %186 : vector<128x32xf32>
    %188 = arith.truncf %187 : vector<128x32xf32> to vector<128x32xbf16>
    %c7_142 = arith.constant 7 : index
    %c0_143 = arith.constant 0 : index
    %c0_144 = arith.constant 0 : index
    %189 = vector.load %arg9[%c7_142, %c0_143, %c0_144] : memref<8x32x32xbf16, #tpu.memory_space<vmem>>, vector<1x32x32xbf16>
    %190 = vector.shape_cast %189 : vector<1x32x32xbf16> to vector<32x32xbf16>
    %cst_145 = arith.constant dense<0.000000e+00> : vector<128x32xf32>
    %191 = tpu.matmul %188, %190, %cst_145 {dimension_numbers = #tpu.dot_dimension_numbers<[1], [0], [0], [1], [0, 0, 1, 1], [], []>} : vector<128x32xbf16>, vector<32x32xbf16>, vector<128x32xf32> -> vector<128x32xf32>
    %c7_146 = arith.constant 7 : index
    %c0_147 = arith.constant 0 : index
    %c0_148 = arith.constant 0 : index
    %192 = vector.load %arg10[%c7_146, %c0_147, %c0_148] : memref<8x1x32xf32, #tpu.memory_space<vmem>>, vector<1x1x32xf32>
    %193 = vector.shape_cast %192 : vector<1x1x32xf32> to vector<1x32xf32>
    %194 = vector.broadcast %193 : vector<1x32xf32> to vector<128x32xf32>
    %195 = arith.addf %191, %194 : vector<128x32xf32>
    %196 = arith.addf %195, %149 : vector<128x32xf32>
    %cst_149 = arith.constant 0.000000e+00 : f32
    %197 = vector.broadcast %cst_149 : f32 to vector<128x32xf32>
    %198 = arith.maximumf %196, %197 : vector<128x32xf32>
    %c0_150 = arith.constant 0 : index
    %c256 = arith.constant 256 : index
    %199 = vector.load %arg17[%c0_150, %c256] : memref<128x288xf32, #tpu.memory_space<vmem>>, vector<128x32xf32>
    tpu.vector_store %arg17[%c0_150, %c256], %198 {strides = array<i32>} : memref<128x288xf32, #tpu.memory_space<vmem>>, vector<128x32xf32>,
    %c0_151 = arith.constant 0 : index
    %c0_152 = arith.constant 0 : index
    %200 = vector.load %arg17[%c0_151, %c0_152] : memref<128x288xf32, #tpu.memory_space<vmem>>, vector<128x288xf32>
    %201 = arith.truncf %200 : vector<128x288xf32> to vector<128x288xbf16>
    %cst_153 = arith.constant dense<0.000000e+00> : vector<16x288xf32>
    %202 = tpu.matmul %5, %201, %cst_153 {dimension_numbers = #tpu.dot_dimension_numbers<[1], [0], [0], [1], [0, 0, 1, 1], [], []>} : vector<16x128xbf16>, vector<128x288xbf16>, vector<16x288xf32> -> vector<16x288xf32>
    %203 = arith.truncf %202 : vector<16x288xf32> to vector<16x288xbf16>
    %c0_154 = arith.constant 0 : index
    %c0_155 = arith.constant 0 : index
    %204 = vector.load %arg11[%c0_154, %c0_155] : memref<288x32xbf16, #tpu.memory_space<vmem>>, vector<288x32xbf16>
    %cst_156 = arith.constant dense<0.000000e+00> : vector<16x32xf32>
    %205 = tpu.matmul %203, %204, %cst_156 {dimension_numbers = #tpu.dot_dimension_numbers<[1], [0], [0], [1], [0, 0, 1, 1], [], []>} : vector<16x288xbf16>, vector<288x32xbf16>, vector<16x32xf32> -> vector<16x32xf32>
    %c0_157 = arith.constant 0 : index
    %c0_158 = arith.constant 0 : index
    %206 = vector.load %arg12[%c0_157, %c0_158] : memref<1x32xf32, #tpu.memory_space<vmem>>, vector<1x32xf32>
    %207 = vector.broadcast %206 : vector<1x32xf32> to vector<16x32xf32>
    %208 = arith.addf %205, %207 : vector<16x32xf32>
    %cst_159 = arith.constant 0.000000e+00 : f32
    %209 = vector.broadcast %cst_159 : f32 to vector<16x32xf32>
    %210 = arith.maximumf %208, %209 : vector<16x32xf32>
    %211 = arith.truncf %210 : vector<16x32xf32> to vector<16x32xbf16>
    %c0_160 = arith.constant 0 : index
    %c0_161 = arith.constant 0 : index
    %212 = vector.load %arg13[%c0_160, %c0_161] : memref<32x32xbf16, #tpu.memory_space<vmem>>, vector<32x32xbf16>
    %cst_162 = arith.constant dense<0.000000e+00> : vector<16x32xf32>
    %213 = tpu.matmul %211, %212, %cst_162 {dimension_numbers = #tpu.dot_dimension_numbers<[1], [0], [0], [1], [0, 0, 1, 1], [], []>} : vector<16x32xbf16>, vector<32x32xbf16>, vector<16x32xf32> -> vector<16x32xf32>
    %c0_163 = arith.constant 0 : index
    %c0_164 = arith.constant 0 : index
    %214 = vector.load %arg14[%c0_163, %c0_164] : memref<1x32xf32, #tpu.memory_space<vmem>>, vector<1x32xf32>
    %215 = vector.broadcast %214 : vector<1x32xf32> to vector<16x32xf32>
    %216 = arith.addf %213, %215 : vector<16x32xf32>
    %217 = vector.extract_strided_slice %216 {offsets = [0, 0], sizes = [8, 32], strides = [1, 1]} : vector<16x32xf32> to vector<8x32xf32>
    %218 = vector.extract_strided_slice %216 {offsets = [8, 0], sizes = [8, 32], strides = [1, 1]} : vector<16x32xf32> to vector<8x32xf32>
    %219 = arith.subf %217, %218 : vector<8x32xf32>
    %cst_165 = arith.constant dense<0.000000e+00> : vector<8x8xf32>
    %220 = tpu.matmul %219, %219, %cst_165 {dimension_numbers = #tpu.dot_dimension_numbers<[1], [1], [0], [0], [0, 0, 1, 0], [], []>} : vector<8x32xf32>, vector<8x32xf32>, vector<8x8xf32> -> vector<8x8xf32>
    %221 = tpu.iota {dimensions = array<i32: 0>} : vector<8x8xi32>
    %222 = tpu.iota {dimensions = array<i32: 1>} : vector<8x8xi32>
    %223 = arith.cmpi eq, %221, %222 : vector<8x8xi32>
    %224 = arith.extui %223 : vector<8x8xi1> to vector<8x8xi32>
    %225 = arith.sitofp %224 : vector<8x8xi32> to vector<8x8xf32>
    %226 = arith.mulf %220, %225 : vector<8x8xf32>
    %cst_166 = arith.constant dense<0.000000e+00> : vector<8xf32>
    %227 = vector.multi_reduction <add>, %226, %cst_166 [0] : vector<8x8xf32> to vector<8xf32>
    %228 = vector.shape_cast %227 : vector<8xf32> to vector<1x8xf32>
    %229 = math.sqrt %228 : vector<1x8xf32>
    %c0_167 = arith.constant 0 : index
    %c0_168 = arith.constant 0 : index
    %c0_169 = arith.constant 0 : index
    %230 = vector.load %arg15[%c0_167, %c0_168, %c0_169] : memref<1x1x8xf32, #tpu.memory_space<vmem>>, vector<1x1x8xf32>
    %231 = vector.shape_cast %230 : vector<1x1x8xf32> to vector<1x8xf32>
    %232 = vector.shape_cast %229 : vector<1x8xf32> to vector<1x1x8xf32>
    tpu.vector_store %arg15[%c0_167, %c0_168, %c0_169], %232 {strides = array<i32>} : memref<1x1x8xf32, #tpu.memory_space<vmem>>, vector<1x1x8xf32>,
    %233 = math.log %229 : vector<1x8xf32>
    %cst_170 = arith.constant 0.000000e+00 : f32
    %234 = vector.broadcast %cst_170 : f32 to vector<1x8xf32>
    %235 = arith.subf %234, %233 : vector<1x8xf32>
    %c0_171 = arith.constant 0 : index
    %c0_172 = arith.constant 0 : index
    %c0_173 = arith.constant 0 : index
    %236 = vector.load %arg4[%c0_171, %c0_172, %c0_173] : memref<1x1x8xf32, #tpu.memory_space<vmem>>, vector<1x1x8xf32>
    %237 = vector.shape_cast %236 : vector<1x1x8xf32> to vector<1x8xf32>
    %238 = arith.mulf %235, %237 : vector<1x8xf32>
    %c0_174 = arith.constant 0 : index
    %c0_175 = arith.constant 0 : index
    %c0_176 = arith.constant 0 : index
    %239 = vector.load %arg16[%c0_174, %c0_175, %c0_176] : memref<1x1x8xf32, #tpu.memory_space<vmem>>, vector<1x1x8xf32>
    %240 = vector.shape_cast %239 : vector<1x1x8xf32> to vector<1x8xf32>
    %241 = vector.shape_cast %238 : vector<1x8xf32> to vector<1x1x8xf32>
    tpu.vector_store %arg16[%c0_174, %c0_175, %c0_176], %241 {strides = array<i32>} : memref<1x1x8xf32, #tpu.memory_space<vmem>>, vector<1x1x8xf32>,
    return
  }
  func.func @transform_0(%arg0: i32) -> (i32, i32, i32) {
    %c0_i32 = arith.constant 0 : i32
    %c0_i32_0 = arith.constant 0 : i32
    %c0_i32_1 = arith.constant 0 : i32
    return %arg0, %c0_i32, %c0_i32_0 : i32, i32, i32
  }
  func.func @transform_1(%arg0: i32) -> (i32, i32, i32) {
    %c0_i32 = arith.constant 0 : i32
    %c0_i32_0 = arith.constant 0 : i32
    %c0_i32_1 = arith.constant 0 : i32
    return %arg0, %c0_i32, %c0_i32_0 : i32, i32, i32
  }
  func.func @transform_2(%arg0: i32) -> (i32, i32, i32) {
    %c0_i32 = arith.constant 0 : i32
    %c0_i32_0 = arith.constant 0 : i32
    %c0_i32_1 = arith.constant 0 : i32
    return %arg0, %c0_i32, %c0_i32_0 : i32, i32, i32
  }
  func.func @transform_3(%arg0: i32) -> (i32, i32, i32) {
    %c0_i32 = arith.constant 0 : i32
    %c0_i32_0 = arith.constant 0 : i32
    %c0_i32_1 = arith.constant 0 : i32
    return %arg0, %c0_i32, %c0_i32_0 : i32, i32, i32
  }
  func.func @transform_4(%arg0: i32) -> (i32, i32) {
    %c0_i32 = arith.constant 0 : i32
    %c0_i32_0 = arith.constant 0 : i32
    %c0_i32_1 = arith.constant 0 : i32
    return %c0_i32, %c0_i32_0 : i32, i32
  }
  func.func @transform_5(%arg0: i32) -> (i32, i32) {
    %c0_i32 = arith.constant 0 : i32
    %c0_i32_0 = arith.constant 0 : i32
    %c0_i32_1 = arith.constant 0 : i32
    return %c0_i32, %c0_i32_0 : i32, i32
  }
  func.func @transform_6(%arg0: i32) -> (i32, i32, i32) {
    %c0_i32 = arith.constant 0 : i32
    %c0_i32_0 = arith.constant 0 : i32
    %c0_i32_1 = arith.constant 0 : i32
    %c0_i32_2 = arith.constant 0 : i32
    return %c0_i32, %c0_i32_0, %c0_i32_1 : i32, i32, i32
  }
  func.func @transform_7(%arg0: i32) -> (i32, i32, i32) {
    %c0_i32 = arith.constant 0 : i32
    %c0_i32_0 = arith.constant 0 : i32
    %c0_i32_1 = arith.constant 0 : i32
    %c0_i32_2 = arith.constant 0 : i32
    return %c0_i32, %c0_i32_0, %c0_i32_1 : i32, i32, i32
  }
  func.func @transform_8(%arg0: i32) -> (i32, i32, i32) {
    %c0_i32 = arith.constant 0 : i32
    %c0_i32_0 = arith.constant 0 : i32
    %c0_i32_1 = arith.constant 0 : i32
    %c0_i32_2 = arith.constant 0 : i32
    return %c0_i32, %c0_i32_0, %c0_i32_1 : i32, i32, i32
  }
  func.func @transform_9(%arg0: i32) -> (i32, i32, i32) {
    %c0_i32 = arith.constant 0 : i32
    %c0_i32_0 = arith.constant 0 : i32
    %c0_i32_1 = arith.constant 0 : i32
    %c0_i32_2 = arith.constant 0 : i32
    return %c0_i32, %c0_i32_0, %c0_i32_1 : i32, i32, i32
  }
  func.func @transform_10(%arg0: i32) -> (i32, i32) {
    %c0_i32 = arith.constant 0 : i32
    %c0_i32_0 = arith.constant 0 : i32
    %c0_i32_1 = arith.constant 0 : i32
    return %c0_i32, %c0_i32_0 : i32, i32
  }
  func.func @transform_11(%arg0: i32) -> (i32, i32) {
    %c0_i32 = arith.constant 0 : i32
    %c0_i32_0 = arith.constant 0 : i32
    %c0_i32_1 = arith.constant 0 : i32
    return %c0_i32, %c0_i32_0 : i32, i32
  }
  func.func @transform_12(%arg0: i32) -> (i32, i32) {
    %c0_i32 = arith.constant 0 : i32
    %c0_i32_0 = arith.constant 0 : i32
    %c0_i32_1 = arith.constant 0 : i32
    return %c0_i32, %c0_i32_0 : i32, i32
  }
  func.func @transform_13(%arg0: i32) -> (i32, i32) {
    %c0_i32 = arith.constant 0 : i32
    %c0_i32_0 = arith.constant 0 : i32
    %c0_i32_1 = arith.constant 0 : i32
    return %c0_i32, %c0_i32_0 : i32, i32
  }
  func.func @transform_14(%arg0: i32) -> (i32, i32, i32) {
    %c0_i32 = arith.constant 0 : i32
    %c0_i32_0 = arith.constant 0 : i32
    %c0_i32_1 = arith.constant 0 : i32
    return %arg0, %c0_i32, %c0_i32_0 : i32, i32, i32
  }
  func.func @transform_15(%arg0: i32) -> (i32, i32, i32) {
    %c0_i32 = arith.constant 0 : i32
    %c0_i32_0 = arith.constant 0 : i32
    %c0_i32_1 = arith.constant 0 : i32
    return %arg0, %c0_i32, %c0_i32_0 : i32, i32, i32
  }
}

</mosaic_0001>

<llo_original>
// kernel: tpu_custom_call.1
$region0: #{tpu_custom_call.1}
  #allocation0 [shape = 'u32[]', space=smem, size = 0x4, offset = 0x4, fixed_abs, tag = 'smem constant byte address 0x4 - core index']
  #allocation1 [shape = 'u32[144,128]{1,0:T(1,128)}', space=vmem, size = 0x12000, scoped, tag = 'internal scratch']
  #allocation2 [shape = 'f32[128,288]{1,0:T(8,128)}', space=vmem, size = 0x30000, scoped, tag = 'scratch operand']
  %s0 = inlined_call_operand.vmem [shape: bf16[4,128,16], index: 0, kind: input, shape index: {}]
  %s1 = inlined_call_operand.vmem [shape: bf16[4,128,128], index: 1, kind: input, shape index: {}]
  %s2 = inlined_call_operand.vmem [shape: bf16[4,16,128], index: 2, kind: input, shape index: {}]
  %s3 = inlined_call_operand.vmem [shape: f32[4,1,8], index: 3, kind: input, shape index: {}]
  %s4 = inlined_call_operand.vmem [shape: bf16[16,32], index: 4, kind: input, shape index: {}]
  %s5 = inlined_call_operand.vmem [shape: f32[1,32], index: 5, kind: input, shape index: {}]
  %s6 = inlined_call_operand.vmem [shape: bf16[8,32,32], index: 6, kind: input, shape index: {}]
  %s7 = inlined_call_operand.vmem [shape: f32[8,1,32], index: 7, kind: input, shape index: {}]
  %s8 = inlined_call_operand.hbm [shape: bf16[8,32,32], index: 8, kind: input, shape index: {}]
  %s9 = inlined_call_operand.vmem [shape: f32[8,1,32], index: 9, kind: input, shape index: {}]
  %s10 = inlined_call_operand.vmem [shape: bf16[288,32], index: 10, kind: input, shape index: {}]
  %s11 = inlined_call_operand.vmem [shape: f32[1,32], index: 11, kind: input, shape index: {}]
  %s12 = inlined_call_operand.vmem [shape: bf16[32,32], index: 12, kind: input, shape index: {}]
  %s13 = inlined_call_operand.vmem [shape: f32[1,32], index: 13, kind: input, shape index: {}]
  %s14 = inlined_call_operand.hbm [shape: f32[4,1,8], index: 14, kind: output, shape index: {0}]
  %s15 = inlined_call_operand.hbm [shape: f32[4,1,8], index: 15, kind: output, shape index: {1}]
  %16 = xla_tuple %s14, %s15
  %s17 = sld [smem:[#allocation0]]
  $region101: #{tpu_custom_call.1} parent=0
    _
  %s19 = ssub.s32 1, %s17
  %s20 = scalar_select 0, %s19, %s17
  $region1: #{tpu_custom_call.1} parent=0
    #allocation3 [shape = 'u8[65536]{0}', space=vmem, size = 0x10000, scoped, tag = 'input window, operand 8, single buffered']
    #allocation4 [shape = 's32[2]{0}', space=sflag, size = 0x8, scoped, tag = 'scoped memory for tpu_custom_call.1']
    #allocation5 [shape = 's32[2]{0}', space=sflag, size = 0x8, scoped, tag = 'scoped memory for tpu_custom_call.1']
    #allocation6 [shape = 'u8[1024]{0}', space=vmem, size = 0x400, scoped, tag = 'output window, operand 0']
    #allocation7 [shape = 'u8[1024]{0}', space=vmem, size = 0x400, scoped, tag = 'output window, operand 1']
    #allocation8 [shape = 's32[2]{0}', space=sflag, size = 0x8, scoped, tag = 'scoped memory for tpu_custom_call.1']
    %21 = vsyncpa [#allocation4], 0
    %22 = vsyncpa [#allocation5], 0
    %s23 = scalar_lea.sflag [#allocation5], 1
    %24 = vsyncpa %s23, 0
    %25 = vsyncpa [#allocation8], 0
    %s26 = scalar_lea.sflag [#allocation8], 1
    %27 = vsyncpa %s26, 0
    loop: start=0, step=1, limit=6
    $region2: #{tpu_custom_call.1} parent=1 // loop_pre_header
      _
    $region3: #{tpu_custom_call.1} parent=1 // loop_header
      %s29 = sphi 0, %s33
      %p30 = scmp.ge.s32.totalorder %s29, 6
      %s39 = sphi 0, %s41
      %s42 = sphi 0, %s39
      %s43 = sphi 0, %s42
      %s59 = sphi 0, %s43
      %s65 = sphi 0, %s67
      %s68 = sphi 0, %s65
      %s69 = sphi 0, %s68
      %s85 = sphi 0, %s69
      %s91 = sphi 0, %s93
      %s94 = sphi 0, %s91
      %s95 = sphi 0, %s94
      %s111 = sphi 0, %s95
      %s117 = sphi 0, %s119
      %s120 = sphi 0, %s117
      %s121 = sphi 0, %s120
      %s137 = sphi 0, %s121
      %s141 = sphi 0, %s141
      %s143 = sphi 0, %s141
      %s144 = sphi 0, %s143
      %s158 = sphi 0, %s144
      %s162 = sphi 0, %s162
      %s164 = sphi 0, %s162
      %s165 = sphi 0, %s164
      %s179 = sphi 0, %s165
      %s183 = sphi 0, %s183
      %s185 = sphi 0, %s183
      %s186 = sphi 0, %s185
      %s200 = sphi 0, %s186
      %s204 = sphi 0, %s204
      %s206 = sphi 0, %s204
      %s207 = sphi 0, %s206
      %s221 = sphi 0, %s207
      %s225 = sphi 0, %s225
      %s227 = sphi 0, %s225
      %s228 = sphi 0, %s227
      %s242 = sphi 0, %s228
      %s246 = sphi 0, %s246
      %s248 = sphi 0, %s246
      %s249 = sphi 0, %s248
      %s263 = sphi 0, %s249
      %s267 = sphi 0, %s267
      %s269 = sphi 0, %s267
      %s270 = sphi 0, %s269
      %s284 = sphi 0, %s270
      %s288 = sphi 0, %s288
      %s290 = sphi 0, %s288
      %s291 = sphi 0, %s290
      %s305 = sphi 0, %s291
      %s309 = sphi 0, %s309
      %s311 = sphi 0, %s309
      %s312 = sphi 0, %s311
      %s326 = sphi 0, %s312
      %s330 = sphi 0, %s330
      %s332 = sphi 0, %s330
      %s333 = sphi 0, %s332
      %s347 = sphi 0, %s333
      %s353 = sphi 0, %s355
      %s356 = sphi 0, %s353
      %s357 = sphi 0, %s356
      %s373 = sphi 0, %s357
      %s379 = sphi 0, %s381
      %s382 = sphi 0, %s379
      %s383 = sphi 0, %s382
      %s399 = sphi 0, %s383
    $region4: #{tpu_custom_call.1} parent=1 // loop_header_branch
      %32 = sbr.rel (%p30) target = $region8
    $region5: #{tpu_custom_call.1} parent=1 // loop_body
      %s34 = ssub.s32 %s29, 1
      %s35 = ssub.s32 %s29, 2
      %s36 = sadd.s32 %s29, 1
      %s37 = ssub.s32 %s29, %s36
      %p38 = scmp.eq.s32.totalorder %s37, 0
      %s40 = sadd.s32 %s39, 1
      %s41 = scalar_select %p38, %s39, %s40
      %p44 = pneg %p38
      %p45 = scmp.eq.s32.totalorder %s29, 3
      %p46 = por %p44, %p45
      %p47 = scmp.ne.s32.totalorder %s39, %s42
      %p48 = scmp.eq.s32.totalorder %s29, 0
      %p49 = por %p47, %p48
      %p50 = scmp.ne.s32.totalorder %s39, %s42
      %p51 = scmp.eq.s32.totalorder %s34, 3
      %p52 = por %p50, %p51
      %p53 = scmp.ne.s32.totalorder %s42, %s43
      %p54 = scmp.eq.s32.totalorder %s34, 0
      %p55 = por %p53, %p54
      %p56 = scmp.ne.s32.totalorder %s42, %s43
      %p57 = scmp.eq.s32.totalorder %s35, 3
      %p58 = por %p56, %p57
      %p60 = scmp.ne.s32.totalorder %s43, %s59
      %p61 = scmp.eq.s32.totalorder %s35, 0
      %p62 = por %p60, %p61
      %s63 = ssub.s32 %s29, %s36
      %p64 = scmp.eq.s32.totalorder %s63, 0
      %s66 = sadd.s32 %s65, 1
      %s67 = scalar_select %p64, %s65, %s66
      %p70 = pneg %p64
      %p71 = scmp.eq.s32.totalorder %s29, 3
      %p72 = por %p70, %p71
      %p73 = scmp.ne.s32.totalorder %s65, %s68
      %p74 = scmp.eq.s32.totalorder %s29, 0
      %p75 = por %p73, %p74
      %p76 = scmp.ne.s32.totalorder %s65, %s68
      %p77 = scmp.eq.s32.totalorder %s34, 3
      %p78 = por %p76, %p77
      %p79 = scmp.ne.s32.totalorder %s68, %s69
      %p80 = scmp.eq.s32.totalorder %s34, 0
      %p81 = por %p79, %p80
      %p82 = scmp.ne.s32.totalorder %s68, %s69
      %p83 = scmp.eq.s32.totalorder %s35, 3
      %p84 = por %p82, %p83
      %p86 = scmp.ne.s32.totalorder %s69, %s85
      %p87 = scmp.eq.s32.totalorder %s35, 0
      %p88 = por %p86, %p87
      %s89 = ssub.s32 %s29, %s36
      %p90 = scmp.eq.s32.totalorder %s89, 0
      %s92 = sadd.s32 %s91, 1
      %s93 = scalar_select %p90, %s91, %s92
      %p96 = pneg %p90
      %p97 = scmp.eq.s32.totalorder %s29, 3
      %p98 = por %p96, %p97
      %p99 = scmp.ne.s32.totalorder %s91, %s94
      %p100 = scmp.eq.s32.totalorder %s29, 0
      %p101 = por %p99, %p100
      %p102 = scmp.ne.s32.totalorder %s91, %s94
      %p103 = scmp.eq.s32.totalorder %s34, 3
      %p104 = por %p102, %p103
      %p105 = scmp.ne.s32.totalorder %s94, %s95
      %p106 = scmp.eq.s32.totalorder %s34, 0
      %p107 = por %p105, %p106
      %p108 = scmp.ne.s32.totalorder %s94, %s95
      %p109 = scmp.eq.s32.totalorder %s35, 3
      %p110 = por %p108, %p109
      %p112 = scmp.ne.s32.totalorder %s95, %s111
      %p113 = scmp.eq.s32.totalorder %s35, 0
      %p114 = por %p112, %p113
      %s115 = ssub.s32 %s29, %s36
      %p116 = scmp.eq.s32.totalorder %s115, 0
      %s118 = sadd.s32 %s117, 1
      %s119 = scalar_select %p116, %s117, %s118
      %p122 = pneg %p116
      %p123 = scmp.eq.s32.totalorder %s29, 3
      %p124 = por %p122, %p123
      %p125 = scmp.ne.s32.totalorder %s117, %s120
      %p126 = scmp.eq.s32.totalorder %s29, 0
      %p127 = por %p125, %p126
      %p128 = scmp.ne.s32.totalorder %s117, %s120
      %p129 = scmp.eq.s32.totalorder %s34, 3
      %p130 = por %p128, %p129
      %p131 = scmp.ne.s32.totalorder %s120, %s121
      %p132 = scmp.eq.s32.totalorder %s34, 0
      %p133 = por %p131, %p132
      %p134 = scmp.ne.s32.totalorder %s120, %s121
      %p135 = scmp.eq.s32.totalorder %s35, 3
      %p136 = por %p134, %p135
      %p138 = scmp.ne.s32.totalorder %s121, %s137
      %p139 = scmp.eq.s32.totalorder %s35, 0
      %p140 = por %p138, %p139
      %s142 = sadd.s32 %s141, 1
      %p145 = scmp.eq.s32.totalorder %s29, 3
      %p146 = scmp.ne.s32.totalorder %s141, %s143
      %p147 = scmp.eq.s32.totalorder %s29, 0
      %p148 = por %p146, %p147
      %p149 = scmp.ne.s32.totalorder %s141, %s143
      %p150 = scmp.eq.s32.totalorder %s34, 3
      %p151 = por %p149, %p150
      %p152 = scmp.ne.s32.totalorder %s143, %s144
      %p153 = scmp.eq.s32.totalorder %s34, 0
      %p154 = por %p152, %p153
      %p155 = scmp.ne.s32.totalorder %s143, %s144
      %p156 = scmp.eq.s32.totalorder %s35, 3
      %p157 = por %p155, %p156
      %p159 = scmp.ne.s32.totalorder %s144, %s158
      %p160 = scmp.eq.s32.totalorder %s35, 0
      %p161 = por %p159, %p160
      %s163 = sadd.s32 %s162, 1
      %p166 = scmp.eq.s32.totalorder %s29, 3
      %p167 = scmp.ne.s32.totalorder %s162, %s164
      %p168 = scmp.eq.s32.totalorder %s29, 0
      %p169 = por %p167, %p168
      %p170 = scmp.ne.s32.totalorder %s162, %s164
      %p171 = scmp.eq.s32.totalorder %s34, 3
      %p172 = por %p170, %p171
      %p173 = scmp.ne.s32.totalorder %s164, %s165
      %p174 = scmp.eq.s32.totalorder %s34, 0
      %p175 = por %p173, %p174
      %p176 = scmp.ne.s32.totalorder %s164, %s165
      %p177 = scmp.eq.s32.totalorder %s35, 3
      %p178 = por %p176, %p177
      %p180 = scmp.ne.s32.totalorder %s165, %s179
      %p181 = scmp.eq.s32.totalorder %s35, 0
      %p182 = por %p180, %p181
      %s184 = sadd.s32 %s183, 1
      %p187 = scmp.eq.s32.totalorder %s29, 3
      %p188 = scmp.ne.s32.totalorder %s183, %s185
      %p189 = scmp.eq.s32.totalorder %s29, 0
      %p190 = por %p188, %p189
      %p191 = scmp.ne.s32.totalorder %s183, %s185
      %p192 = scmp.eq.s32.totalorder %s34, 3
      %p193 = por %p191, %p192
      %p194 = scmp.ne.s32.totalorder %s185, %s186
      %p195 = scmp.eq.s32.totalorder %s34, 0
      %p196 = por %p194, %p195
      %p197 = scmp.ne.s32.totalorder %s185, %s186
      %p198 = scmp.eq.s32.totalorder %s35, 3
      %p199 = por %p197, %p198
      %p201 = scmp.ne.s32.totalorder %s186, %s200
      %p202 = scmp.eq.s32.totalorder %s35, 0
      %p203 = por %p201, %p202
      %s205 = sadd.s32 %s204, 1
      %p208 = scmp.eq.s32.totalorder %s29, 3
      %p209 = scmp.ne.s32.totalorder %s204, %s206
      %p210 = scmp.eq.s32.totalorder %s29, 0
      %p211 = por %p209, %p210
      %p212 = scmp.ne.s32.totalorder %s204, %s206
      %p213 = scmp.eq.s32.totalorder %s34, 3
      %p214 = por %p212, %p213
      %p215 = scmp.ne.s32.totalorder %s206, %s207
      %p216 = scmp.eq.s32.totalorder %s34, 0
      %p217 = por %p215, %p216
      %p218 = scmp.ne.s32.totalorder %s206, %s207
      %p219 = scmp.eq.s32.totalorder %s35, 3
      %p220 = por %p218, %p219
      %p222 = scmp.ne.s32.totalorder %s207, %s221
      %p223 = scmp.eq.s32.totalorder %s35, 0
      %p224 = por %p222, %p223
      %s226 = sadd.s32 %s225, 1
      %p229 = scmp.eq.s32.totalorder %s29, 3
      %p230 = scmp.ne.s32.totalorder %s225, %s227
      %p231 = scmp.eq.s32.totalorder %s29, 0
      %p232 = por %p230, %p231
      %p233 = scmp.ne.s32.totalorder %s225, %s227
      %p234 = scmp.eq.s32.totalorder %s34, 3
      %p235 = por %p233, %p234
      %p236 = scmp.ne.s32.totalorder %s227, %s228
      %p237 = scmp.eq.s32.totalorder %s34, 0
      %p238 = por %p236, %p237
      %p239 = scmp.ne.s32.totalorder %s227, %s228
      %p240 = scmp.eq.s32.totalorder %s35, 3
      %p241 = por %p239, %p240
      %p243 = scmp.ne.s32.totalorder %s228, %s242
      %p244 = scmp.eq.s32.totalorder %s35, 0
      %p245 = por %p243, %p244
      %s247 = sadd.s32 %s246, 1
      %p250 = scmp.eq.s32.totalorder %s29, 3
      %p251 = scmp.ne.s32.totalorder %s246, %s248
      %p252 = scmp.eq.s32.totalorder %s29, 0
      %p253 = por %p251, %p252
      %p254 = scmp.ne.s32.totalorder %s246, %s248
      %p255 = scmp.eq.s32.totalorder %s34, 3
      %p256 = por %p254, %p255
      %p257 = scmp.ne.s32.totalorder %s248, %s249
      %p258 = scmp.eq.s32.totalorder %s34, 0
      %p259 = por %p257, %p258
      %p260 = scmp.ne.s32.totalorder %s248, %s249
      %p261 = scmp.eq.s32.totalorder %s35, 3
      %p262 = por %p260, %p261
      %p264 = scmp.ne.s32.totalorder %s249, %s263
      %p265 = scmp.eq.s32.totalorder %s35, 0
      %p266 = por %p264, %p265
      %s268 = sadd.s32 %s267, 1
      %p271 = scmp.eq.s32.totalorder %s29, 3
      %p272 = scmp.ne.s32.totalorder %s267, %s269
      %p273 = scmp.eq.s32.totalorder %s29, 0
      %p274 = por %p272, %p273
      %p275 = scmp.ne.s32.totalorder %s267, %s269
      %p276 = scmp.eq.s32.totalorder %s34, 3
      %p277 = por %p275, %p276
      %p278 = scmp.ne.s32.totalorder %s269, %s270
      %p279 = scmp.eq.s32.totalorder %s34, 0
      %p280 = por %p278, %p279
      %p281 = scmp.ne.s32.totalorder %s269, %s270
      %p282 = scmp.eq.s32.totalorder %s35, 3
      %p283 = por %p281, %p282
      %p285 = scmp.ne.s32.totalorder %s270, %s284
      %p286 = scmp.eq.s32.totalorder %s35, 0
      %p287 = por %p285, %p286
      %s289 = sadd.s32 %s288, 1
      %p292 = scmp.eq.s32.totalorder %s29, 3
      %p293 = scmp.ne.s32.totalorder %s288, %s290
      %p294 = scmp.eq.s32.totalorder %s29, 0
      %p295 = por %p293, %p294
      %p296 = scmp.ne.s32.totalorder %s288, %s290
      %p297 = scmp.eq.s32.totalorder %s34, 3
      %p298 = por %p296, %p297
      %p299 = scmp.ne.s32.totalorder %s290, %s291
      %p300 = scmp.eq.s32.totalorder %s34, 0
      %p301 = por %p299, %p300
      %p302 = scmp.ne.s32.totalorder %s290, %s291
      %p303 = scmp.eq.s32.totalorder %s35, 3
      %p304 = por %p302, %p303
      %p306 = scmp.ne.s32.totalorder %s291, %s305
      %p307 = scmp.eq.s32.totalorder %s35, 0
      %p308 = por %p306, %p307
      %s310 = sadd.s32 %s309, 1
      %p313 = scmp.eq.s32.totalorder %s29, 3
      %p314 = scmp.ne.s32.totalorder %s309, %s311
      %p315 = scmp.eq.s32.totalorder %s29, 0
      %p316 = por %p314, %p315
      %p317 = scmp.ne.s32.totalorder %s309, %s311
      %p318 = scmp.eq.s32.totalorder %s34, 3
      %p319 = por %p317, %p318
      %p320 = scmp.ne.s32.totalorder %s311, %s312
      %p321 = scmp.eq.s32.totalorder %s34, 0
      %p322 = por %p320, %p321
      %p323 = scmp.ne.s32.totalorder %s311, %s312
      %p324 = scmp.eq.s32.totalorder %s35, 3
      %p325 = por %p323, %p324
      %p327 = scmp.ne.s32.totalorder %s312, %s326
      %p328 = scmp.eq.s32.totalorder %s35, 0
      %p329 = por %p327, %p328
      %s331 = sadd.s32 %s330, 1
      %p334 = scmp.eq.s32.totalorder %s29, 3
      %p335 = scmp.ne.s32.totalorder %s330, %s332
      %p336 = scmp.eq.s32.totalorder %s29, 0
      %p337 = por %p335, %p336
      %p338 = scmp.ne.s32.totalorder %s330, %s332
      %p339 = scmp.eq.s32.totalorder %s34, 3
      %p340 = por %p338, %p339
      %p341 = scmp.ne.s32.totalorder %s332, %s333
      %p342 = scmp.eq.s32.totalorder %s34, 0
      %p343 = por %p341, %p342
      %p344 = scmp.ne.s32.totalorder %s332, %s333
      %p345 = scmp.eq.s32.totalorder %s35, 3
      %p346 = por %p344, %p345
      %p348 = scmp.ne.s32.totalorder %s333, %s347
      %p349 = scmp.eq.s32.totalorder %s35, 0
      %p350 = por %p348, %p349
      %s351 = ssub.s32 %s29, %s36
      %p352 = scmp.eq.s32.totalorder %s351, 0
      %s354 = sadd.s32 %s353, 1
      %s355 = scalar_select %p352, %s353, %s354
      %p358 = pneg %p352
      %p359 = scmp.eq.s32.totalorder %s29, 3
      %p360 = por %p358, %p359
      %p361 = scmp.ne.s32.totalorder %s353, %s356
      %p362 = scmp.eq.s32.totalorder %s29, 0
      %p363 = por %p361, %p362
      %p364 = scmp.ne.s32.totalorder %s353, %s356
      %p365 = scmp.eq.s32.totalorder %s34, 3
      %p366 = por %p364, %p365
      %p367 = scmp.ne.s32.totalorder %s356, %s357
      %p368 = scmp.eq.s32.totalorder %s34, 0
      %p369 = por %p367, %p368
      %p370 = scmp.ne.s32.totalorder %s356, %s357
      %p371 = scmp.eq.s32.totalorder %s35, 3
      %p372 = por %p370, %p371
      %p374 = scmp.ne.s32.totalorder %s357, %s373
      %p375 = scmp.eq.s32.totalorder %s35, 0
      %p376 = por %p374, %p375
      %s377 = ssub.s32 %s29, %s36
      %p378 = scmp.eq.s32.totalorder %s377, 0
      %s380 = sadd.s32 %s379, 1
      %s381 = scalar_select %p378, %s379, %s380
      %p384 = pneg %p378
      %p385 = scmp.eq.s32.totalorder %s29, 3
      %p386 = por %p384, %p385
      %p387 = scmp.ne.s32.totalorder %s379, %s382
      %p388 = scmp.eq.s32.totalorder %s29, 0
      %p389 = por %p387, %p388
      %p390 = scmp.ne.s32.totalorder %s379, %s382
      %p391 = scmp.eq.s32.totalorder %s34, 3
      %p392 = por %p390, %p391
      %p393 = scmp.ne.s32.totalorder %s382, %s383
      %p394 = scmp.eq.s32.totalorder %s34, 0
      %p395 = por %p393, %p394
      %p396 = scmp.ne.s32.totalorder %s382, %s383
      %p397 = scmp.eq.s32.totalorder %s35, 3
      %p398 = por %p396, %p397
      %p400 = scmp.ne.s32.totalorder %s383, %s399
      %p401 = scmp.eq.s32.totalorder %s35, 0
      %p402 = por %p400, %p401
      %p403 = scmp.le.s32.totalorder 1, %s29
      %p404 = scmp.lt.s32.totalorder %s29, 5
      %p405 = pnand %p403, %p404
      %p406 = pneg %p405
      // Predicated region
      $region9: #{tpu_custom_call.1} parent=5 // pred_check
        _
      $region10: #{tpu_custom_call.1} parent=5 // pred_check_branch
        %408 = sbr.rel (%p405) target = $region12
      $region11: #{tpu_custom_call.1} parent=5 // pred_region
        %s409 = ssub.s32 %s29, 1
        // Predicated region
        $region13: #{tpu_custom_call.1} parent=11 // pred_check
          %p410 = pneg %p154
        $region14: #{tpu_custom_call.1} parent=11 // pred_check_branch
          %412 = sbr.rel (%p410) target = $region16
        $region15: #{tpu_custom_call.1} parent=11 // pred_region
          _
        $region16: #{tpu_custom_call.1} parent=11 // pred_fallthru
          _
        // Predicated region
        $region17: #{tpu_custom_call.1} parent=11 // pred_check
          %p413 = pneg %p175
        $region18: #{tpu_custom_call.1} parent=11 // pred_check_branch
          %415 = sbr.rel (%p413) target = $region20
        $region19: #{tpu_custom_call.1} parent=11 // pred_region
          _
        $region20: #{tpu_custom_call.1} parent=11 // pred_fallthru
          _
        // Predicated region
        $region21: #{tpu_custom_call.1} parent=11 // pred_check
          %p416 = pneg %p196
        $region22: #{tpu_custom_call.1} parent=11 // pred_check_branch
          %418 = sbr.rel (%p416) target = $region24
        $region23: #{tpu_custom_call.1} parent=11 // pred_region
          _
        $region24: #{tpu_custom_call.1} parent=11 // pred_fallthru
          _
        // Predicated region
        $region25: #{tpu_custom_call.1} parent=11 // pred_check
          %p419 = pneg %p217
        $region26: #{tpu_custom_call.1} parent=11 // pred_check_branch
          %421 = sbr.rel (%p419) target = $region28
        $region27: #{tpu_custom_call.1} parent=11 // pred_region
          _
        $region28: #{tpu_custom_call.1} parent=11 // pred_fallthru
          _
        // Predicated region
        $region29: #{tpu_custom_call.1} parent=11 // pred_check
          %p422 = pneg %p238
        $region30: #{tpu_custom_call.1} parent=11 // pred_check_branch
          %424 = sbr.rel (%p422) target = $region32
        $region31: #{tpu_custom_call.1} parent=11 // pred_region
          %s426 = ssub.s32 2048, 2048
          %427 = vsyncadd [#allocation4], %s426
          %s428 = sshll.u32 [#allocation3], 4
          %s429 = int_to_ptr.vmem [resolvable:$true] %s428
          %434 = dma.hbm_to_vmem [thread:$0]  %s8, 2048, %s429, [#allocation4], 64, 64, 4
        $region32: #{tpu_custom_call.1} parent=11 // pred_fallthru
          _
        // Predicated region
        $region33: #{tpu_custom_call.1} parent=11 // pred_check
          %p435 = pneg %p259
        $region34: #{tpu_custom_call.1} parent=11 // pred_check_branch
          %437 = sbr.rel (%p435) target = $region36
        $region35: #{tpu_custom_call.1} parent=11 // pred_region
          _
        $region36: #{tpu_custom_call.1} parent=11 // pred_fallthru
          _
        // Predicated region
        $region37: #{tpu_custom_call.1} parent=11 // pred_check
          %p438 = pneg %p280
        $region38: #{tpu_custom_call.1} parent=11 // pred_check_branch
          %440 = sbr.rel (%p438) target = $region40
        $region39: #{tpu_custom_call.1} parent=11 // pred_region
          _
        $region40: #{tpu_custom_call.1} parent=11 // pred_fallthru
          _
        // Predicated region
        $region41: #{tpu_custom_call.1} parent=11 // pred_check
          %p441 = pneg %p301
        $region42: #{tpu_custom_call.1} parent=11 // pred_check_branch
          %443 = sbr.rel (%p441) target = $region44
        $region43: #{tpu_custom_call.1} parent=11 // pred_region
          _
        $region44: #{tpu_custom_call.1} parent=11 // pred_fallthru
          _
        // Predicated region
        $region45: #{tpu_custom_call.1} parent=11 // pred_check
          %p444 = pneg %p322
        $region46: #{tpu_custom_call.1} parent=11 // pred_check_branch
          %446 = sbr.rel (%p444) target = $region48
        $region47: #{tpu_custom_call.1} parent=11 // pred_region
          _
        $region48: #{tpu_custom_call.1} parent=11 // pred_fallthru
          _
        // Predicated region
        $region49: #{tpu_custom_call.1} parent=11 // pred_check
          %p447 = pneg %p343
        $region50: #{tpu_custom_call.1} parent=11 // pred_check_branch
          %449 = sbr.rel (%p447) target = $region52
        $region51: #{tpu_custom_call.1} parent=11 // pred_region
          _
        $region52: #{tpu_custom_call.1} parent=11 // pred_fallthru
          _
      $region12: #{tpu_custom_call.1} parent=5 // pred_fallthru
        _
      %p450 = scmp.lt.s32.totalorder %s29, 4
      // Predicated region
      $region53: #{tpu_custom_call.1} parent=5 // pred_check
        %p451 = pneg %p450
      $region54: #{tpu_custom_call.1} parent=5 // pred_check_branch
        %453 = sbr.rel (%p451) target = $region56
      $region55: #{tpu_custom_call.1} parent=5 // pred_region
        // Predicated region
        $region57: #{tpu_custom_call.1} parent=55 // pred_check
          %p454 = pneg %p49
        $region58: #{tpu_custom_call.1} parent=55 // pred_check_branch
          %456 = sbr.rel (%p454) target = $region60
        $region59: #{tpu_custom_call.1} parent=55 // pred_region
          %p457 = scmp.lt.s32.totalorder %s29, 3
          %s458 = scalar_select %p457, %s29, 3
          %s459 = smul.addr %s458, 16
          %s460 = smul.addr %s459, 4
          %s461 = scalar_lea.vmem %s0, %s460
        $region60: #{tpu_custom_call.1} parent=55 // pred_fallthru
          _
        // Predicated region
        $region61: #{tpu_custom_call.1} parent=55 // pred_check
          %p462 = pneg %p75
        $region62: #{tpu_custom_call.1} parent=55 // pred_check_branch
          %464 = sbr.rel (%p462) target = $region64
        $region63: #{tpu_custom_call.1} parent=55 // pred_region
          %p465 = scmp.lt.s32.totalorder %s29, 3
          %s466 = scalar_select %p465, %s29, 3
          %s467 = smul.addr %s466, 16
          %s468 = smul.addr %s467, 4
          %s469 = scalar_lea.vmem %s1, %s468
        $region64: #{tpu_custom_call.1} parent=55 // pred_fallthru
          _
        // Predicated region
        $region65: #{tpu_custom_call.1} parent=55 // pred_check
          %p470 = pneg %p101
        $region66: #{tpu_custom_call.1} parent=55 // pred_check_branch
          %472 = sbr.rel (%p470) target = $region68
        $region67: #{tpu_custom_call.1} parent=55 // pred_region
          %p473 = scmp.lt.s32.totalorder %s29, 3
          %s474 = scalar_select %p473, %s29, 3
          %s475 = smul.addr %s474, 2
          %s476 = smul.addr %s475, 4
          %s477 = scalar_lea.vmem %s2, %s476
        $region68: #{tpu_custom_call.1} parent=55 // pred_fallthru
          _
        // Predicated region
        $region69: #{tpu_custom_call.1} parent=55 // pred_check
          %p478 = pneg %p127
        $region70: #{tpu_custom_call.1} parent=55 // pred_check_branch
          %480 = sbr.rel (%p478) target = $region72
        $region71: #{tpu_custom_call.1} parent=55 // pred_region
          %p481 = scmp.lt.s32.totalorder %s29, 3
          %s482 = scalar_select %p481, %s29, 3
          %s483 = scalar_lea.vmem %s3, %s482
        $region72: #{tpu_custom_call.1} parent=55 // pred_fallthru
          _
      $region56: #{tpu_custom_call.1} parent=5 // pred_fallthru
        _
      %p484 = scmp.le.s32.totalorder 1, %s29
      %p485 = scmp.lt.s32.totalorder %s29, 5
      %p486 = pnand %p484, %p485
      %p487 = pneg %p486
      // Predicated region
      $region73: #{tpu_custom_call.1} parent=5 // pred_check
        _
      $region74: #{tpu_custom_call.1} parent=5 // pred_check_branch
        %489 = sbr.rel (%p486) target = $region76
      $region75: #{tpu_custom_call.1} parent=5 // pred_region
        %s490 = ssub.s32 %s29, 1
        // Predicated region
        $region77: #{tpu_custom_call.1} parent=75 // pred_check
          %p491 = pneg %p238
        $region78: #{tpu_custom_call.1} parent=75 // pred_check_branch
          %493 = sbr.rel (%p491) target = $region80
        $region79: #{tpu_custom_call.1} parent=75 // pred_region
          %494 = dma.done [#allocation4], 2048
        $region80: #{tpu_custom_call.1} parent=75 // pred_fallthru
          _
        %p495 = scmp.lt.s32.totalorder %s34, 3
        %s496 = scalar_select %p495, %s34, 3
        %s497 = smul.addr %s496, 16
        %s498 = smul.addr %s497, 4
        %s499 = scalar_lea.vmem %s0, %s498
        %p500 = pneg %p55
        %p501 = pneg %p52
        %p502 = scmp.lt.s32.totalorder %s34, 3
        %s503 = scalar_select %p502, %s34, 3
        %s504 = smul.addr %s503, 16
        %s505 = smul.addr %s504, 4
        %s506 = scalar_lea.vmem %s1, %s505
        %p507 = pneg %p81
        %p508 = pneg %p78
        %p509 = scmp.lt.s32.totalorder %s34, 3
        %s510 = scalar_select %p509, %s34, 3
        %s511 = smul.addr %s510, 2
        %s512 = smul.addr %s511, 4
        %s513 = scalar_lea.vmem %s2, %s512
        %p514 = pneg %p107
        %p515 = pneg %p104
        %p516 = scmp.lt.s32.totalorder %s34, 3
        %s517 = scalar_select %p516, %s34, 3
        %s518 = scalar_lea.vmem %s3, %s517
        %p519 = pneg %p133
        %p520 = pneg %p130
        %p521 = pneg %p154
        %p522 = pneg %p151
        %p523 = pneg %p175
        %p524 = pneg %p172
        %p525 = pneg %p196
        %p526 = pneg %p193
        %p527 = pneg %p217
        %p528 = pneg %p214
        %p529 = pneg %p238
        %p530 = pneg %p235
        %p531 = pneg %p259
        %p532 = pneg %p256
        %p533 = pneg %p280
        %p534 = pneg %p277
        %p535 = pneg %p301
        %p536 = pneg %p298
        %p537 = pneg %p322
        %p538 = pneg %p319
        %p539 = pneg %p343
        %p540 = pneg %p340
        %p541 = pneg %p369
        %p542 = pneg %p366
        %s543 = sand.u32 %s356, 1
        %s544 = scalar_lea.sflag [#allocation5], %s543
        %s545 = sand.u32 %s356, 1
        %s546 = scalar_lea.vmem [#allocation6], %s545
        %p547 = pneg %p395
        %p548 = pneg %p392
        %s549 = sand.u32 %s382, 1
        %s550 = scalar_lea.sflag [#allocation8], %s549
        %s551 = sand.u32 %s382, 1
        %s552 = scalar_lea.vmem [#allocation7], %s551
        %p553 = scmp.lt.s32.totalorder %s34, 3
        %s554 = scalar_select %p553, %s34, 3
        %s555 = smul.addr %s554, 16
        %s556 = smul.addr %s555, 4
        %s557 = scalar_lea.vmem %s0, %s556
        %p558 = scmp.lt.s32.totalorder %s34, 3
        %s559 = scalar_select %p558, %s34, 3
        %s560 = smul.addr %s559, 16
        %s561 = smul.addr %s560, 4
        %s562 = scalar_lea.vmem %s1, %s561
        %p563 = scmp.lt.s32.totalorder %s34, 3
        %s564 = scalar_select %p563, %s34, 3
        %s565 = smul.addr %s564, 2
        %s566 = smul.addr %s565, 4
        %s567 = scalar_lea.vmem %s2, %s566
        %p568 = scmp.lt.s32.totalorder %s34, 3
        %s569 = scalar_select %p568, %s34, 3
        %s570 = scalar_lea.vmem %s3, %s569
        %v572 = vld [vmem:[%s557] sm:$0xf]
        %v573 = vld [vmem:[%s557 + $0x4] sm:$0xf]
        %v574 = vld [vmem:[%s557 + $0x8] sm:$0xf]
        %v575 = vld [vmem:[%s557 + $0xc] sm:$0xf]
        %v576 = vld [vmem:[%s557 + $0x10] sm:$0xf]
        %v577 = vld [vmem:[%s557 + $0x14] sm:$0xf]
        %v578 = vld [vmem:[%s557 + $0x18] sm:$0xf]
        %v579 = vld [vmem:[%s557 + $0x1c] sm:$0xf]
        %v580 = vld [vmem:[%s557 + $0x20] sm:$0xf]
        %v581 = vld [vmem:[%s557 + $0x24] sm:$0xf]
        %v582 = vld [vmem:[%s557 + $0x28] sm:$0xf]
        %v583 = vld [vmem:[%s557 + $0x2c] sm:$0xf]
        %v584 = vld [vmem:[%s557 + $0x30] sm:$0xf]
        %v585 = vld [vmem:[%s557 + $0x34] sm:$0xf]
        %v586 = vld [vmem:[%s557 + $0x38] sm:$0xf]
        %v587 = vld [vmem:[%s557 + $0x3c] sm:$0xf]
        %v588 = vld [vmem:[%s562] sm:$0xf]
        %v589 = vld [vmem:[%s562 + $0x4] sm:$0xf]
        %v590 = vld [vmem:[%s562 + $0x8] sm:$0xf]
        %v591 = vld [vmem:[%s562 + $0xc] sm:$0xf]
        %v592 = vld [vmem:[%s562 + $0x10] sm:$0xf]
        %v593 = vld [vmem:[%s562 + $0x14] sm:$0xf]
        %v594 = vld [vmem:[%s562 + $0x18] sm:$0xf]
        %v595 = vld [vmem:[%s562 + $0x1c] sm:$0xf]
        %v596 = vld [vmem:[%s562 + $0x20] sm:$0xf]
        %v597 = vld [vmem:[%s562 + $0x24] sm:$0xf]
        %v598 = vld [vmem:[%s562 + $0x28] sm:$0xf]
        %v599 = vld [vmem:[%s562 + $0x2c] sm:$0xf]
        %v600 = vld [vmem:[%s562 + $0x30] sm:$0xf]
        %v601 = vld [vmem:[%s562 + $0x34] sm:$0xf]
        %v602 = vld [vmem:[%s562 + $0x38] sm:$0xf]
        %v603 = vld [vmem:[%s562 + $0x3c] sm:$0xf]
        %v604 = vld [vmem:[%s567] sm:$0xf]
        %v605 = vld [vmem:[%s567 + $0x4] sm:$0xf]
        %v606 = vld [vmem:[%s4] sm:$0xf]
        %v607 = vld [vmem:[%s4 + $0x4] sm:$0xf]
        %v608 = vld [vmem:[%s5] sm:$0x1]
        %v610 = vlaneseq
        %v611 = vshrl.u32 %v610, 7
        %v612 = vsub.s32 0, %v611
        %v613 = vrot.slane %v608, %v612
        %v631 = vunpack.c.l.b16 %v572
        %v632 = vunpack.c.l.b16 %v573
        %v633 = vunpack.c.l.b16 %v574
        %v634 = vunpack.c.l.b16 %v575
        %v635 = vunpack.c.l.b16 %v576
        %v636 = vunpack.c.l.b16 %v577
        %v637 = vunpack.c.l.b16 %v578
        %v638 = vunpack.c.l.b16 %v579
        %v639 = vunpack.c.l.b16 %v580
        %v640 = vunpack.c.l.b16 %v581
        %v641 = vunpack.c.l.b16 %v582
        %v642 = vunpack.c.l.b16 %v583
        %v643 = vunpack.c.l.b16 %v584
        %v644 = vunpack.c.l.b16 %v585
        %v645 = vunpack.c.l.b16 %v586
        %v646 = vunpack.c.l.b16 %v587
        %v647 = vpack.c.b16 %v632, %v631
        %v648 = vpack.c.b16 %v634, %v633
        %v649 = vpack.c.b16 %v636, %v635
        %v650 = vpack.c.b16 %v638, %v637
        %v651 = vpack.c.b16 %v640, %v639
        %v652 = vpack.c.b16 %v642, %v641
        %v653 = vpack.c.b16 %v644, %v643
        %v654 = vpack.c.b16 %v646, %v645
        %v657 = vunpack.c.l.b16 %v606
        %v658 = vunpack.c.l.b16 %v607
        %v659 = vpack.c.b16 %v658, %v657
        %vm661 = vcmask 130048
        %v663 = vsel %vm661, %v647, 0
        %v666 = vsel %vm661, %v648, 0
        %v669 = vsel %vm661, %v649, 0
        %v672 = vsel %vm661, %v650, 0
        %v675 = vsel %vm661, %v651, 0
        %v678 = vsel %vm661, %v652, 0
        %v681 = vsel %vm661, %v653, 0
        %v684 = vsel %vm661, %v654, 0
        %686 = vmatprep.subr.bf16.mxu0 0
        %687 = vmatpush1.bf16.msra.mxu0 %v659
        %688 = vmatprep.subr.bf16.mxu0 0
        %689 = vmatpush1.bf16.msra.mxu0 0
        %690 = vmatprep.subr.bf16.mxu0 0
        %691 = vmatpush1.bf16.msra.mxu0 0
        %692 = vmatprep.subr.bf16.mxu0 0
        %693 = vmatpush1.bf16.msra.mxu0 0
        %694 = vmatprep.subr.bf16.mxu0 0
        %695 = vmatpush1.bf16.msra.mxu0 0
        %696 = vmatprep.subr.bf16.mxu0 0
        %697 = vmatpush1.bf16.msra.mxu0 0
        %698 = vmatprep.subr.bf16.mxu0 0
        %699 = vmatpush1.bf16.msra.mxu0 0
        %700 = vmatprep.subr.bf16.mxu0 0
        %701 = vmatpush1.bf16.msra.mxu0 0
        %702 = vmatprep.subr.bf16.mxu0 0
        %703 = vmatpush1.bf16.msra.mxu0 0
        %704 = vmatprep.subr.bf16.mxu0 0
        %705 = vmatpush1.bf16.msra.mxu0 0
        %706 = vmatprep.subr.bf16.mxu0 0
        %707 = vmatpush1.bf16.msra.mxu0 0
        %708 = vmatprep.subr.bf16.mxu0 0
        %709 = vmatpush1.bf16.msra.mxu0 0
        %710 = vmatprep.subr.bf16.mxu0 0
        %711 = vmatpush1.bf16.msra.mxu0 0
        %712 = vmatprep.subr.bf16.mxu0 0
        %713 = vmatpush1.bf16.msra.mxu0 0
        %714 = vmatprep.subr.bf16.mxu0 0
        %715 = vmatpush1.bf16.msra.mxu0 0
        %716 = vmatprep.subr.bf16.mxu0 0
        %717 = vmatpush1.bf16.msra.mxu0 0
        %718 = vmatprep.mubr.bf16.mxu0 0
        %719 = vmatmul.mubr.bf16.gmra.mrb[0].mxu0 %v663
        %v720 = vpop.f32.mrb[0].mxu0
        %v721 = vadd.f32 %v613, %v720
        %v722 = vpop.f32.mrb[0].mxu0
        %v723 = vpop.f32.mrb[0].mxu0
        %v724 = vadd.f32 %v613, %v723
        %v725 = vpop.f32.mrb[0].mxu0
        %726 = vmatprep.mubr.bf16.mxu0 0
        %727 = vmatmul.mubr.bf16.gmra.mrb[0].mxu0 %v666
        %v728 = vpop.f32.mrb[0].mxu0
        %v729 = vadd.f32 %v613, %v728
        %v730 = vpop.f32.mrb[0].mxu0
        %v731 = vpop.f32.mrb[0].mxu0
        %v732 = vadd.f32 %v613, %v731
        %v733 = vpop.f32.mrb[0].mxu0
        %734 = vmatprep.mubr.bf16.mxu0 0
        %735 = vmatmul.mubr.bf16.gmra.mrb[0].mxu0 %v669
        %v736 = vpop.f32.mrb[0].mxu0
        %v737 = vadd.f32 %v613, %v736
        %v738 = vpop.f32.mrb[0].mxu0
        %v739 = vpop.f32.mrb[0].mxu0
        %v740 = vadd.f32 %v613, %v739
        %v741 = vpop.f32.mrb[0].mxu0
        %742 = vmatprep.mubr.bf16.mxu0 0
        %743 = vmatmul.mubr.bf16.gmra.mrb[0].mxu0 %v672
        %v744 = vpop.f32.mrb[0].mxu0
        %v745 = vadd.f32 %v613, %v744
        %v746 = vpop.f32.mrb[0].mxu0
        %v747 = vpop.f32.mrb[0].mxu0
        %v748 = vadd.f32 %v613, %v747
        %v749 = vpop.f32.mrb[0].mxu0
        %750 = vmatprep.mubr.bf16.mxu0 0
        %751 = vmatmul.mubr.bf16.gmra.mrb[0].mxu0 %v675
        %v752 = vpop.f32.mrb[0].mxu0
        %v753 = vadd.f32 %v613, %v752
        %v754 = vpop.f32.mrb[0].mxu0
        %v755 = vpop.f32.mrb[0].mxu0
        %v756 = vadd.f32 %v613, %v755
        %v757 = vpop.f32.mrb[0].mxu0
        %758 = vmatprep.mubr.bf16.mxu0 0
        %759 = vmatmul.mubr.bf16.gmra.mrb[0].mxu0 %v678
        %v760 = vpop.f32.mrb[0].mxu0
        %v761 = vadd.f32 %v613, %v760
        %v762 = vpop.f32.mrb[0].mxu0
        %v763 = vpop.f32.mrb[0].mxu0
        %v764 = vadd.f32 %v613, %v763
        %v765 = vpop.f32.mrb[0].mxu0
        %766 = vmatprep.mubr.bf16.mxu0 0
        %767 = vmatmul.mubr.bf16.gmra.mrb[0].mxu0 %v681
        %v768 = vpop.f32.mrb[0].mxu0
        %v769 = vadd.f32 %v613, %v768
        %v770 = vpop.f32.mrb[0].mxu0
        %v771 = vpop.f32.mrb[0].mxu0
        %v772 = vadd.f32 %v613, %v771
        %v773 = vpop.f32.mrb[0].mxu0
        %774 = vmatprep.mubr.bf16.mxu0 0
        %775 = vmatmul.mubr.bf16.gmra.mrb[0].mxu0 %v684
        %v776 = vpop.f32.mrb[0].mxu0
        %v777 = vadd.f32 %v613, %v776
        %v778 = vpop.f32.mrb[0].mxu0
        %v779 = vpop.f32.mrb[0].mxu0
        %v780 = vadd.f32 %v613, %v779
        %v781 = vpop.f32.mrb[0].mxu0
        %782 = vdwg.mxu0
        %vm783 = vcmask 261120
        %784 = vst.msk [vmem:[#allocation2] sm:$0xff] %vm783, %v721
        %785 = vst.msk [vmem:[#allocation2 + $0x18] sm:$0xff] %vm783, %v724
        %786 = vst.msk [vmem:[#allocation2 + $0x30] sm:$0xff] %vm783, %v729
        %787 = vst.msk [vmem:[#allocation2 + $0x48] sm:$0xff] %vm783, %v732
        %788 = vst.msk [vmem:[#allocation2 + $0x60] sm:$0xff] %vm783, %v737
        %789 = vst.msk [vmem:[#allocation2 + $0x78] sm:$0xff] %vm783, %v740
        %790 = vst.msk [vmem:[#allocation2 + $0x90] sm:$0xff] %vm783, %v745
        %791 = vst.msk [vmem:[#allocation2 + $0xa8] sm:$0xff] %vm783, %v748
        %792 = vst.msk [vmem:[#allocation2 + $0xc0] sm:$0xff] %vm783, %v753
        %793 = vst.msk [vmem:[#allocation2 + $0xd8] sm:$0xff] %vm783, %v756
        %794 = vst.msk [vmem:[#allocation2 + $0xf0] sm:$0xff] %vm783, %v761
        %795 = vst.msk [vmem:[#allocation2 + $0x108] sm:$0xff] %vm783, %v764
        %796 = vst.msk [vmem:[#allocation2 + $0x120] sm:$0xff] %vm783, %v769
        %797 = vst.msk [vmem:[#allocation2 + $0x138] sm:$0xff] %vm783, %v772
        %798 = vst.msk [vmem:[#allocation2 + $0x150] sm:$0xff] %vm783, %v777
        %799 = vst.msk [vmem:[#allocation2 + $0x168] sm:$0xff] %vm783, %v780
        %v800 = vpack.c.bf16 %v724, %v721
        %v801 = vpack.c.bf16 %v732, %v729
        %v802 = vpack.c.bf16 %v740, %v737
        %v803 = vpack.c.bf16 %v748, %v745
        %v804 = vpack.c.bf16 %v756, %v753
        %v805 = vpack.c.bf16 %v764, %v761
        %v806 = vpack.c.bf16 %v772, %v769
        %v807 = vpack.c.bf16 %v780, %v777
        %v824 = vunpack.c.l.b16 %v588
        %v825 = vunpack.c.l.b16 %v589
        %v826 = vunpack.c.l.b16 %v590
        %v827 = vunpack.c.l.b16 %v591
        %v828 = vunpack.c.l.b16 %v592
        %v829 = vunpack.c.l.b16 %v593
        %v830 = vunpack.c.l.b16 %v594
        %v831 = vunpack.c.l.b16 %v595
        %v832 = vunpack.c.l.b16 %v596
        %v833 = vunpack.c.l.b16 %v597
        %v834 = vunpack.c.l.b16 %v598
        %v835 = vunpack.c.l.b16 %v599
        %v836 = vunpack.c.l.b16 %v600
        %v837 = vunpack.c.l.b16 %v601
        %v838 = vunpack.c.l.b16 %v602
        %v839 = vunpack.c.l.b16 %v603
        %v840 = vpack.c.b16 %v825, %v824
        %v841 = vpack.c.b16 %v827, %v826
        %v842 = vpack.c.b16 %v829, %v828
        %v843 = vpack.c.b16 %v831, %v830
        %v844 = vpack.c.b16 %v833, %v832
        %v845 = vpack.c.b16 %v835, %v834
        %v846 = vpack.c.b16 %v837, %v836
        %v847 = vpack.c.b16 %v839, %v838
        %856 = vmatprep.subr.bf16.mxu0 0
        %857 = vmatpush1.bf16.msra.mxu0 %v800
        %858 = vmatprep.subr.bf16.mxu0 0
        %859 = vmatpush1.bf16.msra.mxu0 %v801
        %860 = vmatprep.subr.bf16.mxu0 0
        %861 = vmatpush1.bf16.msra.mxu0 %v802
        %862 = vmatprep.subr.bf16.mxu0 0
        %863 = vmatpush1.bf16.msra.mxu0 %v803
        %864 = vmatprep.subr.bf16.mxu0 0
        %865 = vmatpush1.bf16.msra.mxu0 %v804
        %866 = vmatprep.subr.bf16.mxu0 0
        %867 = vmatpush1.bf16.msra.mxu0 %v805
        %868 = vmatprep.subr.bf16.mxu0 0
        %869 = vmatpush1.bf16.msra.mxu0 %v806
        %870 = vmatprep.subr.bf16.mxu0 0
        %871 = vmatpush1.bf16.msra.mxu0 %v807
        %872 = vmatprep.subr.bf16.mxu0 0
        %873 = vmatpush1.bf16.msra.mxu0 0
        %874 = vmatprep.subr.bf16.mxu0 0
        %875 = vmatpush1.bf16.msra.mxu0 0
        %876 = vmatprep.subr.bf16.mxu0 0
        %877 = vmatpush1.bf16.msra.mxu0 0
        %878 = vmatprep.subr.bf16.mxu0 0
        %879 = vmatpush1.bf16.msra.mxu0 0
        %880 = vmatprep.subr.bf16.mxu0 0
        %881 = vmatpush1.bf16.msra.mxu0 0
        %882 = vmatprep.subr.bf16.mxu0 0
        %883 = vmatpush1.bf16.msra.mxu0 0
        %884 = vmatprep.subr.bf16.mxu0 0
        %885 = vmatpush1.bf16.msra.mxu0 0
        %886 = vmatprep.subr.bf16.mxu0 0
        %887 = vmatpush1.bf16.msra.mxu0 0
        %888 = vmatprep.mubr.bf16.mxu0 0
        %889 = vmatmul.mubr.bf16.gmra.mrb[0].mxu0 %v840
        %v890 = vpop.f32.mrb[0].mxu0
        %v891 = vadd.f32 0.0, %v890
        %v892 = vpop.f32.mrb[0].mxu0
        %v893 = vpop.f32.mrb[0].mxu0
        %v894 = vadd.f32 0.0, %v893
        %v895 = vpop.f32.mrb[0].mxu0
        %896 = vmatprep.mubr.bf16.mxu0 0
        %897 = vmatmul.mubr.bf16.gmra.mrb[0].mxu0 %v841
        %v898 = vpop.f32.mrb[0].mxu0
        %v899 = vadd.f32 0.0, %v898
        %v900 = vpop.f32.mrb[0].mxu0
        %v901 = vpop.f32.mrb[0].mxu0
        %v902 = vadd.f32 0.0, %v901
        %v903 = vpop.f32.mrb[0].mxu0
        %904 = vmatprep.mubr.bf16.mxu0 0
        %905 = vmatmul.mubr.bf16.gmra.mrb[0].mxu0 %v842
        %v906 = vpop.f32.mrb[0].mxu0
        %v907 = vadd.f32 0.0, %v906
        %v908 = vpop.f32.mrb[0].mxu0
        %v909 = vpop.f32.mrb[0].mxu0
        %v910 = vadd.f32 0.0, %v909
        %v911 = vpop.f32.mrb[0].mxu0
        %912 = vmatprep.mubr.bf16.mxu0 0
        %913 = vmatmul.mubr.bf16.gmra.mrb[0].mxu0 %v843
        %v914 = vpop.f32.mrb[0].mxu0
        %v915 = vadd.f32 0.0, %v914
        %v916 = vpop.f32.mrb[0].mxu0
        %v917 = vpop.f32.mrb[0].mxu0
        %v918 = vadd.f32 0.0, %v917
        %v919 = vpop.f32.mrb[0].mxu0
        %920 = vmatprep.mubr.bf16.mxu0 0
        %921 = vmatmul.mubr.bf16.gmra.mrb[0].mxu0 %v844
        %v922 = vpop.f32.mrb[0].mxu0
        %v923 = vadd.f32 0.0, %v922
        %v924 = vpop.f32.mrb[0].mxu0
        %v925 = vpop.f32.mrb[0].mxu0
        %v926 = vadd.f32 0.0, %v925
        %v927 = vpop.f32.mrb[0].mxu0
        %928 = vmatprep.mubr.bf16.mxu0 0
        %929 = vmatmul.mubr.bf16.gmra.mrb[0].mxu0 %v845
        %v930 = vpop.f32.mrb[0].mxu0
        %v931 = vadd.f32 0.0, %v930
        %v932 = vpop.f32.mrb[0].mxu0
        %v933 = vpop.f32.mrb[0].mxu0
        %v934 = vadd.f32 0.0, %v933
        %v935 = vpop.f32.mrb[0].mxu0
        %936 = vmatprep.mubr.bf16.mxu0 0
        %937 = vmatmul.mubr.bf16.gmra.mrb[0].mxu0 %v846
        %v938 = vpop.f32.mrb[0].mxu0
        %v939 = vadd.f32 0.0, %v938
        %v940 = vpop.f32.mrb[0].mxu0
        %v941 = vpop.f32.mrb[0].mxu0
        %v942 = vadd.f32 0.0, %v941
        %v943 = vpop.f32.mrb[0].mxu0
        %944 = vmatprep.mubr.bf16.mxu0 0
        %945 = vmatmul.mubr.bf16.gmra.mrb[0].mxu0 %v847
        %v946 = vpop.f32.mrb[0].mxu0
        %v947 = vadd.f32 0.0, %v946
        %v948 = vpop.f32.mrb[0].mxu0
        %v949 = vpop.f32.mrb[0].mxu0
        %v950 = vadd.f32 0.0, %v949
        %v951 = vpop.f32.mrb[0].mxu0
        %952 = vdwg.mxu0
        %v953 = vpack.c.bf16 %v894, %v891
        %v954 = vpack.c.bf16 %v902, %v899
        %v955 = vpack.c.bf16 %v910, %v907
        %v956 = vpack.c.bf16 %v918, %v915
        %v957 = vpack.c.bf16 %v926, %v923
        %v958 = vpack.c.bf16 %v934, %v931
        %v959 = vpack.c.bf16 %v942, %v939
        %v960 = vpack.c.bf16 %v950, %v947
        %v961 = vld [vmem:[%s6] sm:$0xf]
        %v962 = vld [vmem:[%s6 + $0x4] sm:$0xf]
        %v963 = vld [vmem:[%s6 + $0x8] sm:$0xf]
        %v964 = vld [vmem:[%s6 + $0xc] sm:$0xf]
        %v965 = vld [vmem:[%s7] sm:$0x1]
        %v967 = vlaneseq
        %v968 = vshrl.u32 %v967, 7
        %v969 = vsub.s32 0, %v968
        %v970 = vrot.slane %v965, %v969
        %v976 = vunpack.c.l.b16 %v961
        %v977 = vunpack.c.l.b16 %v962
        %v978 = vunpack.c.l.b16 %v963
        %v979 = vunpack.c.l.b16 %v964
        %v980 = vpack.c.b16 %v977, %v976
        %v981 = vpack.c.b16 %v979, %v978
        %v985 = vsel %vm783, %v953, 0
        %v988 = vsel %vm783, %v954, 0
        %v991 = vsel %vm783, %v955, 0
        %v994 = vsel %vm783, %v956, 0
        %v997 = vsel %vm783, %v957, 0
        %v1000 = vsel %vm783, %v958, 0
        %v1003 = vsel %vm783, %v959, 0
        %v1006 = vsel %vm783, %v960, 0
        %1008 = vmatprep.subr.bf16.mxu0 0
        %1009 = vmatpush1.bf16.msra.mxu0 %v980
        %1010 = vmatprep.subr.bf16.mxu0 0
        %1011 = vmatpush1.bf16.msra.mxu0 %v981
        %1012 = vmatprep.subr.bf16.mxu0 0
        %1013 = vmatpush1.bf16.msra.mxu0 0
        %1014 = vmatprep.subr.bf16.mxu0 0
        %1015 = vmatpush1.bf16.msra.mxu0 0
        %1016 = vmatprep.subr.bf16.mxu0 0
        %1017 = vmatpush1.bf16.msra.mxu0 0
        %1018 = vmatprep.subr.bf16.mxu0 0
        %1019 = vmatpush1.bf16.msra.mxu0 0
        %1020 = vmatprep.subr.bf16.mxu0 0
        %1021 = vmatpush1.bf16.msra.mxu0 0
        %1022 = vmatprep.subr.bf16.mxu0 0
        %1023 = vmatpush1.bf16.msra.mxu0 0
        %1024 = vmatprep.subr.bf16.mxu0 0
        %1025 = vmatpush1.bf16.msra.mxu0 0
        %1026 = vmatprep.subr.bf16.mxu0 0
        %1027 = vmatpush1.bf16.msra.mxu0 0
        %1028 = vmatprep.subr.bf16.mxu0 0
        %1029 = vmatpush1.bf16.msra.mxu0 0
        %1030 = vmatprep.subr.bf16.mxu0 0
        %1031 = vmatpush1.bf16.msra.mxu0 0
        %1032 = vmatprep.subr.bf16.mxu0 0
        %1033 = vmatpush1.bf16.msra.mxu0 0
        %1034 = vmatprep.subr.bf16.mxu0 0
        %1035 = vmatpush1.bf16.msra.mxu0 0
        %1036 = vmatprep.subr.bf16.mxu0 0
        %1037 = vmatpush1.bf16.msra.mxu0 0
        %1038 = vmatprep.subr.bf16.mxu0 0
        %1039 = vmatpush1.bf16.msra.mxu0 0
        %1040 = vmatprep.mubr.bf16.mxu0 0
        %1041 = vmatmul.mubr.bf16.gmra.mrb[0].mxu0 %v985
        %v1042 = vpop.f32.mrb[0].mxu0
        %v1043 = vadd.f32 %v970, %v1042
        %v1044 = vpop.f32.mrb[0].mxu0
        %v1045 = vpop.f32.mrb[0].mxu0
        %v1046 = vadd.f32 %v970, %v1045
        %v1047 = vpop.f32.mrb[0].mxu0
        %1048 = vmatprep.mubr.bf16.mxu0 0
        %1049 = vmatmul.mubr.bf16.gmra.mrb[0].mxu0 %v988
        %v1050 = vpop.f32.mrb[0].mxu0
        %v1051 = vadd.f32 %v970, %v1050
        %v1052 = vpop.f32.mrb[0].mxu0
        %v1053 = vpop.f32.mrb[0].mxu0
        %v1054 = vadd.f32 %v970, %v1053
        %v1055 = vpop.f32.mrb[0].mxu0
        %1056 = vmatprep.mubr.bf16.mxu0 0
        %1057 = vmatmul.mubr.bf16.gmra.mrb[0].mxu0 %v991
        %v1058 = vpop.f32.mrb[0].mxu0
        %v1059 = vadd.f32 %v970, %v1058
        %v1060 = vpop.f32.mrb[0].mxu0
        %v1061 = vpop.f32.mrb[0].mxu0
        %v1062 = vadd.f32 %v970, %v1061
        %v1063 = vpop.f32.mrb[0].mxu0
        %1064 = vmatprep.mubr.bf16.mxu0 0
        %1065 = vmatmul.mubr.bf16.gmra.mrb[0].mxu0 %v994
        %v1066 = vpop.f32.mrb[0].mxu0
        %v1067 = vadd.f32 %v970, %v1066
        %v1068 = vpop.f32.mrb[0].mxu0
        %v1069 = vpop.f32.mrb[0].mxu0
        %v1070 = vadd.f32 %v970, %v1069
        %v1071 = vpop.f32.mrb[0].mxu0
        %1072 = vmatprep.mubr.bf16.mxu0 0
        %1073 = vmatmul.mubr.bf16.gmra.mrb[0].mxu0 %v997
        %v1074 = vpop.f32.mrb[0].mxu0
        %v1075 = vadd.f32 %v970, %v1074
        %v1076 = vpop.f32.mrb[0].mxu0
        %v1077 = vpop.f32.mrb[0].mxu0
        %v1078 = vadd.f32 %v970, %v1077
        %v1079 = vpop.f32.mrb[0].mxu0
        %1080 = vmatprep.mubr.bf16.mxu0 0
        %1081 = vmatmul.mubr.bf16.gmra.mrb[0].mxu0 %v1000
        %v1082 = vpop.f32.mrb[0].mxu0
        %v1083 = vadd.f32 %v970, %v1082
        %v1084 = vpop.f32.mrb[0].mxu0
        %v1085 = vpop.f32.mrb[0].mxu0
        %v1086 = vadd.f32 %v970, %v1085
        %v1087 = vpop.f32.mrb[0].mxu0
        %1088 = vmatprep.mubr.bf16.mxu0 0
        %1089 = vmatmul.mubr.bf16.gmra.mrb[0].mxu0 %v1003
        %v1090 = vpop.f32.mrb[0].mxu0
        %v1091 = vadd.f32 %v970, %v1090
        %v1092 = vpop.f32.mrb[0].mxu0
        %v1093 = vpop.f32.mrb[0].mxu0
        %v1094 = vadd.f32 %v970, %v1093
        %v1095 = vpop.f32.mrb[0].mxu0
        %1096 = vmatprep.mubr.bf16.mxu0 0
        %1097 = vmatmul.mubr.bf16.gmra.mrb[0].mxu0 %v1006
        %v1098 = vpop.f32.mrb[0].mxu0
        %v1099 = vadd.f32 %v970, %v1098
        %v1100 = vpop.f32.mrb[0].mxu0
        %v1101 = vpop.f32.mrb[0].mxu0
        %v1102 = vadd.f32 %v970, %v1101
        %v1103 = vpop.f32.mrb[0].mxu0
        %1104 = vdwg.mxu0
        %v1105 = vmax.f32 %v1043, 0.0
        %v1106 = vmax.f32 %v1046, 0.0
        %v1107 = vmax.f32 %v1051, 0.0
        %v1108 = vmax.f32 %v1054, 0.0
        %v1109 = vmax.f32 %v1059, 0.0
        %v1110 = vmax.f32 %v1062, 0.0
        %v1111 = vmax.f32 %v1067, 0.0
        %v1112 = vmax.f32 %v1070, 0.0
        %v1113 = vmax.f32 %v1075, 0.0
        %v1114 = vmax.f32 %v1078, 0.0
        %v1115 = vmax.f32 %v1083, 0.0
        %v1116 = vmax.f32 %v1086, 0.0
        %v1117 = vmax.f32 %v1091, 0.0
        %v1118 = vmax.f32 %v1094, 0.0
        %v1119 = vmax.f32 %v1099, 0.0
        %v1120 = vmax.f32 %v1102, 0.0
        %v1121 = vpack.c.bf16 %v1106, %v1105
        %v1122 = vpack.c.bf16 %v1108, %v1107
        %v1123 = vpack.c.bf16 %v1110, %v1109
        %v1124 = vpack.c.bf16 %v1112, %v1111
        %v1125 = vpack.c.bf16 %v1114, %v1113
        %v1126 = vpack.c.bf16 %v1116, %v1115
        %v1127 = vpack.c.bf16 %v1118, %v1117
        %v1128 = vpack.c.bf16 %v1120, %v1119
        %v1129 = vld [vmem:[#allocation3] sm:$0xf]
        %v1130 = vld [vmem:[#allocation3 + $0x4] sm:$0xf]
        %v1131 = vld [vmem:[#allocation3 + $0x8] sm:$0xf]
        %v1132 = vld [vmem:[#allocation3 + $0xc] sm:$0xf]
        %v1133 = vld [vmem:[%s9] sm:$0x1]
        %v1135 = vlaneseq
        %v1136 = vshrl.u32 %v1135, 7
        %v1137 = vsub.s32 0, %v1136
        %v1138 = vrot.slane %v1133, %v1137
        %v1144 = vunpack.c.l.b16 %v1129
        %v1145 = vunpack.c.l.b16 %v1130
        %v1146 = vunpack.c.l.b16 %v1131
        %v1147 = vunpack.c.l.b16 %v1132
        %v1148 = vpack.c.b16 %v1145, %v1144
        %v1149 = vpack.c.b16 %v1147, %v1146
        %v1153 = vsel %vm783, %v1121, 0
        %v1156 = vsel %vm783, %v1122, 0
        %v1159 = vsel %vm783, %v1123, 0
        %v1162 = vsel %vm783, %v1124, 0
        %v1165 = vsel %vm783, %v1125, 0
        %v1168 = vsel %vm783, %v1126, 0
        %v1171 = vsel %vm783, %v1127, 0
        %v1174 = vsel %vm783, %v1128, 0
        %1176 = vmatprep.subr.bf16.mxu0 0
        %1177 = vmatpush1.bf16.msra.mxu0 %v1148
        %1178 = vmatprep.subr.bf16.mxu0 0
        %1179 = vmatpush1.bf16.msra.mxu0 %v1149
        %1180 = vmatprep.subr.bf16.mxu0 0
        %1181 = vmatpush1.bf16.msra.mxu0 0
        %1182 = vmatprep.subr.bf16.mxu0 0
        %1183 = vmatpush1.bf16.msra.mxu0 0
        %1184 = vmatprep.subr.bf16.mxu0 0
        %1185 = vmatpush1.bf16.msra.mxu0 0
        %1186 = vmatprep.subr.bf16.mxu0 0
        %1187 = vmatpush1.bf16.msra.mxu0 0
        %1188 = vmatprep.subr.bf16.mxu0 0
        %1189 = vmatpush1.bf16.msra.mxu0 0
        %1190 = vmatprep.subr.bf16.mxu0 0
        %1191 = vmatpush1.bf16.msra.mxu0 0
        %1192 = vmatprep.subr.bf16.mxu0 0
        %1193 = vmatpush1.bf16.msra.mxu0 0
        %1194 = vmatprep.subr.bf16.mxu0 0
        %1195 = vmatpush1.bf16.msra.mxu0 0
        %1196 = vmatprep.subr.bf16.mxu0 0
        %1197 = vmatpush1.bf16.msra.mxu0 0
        %1198 = vmatprep.subr.bf16.mxu0 0
        %1199 = vmatpush1.bf16.msra.mxu0 0
        %1200 = vmatprep.subr.bf16.mxu0 0
        %1201 = vmatpush1.bf16.msra.mxu0 0
        %1202 = vmatprep.subr.bf16.mxu0 0
        %1203 = vmatpush1.bf16.msra.mxu0 0
        %1204 = vmatprep.subr.bf16.mxu0 0
        %1205 = vmatpush1.bf16.msra.mxu0 0
        %1206 = vmatprep.subr.bf16.mxu0 0
        %1207 = vmatpush1.bf16.msra.mxu0 0
        %1208 = vmatprep.mubr.bf16.mxu0 0
        %1209 = vmatmul.mubr.bf16.gmra.mrb[0].mxu0 %v1153
        %v1210 = vpop.f32.mrb[0].mxu0
        %v1211 = vadd.f32 %v1138, %v1210
        %v1212 = vpop.f32.mrb[0].mxu0
        %v1213 = vpop.f32.mrb[0].mxu0
        %v1214 = vadd.f32 %v1138, %v1213
        %v1215 = vpop.f32.mrb[0].mxu0
        %1216 = vmatprep.mubr.bf16.mxu0 0
        %1217 = vmatmul.mubr.bf16.gmra.mrb[0].mxu0 %v1156
        %v1218 = vpop.f32.mrb[0].mxu0
        %v1219 = vadd.f32 %v1138, %v1218
        %v1220 = vpop.f32.mrb[0].mxu0
        %v1221 = vpop.f32.mrb[0].mxu0
        %v1222 = vadd.f32 %v1138, %v1221
        %v1223 = vpop.f32.mrb[0].mxu0
        %1224 = vmatprep.mubr.bf16.mxu0 0
        %1225 = vmatmul.mubr.bf16.gmra.mrb[0].mxu0 %v1159
        %v1226 = vpop.f32.mrb[0].mxu0
        %v1227 = vadd.f32 %v1138, %v1226
        %v1228 = vpop.f32.mrb[0].mxu0
        %v1229 = vpop.f32.mrb[0].mxu0
        %v1230 = vadd.f32 %v1138, %v1229
        %v1231 = vpop.f32.mrb[0].mxu0
        %1232 = vmatprep.mubr.bf16.mxu0 0
        %1233 = vmatmul.mubr.bf16.gmra.mrb[0].mxu0 %v1162
        %v1234 = vpop.f32.mrb[0].mxu0
        %v1235 = vadd.f32 %v1138, %v1234
        %v1236 = vpop.f32.mrb[0].mxu0
        %v1237 = vpop.f32.mrb[0].mxu0
        %v1238 = vadd.f32 %v1138, %v1237
        %v1239 = vpop.f32.mrb[0].mxu0
        %1240 = vmatprep.mubr.bf16.mxu0 0
        %1241 = vmatmul.mubr.bf16.gmra.mrb[0].mxu0 %v1165
        %v1242 = vpop.f32.mrb[0].mxu0
        %v1243 = vadd.f32 %v1138, %v1242
        %v1244 = vpop.f32.mrb[0].mxu0
        %v1245 = vpop.f32.mrb[0].mxu0
        %v1246 = vadd.f32 %v1138, %v1245
        %v1247 = vpop.f32.mrb[0].mxu0
        %1248 = vmatprep.mubr.bf16.mxu0 0
        %1249 = vmatmul.mubr.bf16.gmra.mrb[0].mxu0 %v1168
        %v1250 = vpop.f32.mrb[0].mxu0
        %v1251 = vadd.f32 %v1138, %v1250
        %v1252 = vpop.f32.mrb[0].mxu0
        %v1253 = vpop.f32.mrb[0].mxu0
        %v1254 = vadd.f32 %v1138, %v1253
        %v1255 = vpop.f32.mrb[0].mxu0
        %1256 = vmatprep.mubr.bf16.mxu0 0
        %1257 = vmatmul.mubr.bf16.gmra.mrb[0].mxu0 %v1171
        %v1258 = vpop.f32.mrb[0].mxu0
        %v1259 = vadd.f32 %v1138, %v1258
        %v1260 = vpop.f32.mrb[0].mxu0
        %v1261 = vpop.f32.mrb[0].mxu0
        %v1262 = vadd.f32 %v1138, %v1261
        %v1263 = vpop.f32.mrb[0].mxu0
        %1264 = vmatprep.mubr.bf16.mxu0 0
        %1265 = vmatmul.mubr.bf16.gmra.mrb[0].mxu0 %v1174
        %v1266 = vpop.f32.mrb[0].mxu0
        %v1267 = vadd.f32 %v1138, %v1266
        %v1268 = vpop.f32.mrb[0].mxu0
        %v1269 = vpop.f32.mrb[0].mxu0
        %v1270 = vadd.f32 %v1138, %v1269
        %v1271 = vpop.f32.mrb[0].mxu0
        %1272 = vdwg.mxu0
        %v1273 = vmax.f32 %v1211, 0.0
        %v1274 = vmax.f32 %v1214, 0.0
        %v1275 = vmax.f32 %v1219, 0.0
        %v1276 = vmax.f32 %v1222, 0.0
        %v1277 = vmax.f32 %v1227, 0.0
        %v1278 = vmax.f32 %v1230, 0.0
        %v1279 = vmax.f32 %v1235, 0.0
        %v1280 = vmax.f32 %v1238, 0.0
        %v1281 = vmax.f32 %v1243, 0.0
        %v1282 = vmax.f32 %v1246, 0.0
        %v1283 = vmax.f32 %v1251, 0.0
        %v1284 = vmax.f32 %v1254, 0.0
        %v1285 = vmax.f32 %v1259, 0.0
        %v1286 = vmax.f32 %v1262, 0.0
        %v1287 = vmax.f32 %v1267, 0.0
        %v1288 = vmax.f32 %v1270, 0.0
        %1305 = vrot.lane.b32.xlu0 %v1273, 32
        %v1306 = vpop.permute.xlu0 %1305
        %1307 = vrot.lane.b32.xlu0 %v1274, 32
        %v1308 = vpop.permute.xlu0 %1307
        %1309 = vrot.lane.b32.xlu0 %v1275, 32
        %v1310 = vpop.permute.xlu0 %1309
        %1311 = vrot.lane.b32.xlu0 %v1276, 32
        %v1312 = vpop.permute.xlu0 %1311
        %1313 = vrot.lane.b32.xlu0 %v1277, 32
        %v1314 = vpop.permute.xlu0 %1313
        %1315 = vrot.lane.b32.xlu0 %v1278, 32
        %v1316 = vpop.permute.xlu0 %1315
        %1317 = vrot.lane.b32.xlu0 %v1279, 32
        %v1318 = vpop.permute.xlu0 %1317
        %1319 = vrot.lane.b32.xlu0 %v1280, 32
        %v1320 = vpop.permute.xlu0 %1319
        %1321 = vrot.lane.b32.xlu0 %v1281, 32
        %v1322 = vpop.permute.xlu0 %1321
        %1323 = vrot.lane.b32.xlu0 %v1282, 32
        %v1324 = vpop.permute.xlu0 %1323
        %1325 = vrot.lane.b32.xlu0 %v1283, 32
        %v1326 = vpop.permute.xlu0 %1325
        %1327 = vrot.lane.b32.xlu0 %v1284, 32
        %v1328 = vpop.permute.xlu0 %1327
        %1329 = vrot.lane.b32.xlu0 %v1285, 32
        %v1330 = vpop.permute.xlu0 %1329
        %1331 = vrot.lane.b32.xlu0 %v1286, 32
        %v1332 = vpop.permute.xlu0 %1331
        %1333 = vrot.lane.b32.xlu0 %v1287, 32
        %v1334 = vpop.permute.xlu0 %1333
        %1335 = vrot.lane.b32.xlu0 %v1288, 32
        %v1336 = vpop.permute.xlu0 %1335
        %vm1353 = vcmask 523520
        %1354 = vst.msk [vmem:[#allocation2] sm:$0xff] %vm1353, %v1306
        %1355 = vst.msk [vmem:[#allocation2 + $0x18] sm:$0xff] %vm1353, %v1308
        %1356 = vst.msk [vmem:[#allocation2 + $0x30] sm:$0xff] %vm1353, %v1310
        %1357 = vst.msk [vmem:[#allocation2 + $0x48] sm:$0xff] %vm1353, %v1312
        %1358 = vst.msk [vmem:[#allocation2 + $0x60] sm:$0xff] %vm1353, %v1314
        %1359 = vst.msk [vmem:[#allocation2 + $0x78] sm:$0xff] %vm1353, %v1316
        %1360 = vst.msk [vmem:[#allocation2 + $0x90] sm:$0xff] %vm1353, %v1318
        %1361 = vst.msk [vmem:[#allocation2 + $0xa8] sm:$0xff] %vm1353, %v1320
        %1362 = vst.msk [vmem:[#allocation2 + $0xc0] sm:$0xff] %vm1353, %v1322
        %1363 = vst.msk [vmem:[#allocation2 + $0xd8] sm:$0xff] %vm1353, %v1324
        %1364 = vst.msk [vmem:[#allocation2 + $0xf0] sm:$0xff] %vm1353, %v1326
        %1365 = vst.msk [vmem:[#allocation2 + $0x108] sm:$0xff] %vm1353, %v1328
        %1366 = vst.msk [vmem:[#allocation2 + $0x120] sm:$0xff] %vm1353, %v1330
        %1367 = vst.msk [vmem:[#allocation2 + $0x138] sm:$0xff] %vm1353, %v1332
        %1368 = vst.msk [vmem:[#allocation2 + $0x150] sm:$0xff] %vm1353, %v1334
        %1369 = vst.msk [vmem:[#allocation2 + $0x168] sm:$0xff] %vm1353, %v1336
        %v1370 = vpack.c.bf16 %v1274, %v1273
        %v1371 = vpack.c.bf16 %v1276, %v1275
        %v1372 = vpack.c.bf16 %v1278, %v1277
        %v1373 = vpack.c.bf16 %v1280, %v1279
        %v1374 = vpack.c.bf16 %v1282, %v1281
        %v1375 = vpack.c.bf16 %v1284, %v1283
        %v1376 = vpack.c.bf16 %v1286, %v1285
        %v1377 = vpack.c.bf16 %v1288, %v1287
        %1378 = vmatprep.subr.bf16.mxu0 0
        %1379 = vmatpush1.bf16.msra.mxu0 %v1370
        %1380 = vmatprep.subr.bf16.mxu0 0
        %1381 = vmatpush1.bf16.msra.mxu0 %v1371
        %1382 = vmatprep.subr.bf16.mxu0 0
        %1383 = vmatpush1.bf16.msra.mxu0 %v1372
        %1384 = vmatprep.subr.bf16.mxu0 0
        %1385 = vmatpush1.bf16.msra.mxu0 %v1373
        %1386 = vmatprep.subr.bf16.mxu0 0
        %1387 = vmatpush1.bf16.msra.mxu0 %v1374
        %1388 = vmatprep.subr.bf16.mxu0 0
        %1389 = vmatpush1.bf16.msra.mxu0 %v1375
        %1390 = vmatprep.subr.bf16.mxu0 0
        %1391 = vmatpush1.bf16.msra.mxu0 %v1376
        %1392 = vmatprep.subr.bf16.mxu0 0
        %1393 = vmatpush1.bf16.msra.mxu0 %v1377
        %1394 = vmatprep.subr.bf16.mxu0 0
        %1395 = vmatpush1.bf16.msra.mxu0 0
        %1396 = vmatprep.subr.bf16.mxu0 0
        %1397 = vmatpush1.bf16.msra.mxu0 0
        %1398 = vmatprep.subr.bf16.mxu0 0
        %1399 = vmatpush1.bf16.msra.mxu0 0
        %1400 = vmatprep.subr.bf16.mxu0 0
        %1401 = vmatpush1.bf16.msra.mxu0 0
        %1402 = vmatprep.subr.bf16.mxu0 0
        %1403 = vmatpush1.bf16.msra.mxu0 0
        %1404 = vmatprep.subr.bf16.mxu0 0
        %1405 = vmatpush1.bf16.msra.mxu0 0
        %1406 = vmatprep.subr.bf16.mxu0 0
        %1407 = vmatpush1.bf16.msra.mxu0 0
        %1408 = vmatprep.subr.bf16.mxu0 0
        %1409 = vmatpush1.bf16.msra.mxu0 0
        %1410 = vmatprep.mubr.bf16.mxu0 0
        %1411 = vmatmul.mubr.bf16.gmra.mrb[0].mxu0 %v840
        %v1412 = vpop.f32.mrb[0].mxu0
        %v1413 = vadd.f32 0.0, %v1412
        %v1414 = vpop.f32.mrb[0].mxu0
        %v1415 = vpop.f32.mrb[0].mxu0
        %v1416 = vadd.f32 0.0, %v1415
        %v1417 = vpop.f32.mrb[0].mxu0
        %1418 = vmatprep.mubr.bf16.mxu0 0
        %1419 = vmatmul.mubr.bf16.gmra.mrb[0].mxu0 %v841
        %v1420 = vpop.f32.mrb[0].mxu0
        %v1421 = vadd.f32 0.0, %v1420
        %v1422 = vpop.f32.mrb[0].mxu0
        %v1423 = vpop.f32.mrb[0].mxu0
        %v1424 = vadd.f32 0.0, %v1423
        %v1425 = vpop.f32.mrb[0].mxu0
        %1426 = vmatprep.mubr.bf16.mxu0 0
        %1427 = vmatmul.mubr.bf16.gmra.mrb[0].mxu0 %v842
        %v1428 = vpop.f32.mrb[0].mxu0
        %v1429 = vadd.f32 0.0, %v1428
        %v1430 = vpop.f32.mrb[0].mxu0
        %v1431 = vpop.f32.mrb[0].mxu0
        %v1432 = vadd.f32 0.0, %v1431
        %v1433 = vpop.f32.mrb[0].mxu0
        %1434 = vmatprep.mubr.bf16.mxu0 0
        %1435 = vmatmul.mubr.bf16.gmra.mrb[0].mxu0 %v843
        %v1436 = vpop.f32.mrb[0].mxu0
        %v1437 = vadd.f32 0.0, %v1436
        %v1438 = vpop.f32.mrb[0].mxu0
        %v1439 = vpop.f32.mrb[0].mxu0
        %v1440 = vadd.f32 0.0, %v1439
        %v1441 = vpop.f32.mrb[0].mxu0
        %1442 = vmatprep.mubr.bf16.mxu0 0
        %1443 = vmatmul.mubr.bf16.gmra.mrb[0].mxu0 %v844
        %v1444 = vpop.f32.mrb[0].mxu0
        %v1445 = vadd.f32 0.0, %v1444
        %v1446 = vpop.f32.mrb[0].mxu0
        %v1447 = vpop.f32.mrb[0].mxu0
        %v1448 = vadd.f32 0.0, %v1447
        %v1449 = vpop.f32.mrb[0].mxu0
        %1450 = vmatprep.mubr.bf16.mxu0 0
        %1451 = vmatmul.mubr.bf16.gmra.mrb[0].mxu0 %v845
        %v1452 = vpop.f32.mrb[0].mxu0
        %v1453 = vadd.f32 0.0, %v1452
        %v1454 = vpop.f32.mrb[0].mxu0
        %v1455 = vpop.f32.mrb[0].mxu0
        %v1456 = vadd.f32 0.0, %v1455
        %v1457 = vpop.f32.mrb[0].mxu0
        %1458 = vmatprep.mubr.bf16.mxu0 0
        %1459 = vmatmul.mubr.bf16.gmra.mrb[0].mxu0 %v846
        %v1460 = vpop.f32.mrb[0].mxu0
        %v1461 = vadd.f32 0.0, %v1460
        %v1462 = vpop.f32.mrb[0].mxu0
        %v1463 = vpop.f32.mrb[0].mxu0
        %v1464 = vadd.f32 0.0, %v1463
        %v1465 = vpop.f32.mrb[0].mxu0
        %1466 = vmatprep.mubr.bf16.mxu0 0
        %1467 = vmatmul.mubr.bf16.gmra.mrb[0].mxu0 %v847
        %v1468 = vpop.f32.mrb[0].mxu0
        %v1469 = vadd.f32 0.0, %v1468
        %v1470 = vpop.f32.mrb[0].mxu0
        %v1471 = vpop.f32.mrb[0].mxu0
        %v1472 = vadd.f32 0.0, %v1471
        %v1473 = vpop.f32.mrb[0].mxu0
        %1474 = vdwg.mxu0
        %v1475 = vpack.c.bf16 %v1416, %v1413
        %v1476 = vpack.c.bf16 %v1424, %v1421
        %v1477 = vpack.c.bf16 %v1432, %v1429
        %v1478 = vpack.c.bf16 %v1440, %v1437
        %v1479 = vpack.c.bf16 %v1448, %v1445
        %v1480 = vpack.c.bf16 %v1456, %v1453
        %v1481 = vpack.c.bf16 %v1464, %v1461
        %v1482 = vpack.c.bf16 %v1472, %v1469
        %s1483 = scalar_lea.vmem %s6, 16
        %v1484 = vld [vmem:[%s1483] sm:$0xf]
        %v1485 = vld [vmem:[%s1483 + $0x4] sm:$0xf]
        %v1486 = vld [vmem:[%s1483 + $0x8] sm:$0xf]
        %v1487 = vld [vmem:[%s1483 + $0xc] sm:$0xf]
        %s1488 = scalar_lea.vmem %s7, 1
        %v1489 = vld [vmem:[%s1488] sm:$0x1]
        %v1491 = vlaneseq
        %v1492 = vshrl.u32 %v1491, 7
        %v1493 = vsub.s32 0, %v1492
        %v1494 = vrot.slane %v1489, %v1493
        %v1500 = vunpack.c.l.b16 %v1484
        %v1501 = vunpack.c.l.b16 %v1485
        %v1502 = vunpack.c.l.b16 %v1486
        %v1503 = vunpack.c.l.b16 %v1487
        %v1504 = vpack.c.b16 %v1501, %v1500
        %v1505 = vpack.c.b16 %v1503, %v1502
        %v1509 = vsel %vm783, %v1475, 0
        %v1512 = vsel %vm783, %v1476, 0
        %v1515 = vsel %vm783, %v1477, 0
        %v1518 = vsel %vm783, %v1478, 0
        %v1521 = vsel %vm783, %v1479, 0
        %v1524 = vsel %vm783, %v1480, 0
        %v1527 = vsel %vm783, %v1481, 0
        %v1530 = vsel %vm783, %v1482, 0
        %1532 = vmatprep.subr.bf16.mxu0 0
        %1533 = vmatpush1.bf16.msra.mxu0 %v1504
        %1534 = vmatprep.subr.bf16.mxu0 0
        %1535 = vmatpush1.bf16.msra.mxu0 %v1505
        %1536 = vmatprep.subr.bf16.mxu0 0
        %1537 = vmatpush1.bf16.msra.mxu0 0
        %1538 = vmatprep.subr.bf16.mxu0 0
        %1539 = vmatpush1.bf16.msra.mxu0 0
        %1540 = vmatprep.subr.bf16.mxu0 0
        %1541 = vmatpush1.bf16.msra.mxu0 0
        %1542 = vmatprep.subr.bf16.mxu0 0
        %1543 = vmatpush1.bf16.msra.mxu0 0
        %1544 = vmatprep.subr.bf16.mxu0 0
        %1545 = vmatpush1.bf16.msra.mxu0 0
        %1546 = vmatprep.subr.bf16.mxu0 0
        %1547 = vmatpush1.bf16.msra.mxu0 0
        %1548 = vmatprep.subr.bf16.mxu0 0
        %1549 = vmatpush1.bf16.msra.mxu0 0
        %1550 = vmatprep.subr.bf16.mxu0 0
        %1551 = vmatpush1.bf16.msra.mxu0 0
        %1552 = vmatprep.subr.bf16.mxu0 0
        %1553 = vmatpush1.bf16.msra.mxu0 0
        %1554 = vmatprep.subr.bf16.mxu0 0
        %1555 = vmatpush1.bf16.msra.mxu0 0
        %1556 = vmatprep.subr.bf16.mxu0 0
        %1557 = vmatpush1.bf16.msra.mxu0 0
        %1558 = vmatprep.subr.bf16.mxu0 0
        %1559 = vmatpush1.bf16.msra.mxu0 0
        %1560 = vmatprep.subr.bf16.mxu0 0
        %1561 = vmatpush1.bf16.msra.mxu0 0
        %1562 = vmatprep.subr.bf16.mxu0 0
        %1563 = vmatpush1.bf16.msra.mxu0 0
        %1564 = vmatprep.mubr.bf16.mxu0 0
        %1565 = vmatmul.mubr.bf16.gmra.mrb[0].mxu0 %v1509
        %v1566 = vpop.f32.mrb[0].mxu0
        %v1567 = vadd.f32 %v1494, %v1566
        %v1568 = vpop.f32.mrb[0].mxu0
        %v1569 = vpop.f32.mrb[0].mxu0
        %v1570 = vadd.f32 %v1494, %v1569
        %v1571 = vpop.f32.mrb[0].mxu0
        %1572 = vmatprep.mubr.bf16.mxu0 0
        %1573 = vmatmul.mubr.bf16.gmra.mrb[0].mxu0 %v1512
        %v1574 = vpop.f32.mrb[0].mxu0
        %v1575 = vadd.f32 %v1494, %v1574
        %v1576 = vpop.f32.mrb[0].mxu0
        %v1577 = vpop.f32.mrb[0].mxu0
        %v1578 = vadd.f32 %v1494, %v1577
        %v1579 = vpop.f32.mrb[0].mxu0
        %1580 = vmatprep.mubr.bf16.mxu0 0
        %1581 = vmatmul.mubr.bf16.gmra.mrb[0].mxu0 %v1515
        %v1582 = vpop.f32.mrb[0].mxu0
        %v1583 = vadd.f32 %v1494, %v1582
        %v1584 = vpop.f32.mrb[0].mxu0
        %v1585 = vpop.f32.mrb[0].mxu0
        %v1586 = vadd.f32 %v1494, %v1585
        %v1587 = vpop.f32.mrb[0].mxu0
        %1588 = vmatprep.mubr.bf16.mxu0 0
        %1589 = vmatmul.mubr.bf16.gmra.mrb[0].mxu0 %v1518
        %v1590 = vpop.f32.mrb[0].mxu0
        %v1591 = vadd.f32 %v1494, %v1590
        %v1592 = vpop.f32.mrb[0].mxu0
        %v1593 = vpop.f32.mrb[0].mxu0
        %v1594 = vadd.f32 %v1494, %v1593
        %v1595 = vpop.f32.mrb[0].mxu0
        %1596 = vmatprep.mubr.bf16.mxu0 0
        %1597 = vmatmul.mubr.bf16.gmra.mrb[0].mxu0 %v1521
        %v1598 = vpop.f32.mrb[0].mxu0
        %v1599 = vadd.f32 %v1494, %v1598
        %v1600 = vpop.f32.mrb[0].mxu0
        %v1601 = vpop.f32.mrb[0].mxu0
        %v1602 = vadd.f32 %v1494, %v1601
        %v1603 = vpop.f32.mrb[0].mxu0
        %1604 = vmatprep.mubr.bf16.mxu0 0
        %1605 = vmatmul.mubr.bf16.gmra.mrb[0].mxu0 %v1524
        %v1606 = vpop.f32.mrb[0].mxu0
        %v1607 = vadd.f32 %v1494, %v1606
        %v1608 = vpop.f32.mrb[0].mxu0
        %v1609 = vpop.f32.mrb[0].mxu0
        %v1610 = vadd.f32 %v1494, %v1609
        %v1611 = vpop.f32.mrb[0].mxu0
        %1612 = vmatprep.mubr.bf16.mxu0 0
        %1613 = vmatmul.mubr.bf16.gmra.mrb[0].mxu0 %v1527
        %v1614 = vpop.f32.mrb[0].mxu0
        %v1615 = vadd.f32 %v1494, %v1614
        %v1616 = vpop.f32.mrb[0].mxu0
        %v1617 = vpop.f32.mrb[0].mxu0
        %v1618 = vadd.f32 %v1494, %v1617
        %v1619 = vpop.f32.mrb[0].mxu0
        %1620 = vmatprep.mubr.bf16.mxu0 0
        %1621 = vmatmul.mubr.bf16.gmra.mrb[0].mxu0 %v1530
        %v1622 = vpop.f32.mrb[0].mxu0
        %v1623 = vadd.f32 %v1494, %v1622
        %v1624 = vpop.f32.mrb[0].mxu0
        %v1625 = vpop.f32.mrb[0].mxu0
        %v1626 = vadd.f32 %v1494, %v1625
        %v1627 = vpop.f32.mrb[0].mxu0
        %1628 = vdwg.mxu0
        %v1629 = vmax.f32 %v1567, 0.0
        %v1630 = vmax.f32 %v1570, 0.0
        %v1631 = vmax.f32 %v1575, 0.0
        %v1632 = vmax.f32 %v1578, 0.0
        %v1633 = vmax.f32 %v1583, 0.0
        %v1634 = vmax.f32 %v1586, 0.0
        %v1635 = vmax.f32 %v1591, 0.0
        %v1636 = vmax.f32 %v1594, 0.0
        %v1637 = vmax.f32 %v1599, 0.0
        %v1638 = vmax.f32 %v1602, 0.0
        %v1639 = vmax.f32 %v1607, 0.0
        %v1640 = vmax.f32 %v1610, 0.0
        %v1641 = vmax.f32 %v1615, 0.0
        %v1642 = vmax.f32 %v1618, 0.0
        %v1643 = vmax.f32 %v1623, 0.0
        %v1644 = vmax.f32 %v1626, 0.0
        %v1645 = vpack.c.bf16 %v1630, %v1629
        %v1646 = vpack.c.bf16 %v1632, %v1631
        %v1647 = vpack.c.bf16 %v1634, %v1633
        %v1648 = vpack.c.bf16 %v1636, %v1635
        %v1649 = vpack.c.bf16 %v1638, %v1637
        %v1650 = vpack.c.bf16 %v1640, %v1639
        %v1651 = vpack.c.bf16 %v1642, %v1641
        %v1652 = vpack.c.bf16 %v1644, %v1643
        %s1653 = scalar_lea.vmem [#allocation3], 16
        %v1654 = vld [vmem:[%s1653] sm:$0xf]
        %v1655 = vld [vmem:[%s1653 + $0x4] sm:$0xf]
        %v1656 = vld [vmem:[%s1653 + $0x8] sm:$0xf]
        %v1657 = vld [vmem:[%s1653 + $0xc] sm:$0xf]
        %s1658 = scalar_lea.vmem %s9, 1
        %v1659 = vld [vmem:[%s1658] sm:$0x1]
        %v1661 = vlaneseq
        %v1662 = vshrl.u32 %v1661, 7
        %v1663 = vsub.s32 0, %v1662
        %v1664 = vrot.slane %v1659, %v1663
        %v1670 = vunpack.c.l.b16 %v1654
        %v1671 = vunpack.c.l.b16 %v1655
        %v1672 = vunpack.c.l.b16 %v1656
        %v1673 = vunpack.c.l.b16 %v1657
        %v1674 = vpack.c.b16 %v1671, %v1670
        %v1675 = vpack.c.b16 %v1673, %v1672
        %v1679 = vsel %vm783, %v1645, 0
        %v1682 = vsel %vm783, %v1646, 0
        %v1685 = vsel %vm783, %v1647, 0
        %v1688 = vsel %vm783, %v1648, 0
        %v1691 = vsel %vm783, %v1649, 0
        %v1694 = vsel %vm783, %v1650, 0
        %v1697 = vsel %vm783, %v1651, 0
        %v1700 = vsel %vm783, %v1652, 0
        %1702 = vmatprep.subr.bf16.mxu0 0
        %1703 = vmatpush1.bf16.msra.mxu0 %v1674
        %1704 = vmatprep.subr.bf16.mxu0 0
        %1705 = vmatpush1.bf16.msra.mxu0 %v1675
        %1706 = vmatprep.subr.bf16.mxu0 0
        %1707 = vmatpush1.bf16.msra.mxu0 0
        %1708 = vmatprep.subr.bf16.mxu0 0
        %1709 = vmatpush1.bf16.msra.mxu0 0
        %1710 = vmatprep.subr.bf16.mxu0 0
        %1711 = vmatpush1.bf16.msra.mxu0 0
        %1712 = vmatprep.subr.bf16.mxu0 0
        %1713 = vmatpush1.bf16.msra.mxu0 0
        %1714 = vmatprep.subr.bf16.mxu0 0
        %1715 = vmatpush1.bf16.msra.mxu0 0
        %1716 = vmatprep.subr.bf16.mxu0 0
        %1717 = vmatpush1.bf16.msra.mxu0 0
        %1718 = vmatprep.subr.bf16.mxu0 0
        %1719 = vmatpush1.bf16.msra.mxu0 0
        %1720 = vmatprep.subr.bf16.mxu0 0
        %1721 = vmatpush1.bf16.msra.mxu0 0
        %1722 = vmatprep.subr.bf16.mxu0 0
        %1723 = vmatpush1.bf16.msra.mxu0 0
        %1724 = vmatprep.subr.bf16.mxu0 0
        %1725 = vmatpush1.bf16.msra.mxu0 0
        %1726 = vmatprep.subr.bf16.mxu0 0
        %1727 = vmatpush1.bf16.msra.mxu0 0
        %1728 = vmatprep.subr.bf16.mxu0 0
        %1729 = vmatpush1.bf16.msra.mxu0 0
        %1730 = vmatprep.subr.bf16.mxu0 0
        %1731 = vmatpush1.bf16.msra.mxu0 0
        %1732 = vmatprep.subr.bf16.mxu0 0
        %1733 = vmatpush1.bf16.msra.mxu0 0
        %1734 = vmatprep.mubr.bf16.mxu0 0
        %1735 = vmatmul.mubr.bf16.gmra.mrb[0].mxu0 %v1679
        %v1736 = vpop.f32.mrb[0].mxu0
        %v1737 = vadd.f32 %v1664, %v1736
        %v1738 = vpop.f32.mrb[0].mxu0
        %v1739 = vpop.f32.mrb[0].mxu0
        %v1740 = vadd.f32 %v1664, %v1739
        %v1741 = vpop.f32.mrb[0].mxu0
        %1742 = vmatprep.mubr.bf16.mxu0 0
        %1743 = vmatmul.mubr.bf16.gmra.mrb[0].mxu0 %v1682
        %v1744 = vpop.f32.mrb[0].mxu0
        %v1745 = vadd.f32 %v1664, %v1744
        %v1746 = vpop.f32.mrb[0].mxu0
        %v1747 = vpop.f32.mrb[0].mxu0
        %v1748 = vadd.f32 %v1664, %v1747
        %v1749 = vpop.f32.mrb[0].mxu0
        %1750 = vmatprep.mubr.bf16.mxu0 0
        %1751 = vmatmul.mubr.bf16.gmra.mrb[0].mxu0 %v1685
        %v1752 = vpop.f32.mrb[0].mxu0
        %v1753 = vadd.f32 %v1664, %v1752
        %v1754 = vpop.f32.mrb[0].mxu0
        %v1755 = vpop.f32.mrb[0].mxu0
        %v1756 = vadd.f32 %v1664, %v1755
        %v1757 = vpop.f32.mrb[0].mxu0
        %1758 = vmatprep.mubr.bf16.mxu0 0
        %1759 = vmatmul.mubr.bf16.gmra.mrb[0].mxu0 %v1688
        %v1760 = vpop.f32.mrb[0].mxu0
        %v1761 = vadd.f32 %v1664, %v1760
        %v1762 = vpop.f32.mrb[0].mxu0
        %v1763 = vpop.f32.mrb[0].mxu0
        %v1764 = vadd.f32 %v1664, %v1763
        %v1765 = vpop.f32.mrb[0].mxu0
        %1766 = vmatprep.mubr.bf16.mxu0 0
        %1767 = vmatmul.mubr.bf16.gmra.mrb[0].mxu0 %v1691
        %v1768 = vpop.f32.mrb[0].mxu0
        %v1769 = vadd.f32 %v1664, %v1768
        %v1770 = vpop.f32.mrb[0].mxu0
        %v1771 = vpop.f32.mrb[0].mxu0
        %v1772 = vadd.f32 %v1664, %v1771
        %v1773 = vpop.f32.mrb[0].mxu0
        %1774 = vmatprep.mubr.bf16.mxu0 0
        %1775 = vmatmul.mubr.bf16.gmra.mrb[0].mxu0 %v1694
        %v1776 = vpop.f32.mrb[0].mxu0
        %v1777 = vadd.f32 %v1664, %v1776
        %v1778 = vpop.f32.mrb[0].mxu0
        %v1779 = vpop.f32.mrb[0].mxu0
        %v1780 = vadd.f32 %v1664, %v1779
        %v1781 = vpop.f32.mrb[0].mxu0
        %1782 = vmatprep.mubr.bf16.mxu0 0
        %1783 = vmatmul.mubr.bf16.gmra.mrb[0].mxu0 %v1697
        %v1784 = vpop.f32.mrb[0].mxu0
        %v1785 = vadd.f32 %v1664, %v1784
        %v1786 = vpop.f32.mrb[0].mxu0
        %v1787 = vpop.f32.mrb[0].mxu0
        %v1788 = vadd.f32 %v1664, %v1787
        %v1789 = vpop.f32.mrb[0].mxu0
        %1790 = vmatprep.mubr.bf16.mxu0 0
        %1791 = vmatmul.mubr.bf16.gmra.mrb[0].mxu0 %v1700
        %v1792 = vpop.f32.mrb[0].mxu0
        %v1793 = vadd.f32 %v1664, %v1792
        %v1794 = vpop.f32.mrb[0].mxu0
        %v1795 = vpop.f32.mrb[0].mxu0
        %v1796 = vadd.f32 %v1664, %v1795
        %v1797 = vpop.f32.mrb[0].mxu0
        %1798 = vdwg.mxu0
        %v1799 = vadd.f32 %v1737, %v721
        %v1800 = vadd.f32 %v1740, %v724
        %v1801 = vadd.f32 %v1745, %v729
        %v1802 = vadd.f32 %v1748, %v732
        %v1803 = vadd.f32 %v1753, %v737
        %v1804 = vadd.f32 %v1756, %v740
        %v1805 = vadd.f32 %v1761, %v745
        %v1806 = vadd.f32 %v1764, %v748
        %v1807 = vadd.f32 %v1769, %v753
        %v1808 = vadd.f32 %v1772, %v756
        %v1809 = vadd.f32 %v1777, %v761
        %v1810 = vadd.f32 %v1780, %v764
        %v1811 = vadd.f32 %v1785, %v769
        %v1812 = vadd.f32 %v1788, %v772
        %v1813 = vadd.f32 %v1793, %v777
        %v1814 = vadd.f32 %v1796, %v780
        %v1815 = vmax.f32 %v1799, 0.0
        %v1816 = vmax.f32 %v1800, 0.0
        %v1817 = vmax.f32 %v1801, 0.0
        %v1818 = vmax.f32 %v1802, 0.0
        %v1819 = vmax.f32 %v1803, 0.0
        %v1820 = vmax.f32 %v1804, 0.0
        %v1821 = vmax.f32 %v1805, 0.0
        %v1822 = vmax.f32 %v1806, 0.0
        %v1823 = vmax.f32 %v1807, 0.0
        %v1824 = vmax.f32 %v1808, 0.0
        %v1825 = vmax.f32 %v1809, 0.0
        %v1826 = vmax.f32 %v1810, 0.0
        %v1827 = vmax.f32 %v1811, 0.0
        %v1828 = vmax.f32 %v1812, 0.0
        %v1829 = vmax.f32 %v1813, 0.0
        %v1830 = vmax.f32 %v1814, 0.0
        %1847 = vrot.lane.b32.xlu0 %v1815, 64
        %v1848 = vpop.permute.xlu0 %1847
        %1849 = vrot.lane.b32.xlu0 %v1816, 64
        %v1850 = vpop.permute.xlu0 %1849
        %1851 = vrot.lane.b32.xlu0 %v1817, 64
        %v1852 = vpop.permute.xlu0 %1851
        %1853 = vrot.lane.b32.xlu0 %v1818, 64
        %v1854 = vpop.permute.xlu0 %1853
        %1855 = vrot.lane.b32.xlu0 %v1819, 64
        %v1856 = vpop.permute.xlu0 %1855
        %1857 = vrot.lane.b32.xlu0 %v1820, 64
        %v1858 = vpop.permute.xlu0 %1857
        %1859 = vrot.lane.b32.xlu0 %v1821, 64
        %v1860 = vpop.permute.xlu0 %1859
        %1861 = vrot.lane.b32.xlu0 %v1822, 64
        %v1862 = vpop.permute.xlu0 %1861
        %1863 = vrot.lane.b32.xlu0 %v1823, 64
        %v1864 = vpop.permute.xlu0 %1863
        %1865 = vrot.lane.b32.xlu0 %v1824, 64
        %v1866 = vpop.permute.xlu0 %1865
        %1867 = vrot.lane.b32.xlu0 %v1825, 64
        %v1868 = vpop.permute.xlu0 %1867
        %1869 = vrot.lane.b32.xlu0 %v1826, 64
        %v1870 = vpop.permute.xlu0 %1869
        %1871 = vrot.lane.b32.xlu0 %v1827, 64
        %v1872 = vpop.permute.xlu0 %1871
        %1873 = vrot.lane.b32.xlu0 %v1828, 64
        %v1874 = vpop.permute.xlu0 %1873
        %1875 = vrot.lane.b32.xlu0 %v1829, 64
        %v1876 = vpop.permute.xlu0 %1875
        %1877 = vrot.lane.b32.xlu0 %v1830, 64
        %v1878 = vpop.permute.xlu0 %1877
        %vm1895 = vcmask 785920
        %1896 = vst.msk [vmem:[#allocation2] sm:$0xff] %vm1895, %v1848
        %1897 = vst.msk [vmem:[#allocation2 + $0x18] sm:$0xff] %vm1895, %v1850
        %1898 = vst.msk [vmem:[#allocation2 + $0x30] sm:$0xff] %vm1895, %v1852
        %1899 = vst.msk [vmem:[#allocation2 + $0x48] sm:$0xff] %vm1895, %v1854
        %1900 = vst.msk [vmem:[#allocation2 + $0x60] sm:$0xff] %vm1895, %v1856
        %1901 = vst.msk [vmem:[#allocation2 + $0x78] sm:$0xff] %vm1895, %v1858
        %1902 = vst.msk [vmem:[#allocation2 + $0x90] sm:$0xff] %vm1895, %v1860
        %1903 = vst.msk [vmem:[#allocation2 + $0xa8] sm:$0xff] %vm1895, %v1862
        %1904 = vst.msk [vmem:[#allocation2 + $0xc0] sm:$0xff] %vm1895, %v1864
        %1905 = vst.msk [vmem:[#allocation2 + $0xd8] sm:$0xff] %vm1895, %v1866
        %1906 = vst.msk [vmem:[#allocation2 + $0xf0] sm:$0xff] %vm1895, %v1868
        %1907 = vst.msk [vmem:[#allocation2 + $0x108] sm:$0xff] %vm1895, %v1870
        %1908 = vst.msk [vmem:[#allocation2 + $0x120] sm:$0xff] %vm1895, %v1872
        %1909 = vst.msk [vmem:[#allocation2 + $0x138] sm:$0xff] %vm1895, %v1874
        %1910 = vst.msk [vmem:[#allocation2 + $0x150] sm:$0xff] %vm1895, %v1876
        %1911 = vst.msk [vmem:[#allocation2 + $0x168] sm:$0xff] %vm1895, %v1878
        %v1912 = vpack.c.bf16 %v1816, %v1815
        %v1913 = vpack.c.bf16 %v1818, %v1817
        %v1914 = vpack.c.bf16 %v1820, %v1819
        %v1915 = vpack.c.bf16 %v1822, %v1821
        %v1916 = vpack.c.bf16 %v1824, %v1823
        %v1917 = vpack.c.bf16 %v1826, %v1825
        %v1918 = vpack.c.bf16 %v1828, %v1827
        %v1919 = vpack.c.bf16 %v1830, %v1829
        %1920 = vmatprep.subr.bf16.mxu0 0
        %1921 = vmatpush1.bf16.msra.mxu0 %v1912
        %1922 = vmatprep.subr.bf16.mxu0 0
        %1923 = vmatpush1.bf16.msra.mxu0 %v1913
        %1924 = vmatprep.subr.bf16.mxu0 0
        %1925 = vmatpush1.bf16.msra.mxu0 %v1914
        %1926 = vmatprep.subr.bf16.mxu0 0
        %1927 = vmatpush1.bf16.msra.mxu0 %v1915
        %1928 = vmatprep.subr.bf16.mxu0 0
        %1929 = vmatpush1.bf16.msra.mxu0 %v1916
        %1930 = vmatprep.subr.bf16.mxu0 0
        %1931 = vmatpush1.bf16.msra.mxu0 %v1917
        %1932 = vmatprep.subr.bf16.mxu0 0
        %1933 = vmatpush1.bf16.msra.mxu0 %v1918
        %1934 = vmatprep.subr.bf16.mxu0 0
        %1935 = vmatpush1.bf16.msra.mxu0 %v1919
        %1936 = vmatprep.subr.bf16.mxu0 0
        %1937 = vmatpush1.bf16.msra.mxu0 0
        %1938 = vmatprep.subr.bf16.mxu0 0
        %1939 = vmatpush1.bf16.msra.mxu0 0
        %1940 = vmatprep.subr.bf16.mxu0 0
        %1941 = vmatpush1.bf16.msra.mxu0 0
        %1942 = vmatprep.subr.bf16.mxu0 0
        %1943 = vmatpush1.bf16.msra.mxu0 0
        %1944 = vmatprep.subr.bf16.mxu0 0
        %1945 = vmatpush1.bf16.msra.mxu0 0
        %1946 = vmatprep.subr.bf16.mxu0 0
        %1947 = vmatpush1.bf16.msra.mxu0 0
        %1948 = vmatprep.subr.bf16.mxu0 0
        %1949 = vmatpush1.bf16.msra.mxu0 0
        %1950 = vmatprep.subr.bf16.mxu0 0
        %1951 = vmatpush1.bf16.msra.mxu0 0
        %1952 = vmatprep.mubr.bf16.mxu0 0
        %1953 = vmatmul.mubr.bf16.gmra.mrb[0].mxu0 %v840
        %v1954 = vpop.f32.mrb[0].mxu0
        %v1955 = vadd.f32 0.0, %v1954
        %v1956 = vpop.f32.mrb[0].mxu0
        %v1957 = vpop.f32.mrb[0].mxu0
        %v1958 = vadd.f32 0.0, %v1957
        %v1959 = vpop.f32.mrb[0].mxu0
        %1960 = vmatprep.mubr.bf16.mxu0 0
        %1961 = vmatmul.mubr.bf16.gmra.mrb[0].mxu0 %v841
        %v1962 = vpop.f32.mrb[0].mxu0
        %v1963 = vadd.f32 0.0, %v1962
        %v1964 = vpop.f32.mrb[0].mxu0
        %v1965 = vpop.f32.mrb[0].mxu0
        %v1966 = vadd.f32 0.0, %v1965
        %v1967 = vpop.f32.mrb[0].mxu0
        %1968 = vmatprep.mubr.bf16.mxu0 0
        %1969 = vmatmul.mubr.bf16.gmra.mrb[0].mxu0 %v842
        %v1970 = vpop.f32.mrb[0].mxu0
        %v1971 = vadd.f32 0.0, %v1970
        %v1972 = vpop.f32.mrb[0].mxu0
        %v1973 = vpop.f32.mrb[0].mxu0
        %v1974 = vadd.f32 0.0, %v1973
        %v1975 = vpop.f32.mrb[0].mxu0
        %1976 = vmatprep.mubr.bf16.mxu0 0
        %1977 = vmatmul.mubr.bf16.gmra.mrb[0].mxu0 %v843
        %v1978 = vpop.f32.mrb[0].mxu0
        %v1979 = vadd.f32 0.0, %v1978
        %v1980 = vpop.f32.mrb[0].mxu0
        %v1981 = vpop.f32.mrb[0].mxu0
        %v1982 = vadd.f32 0.0, %v1981
        %v1983 = vpop.f32.mrb[0].mxu0
        %1984 = vmatprep.mubr.bf16.mxu0 0
        %1985 = vmatmul.mubr.bf16.gmra.mrb[0].mxu0 %v844
        %v1986 = vpop.f32.mrb[0].mxu0
        %v1987 = vadd.f32 0.0, %v1986
        %v1988 = vpop.f32.mrb[0].mxu0
        %v1989 = vpop.f32.mrb[0].mxu0
        %v1990 = vadd.f32 0.0, %v1989
        %v1991 = vpop.f32.mrb[0].mxu0
        %1992 = vmatprep.mubr.bf16.mxu0 0
        %1993 = vmatmul.mubr.bf16.gmra.mrb[0].mxu0 %v845
        %v1994 = vpop.f32.mrb[0].mxu0
        %v1995 = vadd.f32 0.0, %v1994
        %v1996 = vpop.f32.mrb[0].mxu0
        %v1997 = vpop.f32.mrb[0].mxu0
        %v1998 = vadd.f32 0.0, %v1997
        %v1999 = vpop.f32.mrb[0].mxu0
        %2000 = vmatprep.mubr.bf16.mxu0 0
        %2001 = vmatmul.mubr.bf16.gmra.mrb[0].mxu0 %v846
        %v2002 = vpop.f32.mrb[0].mxu0
        %v2003 = vadd.f32 0.0, %v2002
        %v2004 = vpop.f32.mrb[0].mxu0
        %v2005 = vpop.f32.mrb[0].mxu0
        %v2006 = vadd.f32 0.0, %v2005
        %v2007 = vpop.f32.mrb[0].mxu0
        %2008 = vmatprep.mubr.bf16.mxu0 0
        %2009 = vmatmul.mubr.bf16.gmra.mrb[0].mxu0 %v847
        %v2010 = vpop.f32.mrb[0].mxu0
        %v2011 = vadd.f32 0.0, %v2010
        %v2012 = vpop.f32.mrb[0].mxu0
        %v2013 = vpop.f32.mrb[0].mxu0
        %v2014 = vadd.f32 0.0, %v2013
        %v2015 = vpop.f32.mrb[0].mxu0
        %2016 = vdwg.mxu0
        %v2017 = vpack.c.bf16 %v1958, %v1955
        %v2018 = vpack.c.bf16 %v1966, %v1963
        %v2019 = vpack.c.bf16 %v1974, %v1971
        %v2020 = vpack.c.bf16 %v1982, %v1979
        %v2021 = vpack.c.bf16 %v1990, %v1987
        %v2022 = vpack.c.bf16 %v1998, %v1995
        %v2023 = vpack.c.bf16 %v2006, %v2003
        %v2024 = vpack.c.bf16 %v2014, %v2011
        %s2025 = scalar_lea.vmem %s6, 32
        %v2026 = vld [vmem:[%s2025] sm:$0xf]
        %v2027 = vld [vmem:[%s2025 + $0x4] sm:$0xf]
        %v2028 = vld [vmem:[%s2025 + $0x8] sm:$0xf]
        %v2029 = vld [vmem:[%s2025 + $0xc] sm:$0xf]
        %s2030 = scalar_lea.vmem %s7, 2
        %v2031 = vld [vmem:[%s2030] sm:$0x1]
        %v2033 = vlaneseq
        %v2034 = vshrl.u32 %v2033, 7
        %v2035 = vsub.s32 0, %v2034
        %v2036 = vrot.slane %v2031, %v2035
        %v2042 = vunpack.c.l.b16 %v2026
        %v2043 = vunpack.c.l.b16 %v2027
        %v2044 = vunpack.c.l.b16 %v2028
        %v2045 = vunpack.c.l.b16 %v2029
        %v2046 = vpack.c.b16 %v2043, %v2042
        %v2047 = vpack.c.b16 %v2045, %v2044
        %v2051 = vsel %vm783, %v2017, 0
        %v2054 = vsel %vm783, %v2018, 0
        %v2057 = vsel %vm783, %v2019, 0
        %v2060 = vsel %vm783, %v2020, 0
        %v2063 = vsel %vm783, %v2021, 0
        %v2066 = vsel %vm783, %v2022, 0
        %v2069 = vsel %vm783, %v2023, 0
        %v2072 = vsel %vm783, %v2024, 0
        %2074 = vmatprep.subr.bf16.mxu0 0
        %2075 = vmatpush1.bf16.msra.mxu0 %v2046
        %2076 = vmatprep.subr.bf16.mxu0 0
        %2077 = vmatpush1.bf16.msra.mxu0 %v2047
        %2078 = vmatprep.subr.bf16.mxu0 0
        %2079 = vmatpush1.bf16.msra.mxu0 0
        %2080 = vmatprep.subr.bf16.mxu0 0
        %2081 = vmatpush1.bf16.msra.mxu0 0
        %2082 = vmatprep.subr.bf16.mxu0 0
        %2083 = vmatpush1.bf16.msra.mxu0 0
        %2084 = vmatprep.subr.bf16.mxu0 0
        %2085 = vmatpush1.bf16.msra.mxu0 0
        %2086 = vmatprep.subr.bf16.mxu0 0
        %2087 = vmatpush1.bf16.msra.mxu0 0
        %2088 = vmatprep.subr.bf16.mxu0 0
        %2089 = vmatpush1.bf16.msra.mxu0 0
        %2090 = vmatprep.subr.bf16.mxu0 0
        %2091 = vmatpush1.bf16.msra.mxu0 0
        %2092 = vmatprep.subr.bf16.mxu0 0
        %2093 = vmatpush1.bf16.msra.mxu0 0
        %2094 = vmatprep.subr.bf16.mxu0 0
        %2095 = vmatpush1.bf16.msra.mxu0 0
        %2096 = vmatprep.subr.bf16.mxu0 0
        %2097 = vmatpush1.bf16.msra.mxu0 0
        %2098 = vmatprep.subr.bf16.mxu0 0
        %2099 = vmatpush1.bf16.msra.mxu0 0
        %2100 = vmatprep.subr.bf16.mxu0 0
        %2101 = vmatpush1.bf16.msra.mxu0 0
        %2102 = vmatprep.subr.bf16.mxu0 0
        %2103 = vmatpush1.bf16.msra.mxu0 0
        %2104 = vmatprep.subr.bf16.mxu0 0
        %2105 = vmatpush1.bf16.msra.mxu0 0
        %2106 = vmatprep.mubr.bf16.mxu0 0
        %2107 = vmatmul.mubr.bf16.gmra.mrb[0].mxu0 %v2051
        %v2108 = vpop.f32.mrb[0].mxu0
        %v2109 = vadd.f32 %v2036, %v2108
        %v2110 = vpop.f32.mrb[0].mxu0
        %v2111 = vpop.f32.mrb[0].mxu0
        %v2112 = vadd.f32 %v2036, %v2111
        %v2113 = vpop.f32.mrb[0].mxu0
        %2114 = vmatprep.mubr.bf16.mxu0 0
        %2115 = vmatmul.mubr.bf16.gmra.mrb[0].mxu0 %v2054
        %v2116 = vpop.f32.mrb[0].mxu0
        %v2117 = vadd.f32 %v2036, %v2116
        %v2118 = vpop.f32.mrb[0].mxu0
        %v2119 = vpop.f32.mrb[0].mxu0
        %v2120 = vadd.f32 %v2036, %v2119
        %v2121 = vpop.f32.mrb[0].mxu0
        %2122 = vmatprep.mubr.bf16.mxu0 0
        %2123 = vmatmul.mubr.bf16.gmra.mrb[0].mxu0 %v2057
        %v2124 = vpop.f32.mrb[0].mxu0
        %v2125 = vadd.f32 %v2036, %v2124
        %v2126 = vpop.f32.mrb[0].mxu0
        %v2127 = vpop.f32.mrb[0].mxu0
        %v2128 = vadd.f32 %v2036, %v2127
        %v2129 = vpop.f32.mrb[0].mxu0
        %2130 = vmatprep.mubr.bf16.mxu0 0
        %2131 = vmatmul.mubr.bf16.gmra.mrb[0].mxu0 %v2060
        %v2132 = vpop.f32.mrb[0].mxu0
        %v2133 = vadd.f32 %v2036, %v2132
        %v2134 = vpop.f32.mrb[0].mxu0
        %v2135 = vpop.f32.mrb[0].mxu0
        %v2136 = vadd.f32 %v2036, %v2135
        %v2137 = vpop.f32.mrb[0].mxu0
        %2138 = vmatprep.mubr.bf16.mxu0 0
        %2139 = vmatmul.mubr.bf16.gmra.mrb[0].mxu0 %v2063
        %v2140 = vpop.f32.mrb[0].mxu0
        %v2141 = vadd.f32 %v2036, %v2140
        %v2142 = vpop.f32.mrb[0].mxu0
        %v2143 = vpop.f32.mrb[0].mxu0
        %v2144 = vadd.f32 %v2036, %v2143
        %v2145 = vpop.f32.mrb[0].mxu0
        %2146 = vmatprep.mubr.bf16.mxu0 0
        %2147 = vmatmul.mubr.bf16.gmra.mrb[0].mxu0 %v2066
        %v2148 = vpop.f32.mrb[0].mxu0
        %v2149 = vadd.f32 %v2036, %v2148
        %v2150 = vpop.f32.mrb[0].mxu0
        %v2151 = vpop.f32.mrb[0].mxu0
        %v2152 = vadd.f32 %v2036, %v2151
        %v2153 = vpop.f32.mrb[0].mxu0
        %2154 = vmatprep.mubr.bf16.mxu0 0
        %2155 = vmatmul.mubr.bf16.gmra.mrb[0].mxu0 %v2069
        %v2156 = vpop.f32.mrb[0].mxu0
        %v2157 = vadd.f32 %v2036, %v2156
        %v2158 = vpop.f32.mrb[0].mxu0
        %v2159 = vpop.f32.mrb[0].mxu0
        %v2160 = vadd.f32 %v2036, %v2159
        %v2161 = vpop.f32.mrb[0].mxu0
        %2162 = vmatprep.mubr.bf16.mxu0 0
        %2163 = vmatmul.mubr.bf16.gmra.mrb[0].mxu0 %v2072
        %v2164 = vpop.f32.mrb[0].mxu0
        %v2165 = vadd.f32 %v2036, %v2164
        %v2166 = vpop.f32.mrb[0].mxu0
        %v2167 = vpop.f32.mrb[0].mxu0
        %v2168 = vadd.f32 %v2036, %v2167
        %v2169 = vpop.f32.mrb[0].mxu0
        %2170 = vdwg.mxu0
        %v2171 = vmax.f32 %v2109, 0.0
        %v2172 = vmax.f32 %v2112, 0.0
        %v2173 = vmax.f32 %v2117, 0.0
        %v2174 = vmax.f32 %v2120, 0.0
        %v2175 = vmax.f32 %v2125, 0.0
        %v2176 = vmax.f32 %v2128, 0.0
        %v2177 = vmax.f32 %v2133, 0.0
        %v2178 = vmax.f32 %v2136, 0.0
        %v2179 = vmax.f32 %v2141, 0.0
        %v2180 = vmax.f32 %v2144, 0.0
        %v2181 = vmax.f32 %v2149, 0.0
        %v2182 = vmax.f32 %v2152, 0.0
        %v2183 = vmax.f32 %v2157, 0.0
        %v2184 = vmax.f32 %v2160, 0.0
        %v2185 = vmax.f32 %v2165, 0.0
        %v2186 = vmax.f32 %v2168, 0.0
        %v2187 = vpack.c.bf16 %v2172, %v2171
        %v2188 = vpack.c.bf16 %v2174, %v2173
        %v2189 = vpack.c.bf16 %v2176, %v2175
        %v2190 = vpack.c.bf16 %v2178, %v2177
        %v2191 = vpack.c.bf16 %v2180, %v2179
        %v2192 = vpack.c.bf16 %v2182, %v2181
        %v2193 = vpack.c.bf16 %v2184, %v2183
        %v2194 = vpack.c.bf16 %v2186, %v2185
        %s2195 = scalar_lea.vmem [#allocation3], 32
        %v2196 = vld [vmem:[%s2195] sm:$0xf]
        %v2197 = vld [vmem:[%s2195 + $0x4] sm:$0xf]
        %v2198 = vld [vmem:[%s2195 + $0x8] sm:$0xf]
        %v2199 = vld [vmem:[%s2195 + $0xc] sm:$0xf]
        %s2200 = scalar_lea.vmem %s9, 2
        %v2201 = vld [vmem:[%s2200] sm:$0x1]
        %v2203 = vlaneseq
        %v2204 = vshrl.u32 %v2203, 7
        %v2205 = vsub.s32 0, %v2204
        %v2206 = vrot.slane %v2201, %v2205
        %v2212 = vunpack.c.l.b16 %v2196
        %v2213 = vunpack.c.l.b16 %v2197
        %v2214 = vunpack.c.l.b16 %v2198
        %v2215 = vunpack.c.l.b16 %v2199
        %v2216 = vpack.c.b16 %v2213, %v2212
        %v2217 = vpack.c.b16 %v2215, %v2214
        %v2221 = vsel %vm783, %v2187, 0
        %v2224 = vsel %vm783, %v2188, 0
        %v2227 = vsel %vm783, %v2189, 0
        %v2230 = vsel %vm783, %v2190, 0
        %v2233 = vsel %vm783, %v2191, 0
        %v2236 = vsel %vm783, %v2192, 0
        %v2239 = vsel %vm783, %v2193, 0
        %v2242 = vsel %vm783, %v2194, 0
        %2244 = vmatprep.subr.bf16.mxu0 0
        %2245 = vmatpush1.bf16.msra.mxu0 %v2216
        %2246 = vmatprep.subr.bf16.mxu0 0
        %2247 = vmatpush1.bf16.msra.mxu0 %v2217
        %2248 = vmatprep.subr.bf16.mxu0 0
        %2249 = vmatpush1.bf16.msra.mxu0 0
        %2250 = vmatprep.subr.bf16.mxu0 0
        %2251 = vmatpush1.bf16.msra.mxu0 0
        %2252 = vmatprep.subr.bf16.mxu0 0
        %2253 = vmatpush1.bf16.msra.mxu0 0
        %2254 = vmatprep.subr.bf16.mxu0 0
        %2255 = vmatpush1.bf16.msra.mxu0 0
        %2256 = vmatprep.subr.bf16.mxu0 0
        %2257 = vmatpush1.bf16.msra.mxu0 0
        %2258 = vmatprep.subr.bf16.mxu0 0
        %2259 = vmatpush1.bf16.msra.mxu0 0
        %2260 = vmatprep.subr.bf16.mxu0 0
        %2261 = vmatpush1.bf16.msra.mxu0 0
        %2262 = vmatprep.subr.bf16.mxu0 0
        %2263 = vmatpush1.bf16.msra.mxu0 0
        %2264 = vmatprep.subr.bf16.mxu0 0
        %2265 = vmatpush1.bf16.msra.mxu0 0
        %2266 = vmatprep.subr.bf16.mxu0 0
        %2267 = vmatpush1.bf16.msra.mxu0 0
        %2268 = vmatprep.subr.bf16.mxu0 0
        %2269 = vmatpush1.bf16.msra.mxu0 0
        %2270 = vmatprep.subr.bf16.mxu0 0
        %2271 = vmatpush1.bf16.msra.mxu0 0
        %2272 = vmatprep.subr.bf16.mxu0 0
        %2273 = vmatpush1.bf16.msra.mxu0 0
        %2274 = vmatprep.subr.bf16.mxu0 0
        %2275 = vmatpush1.bf16.msra.mxu0 0
        %2276 = vmatprep.mubr.bf16.mxu0 0
        %2277 = vmatmul.mubr.bf16.gmra.mrb[0].mxu0 %v2221
        %v2278 = vpop.f32.mrb[0].mxu0
        %v2279 = vadd.f32 %v2206, %v2278
        %v2280 = vpop.f32.mrb[0].mxu0
        %v2281 = vpop.f32.mrb[0].mxu0
        %v2282 = vadd.f32 %v2206, %v2281
        %v2283 = vpop.f32.mrb[0].mxu0
        %2284 = vmatprep.mubr.bf16.mxu0 0
        %2285 = vmatmul.mubr.bf16.gmra.mrb[0].mxu0 %v2224
        %v2286 = vpop.f32.mrb[0].mxu0
        %v2287 = vadd.f32 %v2206, %v2286
        %v2288 = vpop.f32.mrb[0].mxu0
        %v2289 = vpop.f32.mrb[0].mxu0
        %v2290 = vadd.f32 %v2206, %v2289
        %v2291 = vpop.f32.mrb[0].mxu0
        %2292 = vmatprep.mubr.bf16.mxu0 0
        %2293 = vmatmul.mubr.bf16.gmra.mrb[0].mxu0 %v2227
        %v2294 = vpop.f32.mrb[0].mxu0
        %v2295 = vadd.f32 %v2206, %v2294
        %v2296 = vpop.f32.mrb[0].mxu0
        %v2297 = vpop.f32.mrb[0].mxu0
        %v2298 = vadd.f32 %v2206, %v2297
        %v2299 = vpop.f32.mrb[0].mxu0
        %2300 = vmatprep.mubr.bf16.mxu0 0
        %2301 = vmatmul.mubr.bf16.gmra.mrb[0].mxu0 %v2230
        %v2302 = vpop.f32.mrb[0].mxu0
        %v2303 = vadd.f32 %v2206, %v2302
        %v2304 = vpop.f32.mrb[0].mxu0
        %v2305 = vpop.f32.mrb[0].mxu0
        %v2306 = vadd.f32 %v2206, %v2305
        %v2307 = vpop.f32.mrb[0].mxu0
        %2308 = vmatprep.mubr.bf16.mxu0 0
        %2309 = vmatmul.mubr.bf16.gmra.mrb[0].mxu0 %v2233
        %v2310 = vpop.f32.mrb[0].mxu0
        %v2311 = vadd.f32 %v2206, %v2310
        %v2312 = vpop.f32.mrb[0].mxu0
        %v2313 = vpop.f32.mrb[0].mxu0
        %v2314 = vadd.f32 %v2206, %v2313
        %v2315 = vpop.f32.mrb[0].mxu0
        %2316 = vmatprep.mubr.bf16.mxu0 0
        %2317 = vmatmul.mubr.bf16.gmra.mrb[0].mxu0 %v2236
        %v2318 = vpop.f32.mrb[0].mxu0
        %v2319 = vadd.f32 %v2206, %v2318
        %v2320 = vpop.f32.mrb[0].mxu0
        %v2321 = vpop.f32.mrb[0].mxu0
        %v2322 = vadd.f32 %v2206, %v2321
        %v2323 = vpop.f32.mrb[0].mxu0
        %2324 = vmatprep.mubr.bf16.mxu0 0
        %2325 = vmatmul.mubr.bf16.gmra.mrb[0].mxu0 %v2239
        %v2326 = vpop.f32.mrb[0].mxu0
        %v2327 = vadd.f32 %v2206, %v2326
        %v2328 = vpop.f32.mrb[0].mxu0
        %v2329 = vpop.f32.mrb[0].mxu0
        %v2330 = vadd.f32 %v2206, %v2329
        %v2331 = vpop.f32.mrb[0].mxu0
        %2332 = vmatprep.mubr.bf16.mxu0 0
        %2333 = vmatmul.mubr.bf16.gmra.mrb[0].mxu0 %v2242
        %v2334 = vpop.f32.mrb[0].mxu0
        %v2335 = vadd.f32 %v2206, %v2334
        %v2336 = vpop.f32.mrb[0].mxu0
        %v2337 = vpop.f32.mrb[0].mxu0
        %v2338 = vadd.f32 %v2206, %v2337
        %v2339 = vpop.f32.mrb[0].mxu0
        %2340 = vdwg.mxu0
        %v2341 = vmax.f32 %v2279, 0.0
        %v2342 = vmax.f32 %v2282, 0.0
        %v2343 = vmax.f32 %v2287, 0.0
        %v2344 = vmax.f32 %v2290, 0.0
        %v2345 = vmax.f32 %v2295, 0.0
        %v2346 = vmax.f32 %v2298, 0.0
        %v2347 = vmax.f32 %v2303, 0.0
        %v2348 = vmax.f32 %v2306, 0.0
        %v2349 = vmax.f32 %v2311, 0.0
        %v2350 = vmax.f32 %v2314, 0.0
        %v2351 = vmax.f32 %v2319, 0.0
        %v2352 = vmax.f32 %v2322, 0.0
        %v2353 = vmax.f32 %v2327, 0.0
        %v2354 = vmax.f32 %v2330, 0.0
        %v2355 = vmax.f32 %v2335, 0.0
        %v2356 = vmax.f32 %v2338, 0.0
        %2373 = vrot.lane.b32.xlu0 %v2341, 96
        %v2374 = vpop.permute.xlu0 %2373
        %2375 = vrot.lane.b32.xlu0 %v2342, 96
        %v2376 = vpop.permute.xlu0 %2375
        %2377 = vrot.lane.b32.xlu0 %v2343, 96
        %v2378 = vpop.permute.xlu0 %2377
        %2379 = vrot.lane.b32.xlu0 %v2344, 96
        %v2380 = vpop.permute.xlu0 %2379
        %2381 = vrot.lane.b32.xlu0 %v2345, 96
        %v2382 = vpop.permute.xlu0 %2381
        %2383 = vrot.lane.b32.xlu0 %v2346, 96
        %v2384 = vpop.permute.xlu0 %2383
        %2385 = vrot.lane.b32.xlu0 %v2347, 96
        %v2386 = vpop.permute.xlu0 %2385
        %2387 = vrot.lane.b32.xlu0 %v2348, 96
        %v2388 = vpop.permute.xlu0 %2387
        %2389 = vrot.lane.b32.xlu0 %v2349, 96
        %v2390 = vpop.permute.xlu0 %2389
        %2391 = vrot.lane.b32.xlu0 %v2350, 96
        %v2392 = vpop.permute.xlu0 %2391
        %2393 = vrot.lane.b32.xlu0 %v2351, 96
        %v2394 = vpop.permute.xlu0 %2393
        %2395 = vrot.lane.b32.xlu0 %v2352, 96
        %v2396 = vpop.permute.xlu0 %2395
        %2397 = vrot.lane.b32.xlu0 %v2353, 96
        %v2398 = vpop.permute.xlu0 %2397
        %2399 = vrot.lane.b32.xlu0 %v2354, 96
        %v2400 = vpop.permute.xlu0 %2399
        %2401 = vrot.lane.b32.xlu0 %v2355, 96
        %v2402 = vpop.permute.xlu0 %2401
        %2403 = vrot.lane.b32.xlu0 %v2356, 96
        %v2404 = vpop.permute.xlu0 %2403
        %vm2421 = vcmask 1048320
        %2422 = vst.msk [vmem:[#allocation2] sm:$0xff] %vm2421, %v2374
        %2423 = vst.msk [vmem:[#allocation2 + $0x18] sm:$0xff] %vm2421, %v2376
        %2424 = vst.msk [vmem:[#allocation2 + $0x30] sm:$0xff] %vm2421, %v2378
        %2425 = vst.msk [vmem:[#allocation2 + $0x48] sm:$0xff] %vm2421, %v2380
        %2426 = vst.msk [vmem:[#allocation2 + $0x60] sm:$0xff] %vm2421, %v2382
        %2427 = vst.msk [vmem:[#allocation2 + $0x78] sm:$0xff] %vm2421, %v2384
        %2428 = vst.msk [vmem:[#allocation2 + $0x90] sm:$0xff] %vm2421, %v2386
        %2429 = vst.msk [vmem:[#allocation2 + $0xa8] sm:$0xff] %vm2421, %v2388
        %2430 = vst.msk [vmem:[#allocation2 + $0xc0] sm:$0xff] %vm2421, %v2390
        %2431 = vst.msk [vmem:[#allocation2 + $0xd8] sm:$0xff] %vm2421, %v2392
        %2432 = vst.msk [vmem:[#allocation2 + $0xf0] sm:$0xff] %vm2421, %v2394
        %2433 = vst.msk [vmem:[#allocation2 + $0x108] sm:$0xff] %vm2421, %v2396
        %2434 = vst.msk [vmem:[#allocation2 + $0x120] sm:$0xff] %vm2421, %v2398
        %2435 = vst.msk [vmem:[#allocation2 + $0x138] sm:$0xff] %vm2421, %v2400
        %2436 = vst.msk [vmem:[#allocation2 + $0x150] sm:$0xff] %vm2421, %v2402
        %2437 = vst.msk [vmem:[#allocation2 + $0x168] sm:$0xff] %vm2421, %v2404
        %v2438 = vpack.c.bf16 %v2342, %v2341
        %v2439 = vpack.c.bf16 %v2344, %v2343
        %v2440 = vpack.c.bf16 %v2346, %v2345
        %v2441 = vpack.c.bf16 %v2348, %v2347
        %v2442 = vpack.c.bf16 %v2350, %v2349
        %v2443 = vpack.c.bf16 %v2352, %v2351
        %v2444 = vpack.c.bf16 %v2354, %v2353
        %v2445 = vpack.c.bf16 %v2356, %v2355
        %2446 = vmatprep.subr.bf16.mxu0 0
        %2447 = vmatpush1.bf16.msra.mxu0 %v2438
        %2448 = vmatprep.subr.bf16.mxu0 0
        %2449 = vmatpush1.bf16.msra.mxu0 %v2439
        %2450 = vmatprep.subr.bf16.mxu0 0
        %2451 = vmatpush1.bf16.msra.mxu0 %v2440
        %2452 = vmatprep.subr.bf16.mxu0 0
        %2453 = vmatpush1.bf16.msra.mxu0 %v2441
        %2454 = vmatprep.subr.bf16.mxu0 0
        %2455 = vmatpush1.bf16.msra.mxu0 %v2442
        %2456 = vmatprep.subr.bf16.mxu0 0
        %2457 = vmatpush1.bf16.msra.mxu0 %v2443
        %2458 = vmatprep.subr.bf16.mxu0 0
        %2459 = vmatpush1.bf16.msra.mxu0 %v2444
        %2460 = vmatprep.subr.bf16.mxu0 0
        %2461 = vmatpush1.bf16.msra.mxu0 %v2445
        %2462 = vmatprep.subr.bf16.mxu0 0
        %2463 = vmatpush1.bf16.msra.mxu0 0
        %2464 = vmatprep.subr.bf16.mxu0 0
        %2465 = vmatpush1.bf16.msra.mxu0 0
        %2466 = vmatprep.subr.bf16.mxu0 0
        %2467 = vmatpush1.bf16.msra.mxu0 0
        %2468 = vmatprep.subr.bf16.mxu0 0
        %2469 = vmatpush1.bf16.msra.mxu0 0
        %2470 = vmatprep.subr.bf16.mxu0 0
        %2471 = vmatpush1.bf16.msra.mxu0 0
        %2472 = vmatprep.subr.bf16.mxu0 0
        %2473 = vmatpush1.bf16.msra.mxu0 0
        %2474 = vmatprep.subr.bf16.mxu0 0
        %2475 = vmatpush1.bf16.msra.mxu0 0
        %2476 = vmatprep.subr.bf16.mxu0 0
        %2477 = vmatpush1.bf16.msra.mxu0 0
        %2478 = vmatprep.mubr.bf16.mxu0 0
        %2479 = vmatmul.mubr.bf16.gmra.mrb[0].mxu0 %v840
        %v2480 = vpop.f32.mrb[0].mxu0
        %v2481 = vadd.f32 0.0, %v2480
        %v2482 = vpop.f32.mrb[0].mxu0
        %v2483 = vpop.f32.mrb[0].mxu0
        %v2484 = vadd.f32 0.0, %v2483
        %v2485 = vpop.f32.mrb[0].mxu0
        %2486 = vmatprep.mubr.bf16.mxu0 0
        %2487 = vmatmul.mubr.bf16.gmra.mrb[0].mxu0 %v841
        %v2488 = vpop.f32.mrb[0].mxu0
        %v2489 = vadd.f32 0.0, %v2488
        %v2490 = vpop.f32.mrb[0].mxu0
        %v2491 = vpop.f32.mrb[0].mxu0
        %v2492 = vadd.f32 0.0, %v2491
        %v2493 = vpop.f32.mrb[0].mxu0
        %2494 = vmatprep.mubr.bf16.mxu0 0
        %2495 = vmatmul.mubr.bf16.gmra.mrb[0].mxu0 %v842
        %v2496 = vpop.f32.mrb[0].mxu0
        %v2497 = vadd.f32 0.0, %v2496
        %v2498 = vpop.f32.mrb[0].mxu0
        %v2499 = vpop.f32.mrb[0].mxu0
        %v2500 = vadd.f32 0.0, %v2499
        %v2501 = vpop.f32.mrb[0].mxu0
        %2502 = vmatprep.mubr.bf16.mxu0 0
        %2503 = vmatmul.mubr.bf16.gmra.mrb[0].mxu0 %v843
        %v2504 = vpop.f32.mrb[0].mxu0
        %v2505 = vadd.f32 0.0, %v2504
        %v2506 = vpop.f32.mrb[0].mxu0
        %v2507 = vpop.f32.mrb[0].mxu0
        %v2508 = vadd.f32 0.0, %v2507
        %v2509 = vpop.f32.mrb[0].mxu0
        %2510 = vmatprep.mubr.bf16.mxu0 0
        %2511 = vmatmul.mubr.bf16.gmra.mrb[0].mxu0 %v844
        %v2512 = vpop.f32.mrb[0].mxu0
        %v2513 = vadd.f32 0.0, %v2512
        %v2514 = vpop.f32.mrb[0].mxu0
        %v2515 = vpop.f32.mrb[0].mxu0
        %v2516 = vadd.f32 0.0, %v2515
        %v2517 = vpop.f32.mrb[0].mxu0
        %2518 = vmatprep.mubr.bf16.mxu0 0
        %2519 = vmatmul.mubr.bf16.gmra.mrb[0].mxu0 %v845
        %v2520 = vpop.f32.mrb[0].mxu0
        %v2521 = vadd.f32 0.0, %v2520
        %v2522 = vpop.f32.mrb[0].mxu0
        %v2523 = vpop.f32.mrb[0].mxu0
        %v2524 = vadd.f32 0.0, %v2523
        %v2525 = vpop.f32.mrb[0].mxu0
        %2526 = vmatprep.mubr.bf16.mxu0 0
        %2527 = vmatmul.mubr.bf16.gmra.mrb[0].mxu0 %v846
        %v2528 = vpop.f32.mrb[0].mxu0
        %v2529 = vadd.f32 0.0, %v2528
        %v2530 = vpop.f32.mrb[0].mxu0
        %v2531 = vpop.f32.mrb[0].mxu0
        %v2532 = vadd.f32 0.0, %v2531
        %v2533 = vpop.f32.mrb[0].mxu0
        %2534 = vmatprep.mubr.bf16.mxu0 0
        %2535 = vmatmul.mubr.bf16.gmra.mrb[0].mxu0 %v847
        %v2536 = vpop.f32.mrb[0].mxu0
        %v2537 = vadd.f32 0.0, %v2536
        %v2538 = vpop.f32.mrb[0].mxu0
        %v2539 = vpop.f32.mrb[0].mxu0
        %v2540 = vadd.f32 0.0, %v2539
        %v2541 = vpop.f32.mrb[0].mxu0
        %2542 = vdwg.mxu0
        %v2543 = vpack.c.bf16 %v2484, %v2481
        %v2544 = vpack.c.bf16 %v2492, %v2489
        %v2545 = vpack.c.bf16 %v2500, %v2497
        %v2546 = vpack.c.bf16 %v2508, %v2505
        %v2547 = vpack.c.bf16 %v2516, %v2513
        %v2548 = vpack.c.bf16 %v2524, %v2521
        %v2549 = vpack.c.bf16 %v2532, %v2529
        %v2550 = vpack.c.bf16 %v2540, %v2537
        %s2551 = scalar_lea.vmem %s6, 48
        %v2552 = vld [vmem:[%s2551] sm:$0xf]
        %v2553 = vld [vmem:[%s2551 + $0x4] sm:$0xf]
        %v2554 = vld [vmem:[%s2551 + $0x8] sm:$0xf]
        %v2555 = vld [vmem:[%s2551 + $0xc] sm:$0xf]
        %s2556 = scalar_lea.vmem %s7, 3
        %v2557 = vld [vmem:[%s2556] sm:$0x1]
        %v2559 = vlaneseq
        %v2560 = vshrl.u32 %v2559, 7
        %v2561 = vsub.s32 0, %v2560
        %v2562 = vrot.slane %v2557, %v2561
        %v2568 = vunpack.c.l.b16 %v2552
        %v2569 = vunpack.c.l.b16 %v2553
        %v2570 = vunpack.c.l.b16 %v2554
        %v2571 = vunpack.c.l.b16 %v2555
        %v2572 = vpack.c.b16 %v2569, %v2568
        %v2573 = vpack.c.b16 %v2571, %v2570
        %v2577 = vsel %vm783, %v2543, 0
        %v2580 = vsel %vm783, %v2544, 0
        %v2583 = vsel %vm783, %v2545, 0
        %v2586 = vsel %vm783, %v2546, 0
        %v2589 = vsel %vm783, %v2547, 0
        %v2592 = vsel %vm783, %v2548, 0
        %v2595 = vsel %vm783, %v2549, 0
        %v2598 = vsel %vm783, %v2550, 0
        %2600 = vmatprep.subr.bf16.mxu0 0
        %2601 = vmatpush1.bf16.msra.mxu0 %v2572
        %2602 = vmatprep.subr.bf16.mxu0 0
        %2603 = vmatpush1.bf16.msra.mxu0 %v2573
        %2604 = vmatprep.subr.bf16.mxu0 0
        %2605 = vmatpush1.bf16.msra.mxu0 0
        %2606 = vmatprep.subr.bf16.mxu0 0
        %2607 = vmatpush1.bf16.msra.mxu0 0
        %2608 = vmatprep.subr.bf16.mxu0 0
        %2609 = vmatpush1.bf16.msra.mxu0 0
        %2610 = vmatprep.subr.bf16.mxu0 0
        %2611 = vmatpush1.bf16.msra.mxu0 0
        %2612 = vmatprep.subr.bf16.mxu0 0
        %2613 = vmatpush1.bf16.msra.mxu0 0
        %2614 = vmatprep.subr.bf16.mxu0 0
        %2615 = vmatpush1.bf16.msra.mxu0 0
        %2616 = vmatprep.subr.bf16.mxu0 0
        %2617 = vmatpush1.bf16.msra.mxu0 0
        %2618 = vmatprep.subr.bf16.mxu0 0
        %2619 = vmatpush1.bf16.msra.mxu0 0
        %2620 = vmatprep.subr.bf16.mxu0 0
        %2621 = vmatpush1.bf16.msra.mxu0 0
        %2622 = vmatprep.subr.bf16.mxu0 0
        %2623 = vmatpush1.bf16.msra.mxu0 0
        %2624 = vmatprep.subr.bf16.mxu0 0
        %2625 = vmatpush1.bf16.msra.mxu0 0
        %2626 = vmatprep.subr.bf16.mxu0 0
        %2627 = vmatpush1.bf16.msra.mxu0 0
        %2628 = vmatprep.subr.bf16.mxu0 0
        %2629 = vmatpush1.bf16.msra.mxu0 0
        %2630 = vmatprep.subr.bf16.mxu0 0
        %2631 = vmatpush1.bf16.msra.mxu0 0
        %2632 = vmatprep.mubr.bf16.mxu0 0
        %2633 = vmatmul.mubr.bf16.gmra.mrb[0].mxu0 %v2577
        %v2634 = vpop.f32.mrb[0].mxu0
        %v2635 = vadd.f32 %v2562, %v2634
        %v2636 = vpop.f32.mrb[0].mxu0
        %v2637 = vpop.f32.mrb[0].mxu0
        %v2638 = vadd.f32 %v2562, %v2637
        %v2639 = vpop.f32.mrb[0].mxu0
        %2640 = vmatprep.mubr.bf16.mxu0 0
        %2641 = vmatmul.mubr.bf16.gmra.mrb[0].mxu0 %v2580
        %v2642 = vpop.f32.mrb[0].mxu0
        %v2643 = vadd.f32 %v2562, %v2642
        %v2644 = vpop.f32.mrb[0].mxu0
        %v2645 = vpop.f32.mrb[0].mxu0
        %v2646 = vadd.f32 %v2562, %v2645
        %v2647 = vpop.f32.mrb[0].mxu0
        %2648 = vmatprep.mubr.bf16.mxu0 0
        %2649 = vmatmul.mubr.bf16.gmra.mrb[0].mxu0 %v2583
        %v2650 = vpop.f32.mrb[0].mxu0
        %v2651 = vadd.f32 %v2562, %v2650
        %v2652 = vpop.f32.mrb[0].mxu0
        %v2653 = vpop.f32.mrb[0].mxu0
        %v2654 = vadd.f32 %v2562, %v2653
        %v2655 = vpop.f32.mrb[0].mxu0
        %2656 = vmatprep.mubr.bf16.mxu0 0
        %2657 = vmatmul.mubr.bf16.gmra.mrb[0].mxu0 %v2586
        %v2658 = vpop.f32.mrb[0].mxu0
        %v2659 = vadd.f32 %v2562, %v2658
        %v2660 = vpop.f32.mrb[0].mxu0
        %v2661 = vpop.f32.mrb[0].mxu0
        %v2662 = vadd.f32 %v2562, %v2661
        %v2663 = vpop.f32.mrb[0].mxu0
        %2664 = vmatprep.mubr.bf16.mxu0 0
        %2665 = vmatmul.mubr.bf16.gmra.mrb[0].mxu0 %v2589
        %v2666 = vpop.f32.mrb[0].mxu0
        %v2667 = vadd.f32 %v2562, %v2666
        %v2668 = vpop.f32.mrb[0].mxu0
        %v2669 = vpop.f32.mrb[0].mxu0
        %v2670 = vadd.f32 %v2562, %v2669
        %v2671 = vpop.f32.mrb[0].mxu0
        %2672 = vmatprep.mubr.bf16.mxu0 0
        %2673 = vmatmul.mubr.bf16.gmra.mrb[0].mxu0 %v2592
        %v2674 = vpop.f32.mrb[0].mxu0
        %v2675 = vadd.f32 %v2562, %v2674
        %v2676 = vpop.f32.mrb[0].mxu0
        %v2677 = vpop.f32.mrb[0].mxu0
        %v2678 = vadd.f32 %v2562, %v2677
        %v2679 = vpop.f32.mrb[0].mxu0
        %2680 = vmatprep.mubr.bf16.mxu0 0
        %2681 = vmatmul.mubr.bf16.gmra.mrb[0].mxu0 %v2595
        %v2682 = vpop.f32.mrb[0].mxu0
        %v2683 = vadd.f32 %v2562, %v2682
        %v2684 = vpop.f32.mrb[0].mxu0
        %v2685 = vpop.f32.mrb[0].mxu0
        %v2686 = vadd.f32 %v2562, %v2685
        %v2687 = vpop.f32.mrb[0].mxu0
        %2688 = vmatprep.mubr.bf16.mxu0 0
        %2689 = vmatmul.mubr.bf16.gmra.mrb[0].mxu0 %v2598
        %v2690 = vpop.f32.mrb[0].mxu0
        %v2691 = vadd.f32 %v2562, %v2690
        %v2692 = vpop.f32.mrb[0].mxu0
        %v2693 = vpop.f32.mrb[0].mxu0
        %v2694 = vadd.f32 %v2562, %v2693
        %v2695 = vpop.f32.mrb[0].mxu0
        %2696 = vdwg.mxu0
        %v2697 = vmax.f32 %v2635, 0.0
        %v2698 = vmax.f32 %v2638, 0.0
        %v2699 = vmax.f32 %v2643, 0.0
        %v2700 = vmax.f32 %v2646, 0.0
        %v2701 = vmax.f32 %v2651, 0.0
        %v2702 = vmax.f32 %v2654, 0.0
        %v2703 = vmax.f32 %v2659, 0.0
        %v2704 = vmax.f32 %v2662, 0.0
        %v2705 = vmax.f32 %v2667, 0.0
        %v2706 = vmax.f32 %v2670, 0.0
        %v2707 = vmax.f32 %v2675, 0.0
        %v2708 = vmax.f32 %v2678, 0.0
        %v2709 = vmax.f32 %v2683, 0.0
        %v2710 = vmax.f32 %v2686, 0.0
        %v2711 = vmax.f32 %v2691, 0.0
        %v2712 = vmax.f32 %v2694, 0.0
        %v2713 = vpack.c.bf16 %v2698, %v2697
        %v2714 = vpack.c.bf16 %v2700, %v2699
        %v2715 = vpack.c.bf16 %v2702, %v2701
        %v2716 = vpack.c.bf16 %v2704, %v2703
        %v2717 = vpack.c.bf16 %v2706, %v2705
        %v2718 = vpack.c.bf16 %v2708, %v2707
        %v2719 = vpack.c.bf16 %v2710, %v2709
        %v2720 = vpack.c.bf16 %v2712, %v2711
        %s2721 = scalar_lea.vmem [#allocation3], 48
        %v2722 = vld [vmem:[%s2721] sm:$0xf]
        %v2723 = vld [vmem:[%s2721 + $0x4] sm:$0xf]
        %v2724 = vld [vmem:[%s2721 + $0x8] sm:$0xf]
        %v2725 = vld [vmem:[%s2721 + $0xc] sm:$0xf]
        %s2726 = scalar_lea.vmem %s9, 3
        %v2727 = vld [vmem:[%s2726] sm:$0x1]
        %v2729 = vlaneseq
        %v2730 = vshrl.u32 %v2729, 7
        %v2731 = vsub.s32 0, %v2730
        %v2732 = vrot.slane %v2727, %v2731
        %v2738 = vunpack.c.l.b16 %v2722
        %v2739 = vunpack.c.l.b16 %v2723
        %v2740 = vunpack.c.l.b16 %v2724
        %v2741 = vunpack.c.l.b16 %v2725
        %v2742 = vpack.c.b16 %v2739, %v2738
        %v2743 = vpack.c.b16 %v2741, %v2740
        %v2747 = vsel %vm783, %v2713, 0
        %v2750 = vsel %vm783, %v2714, 0
        %v2753 = vsel %vm783, %v2715, 0
        %v2756 = vsel %vm783, %v2716, 0
        %v2759 = vsel %vm783, %v2717, 0
        %v2762 = vsel %vm783, %v2718, 0
        %v2765 = vsel %vm783, %v2719, 0
        %v2768 = vsel %vm783, %v2720, 0
        %2770 = vmatprep.subr.bf16.mxu0 0
        %2771 = vmatpush1.bf16.msra.mxu0 %v2742
        %2772 = vmatprep.subr.bf16.mxu0 0
        %2773 = vmatpush1.bf16.msra.mxu0 %v2743
        %2774 = vmatprep.subr.bf16.mxu0 0
        %2775 = vmatpush1.bf16.msra.mxu0 0
        %2776 = vmatprep.subr.bf16.mxu0 0
        %2777 = vmatpush1.bf16.msra.mxu0 0
        %2778 = vmatprep.subr.bf16.mxu0 0
        %2779 = vmatpush1.bf16.msra.mxu0 0
        %2780 = vmatprep.subr.bf16.mxu0 0
        %2781 = vmatpush1.bf16.msra.mxu0 0
        %2782 = vmatprep.subr.bf16.mxu0 0
        %2783 = vmatpush1.bf16.msra.mxu0 0
        %2784 = vmatprep.subr.bf16.mxu0 0
        %2785 = vmatpush1.bf16.msra.mxu0 0
        %2786 = vmatprep.subr.bf16.mxu0 0
        %2787 = vmatpush1.bf16.msra.mxu0 0
        %2788 = vmatprep.subr.bf16.mxu0 0
        %2789 = vmatpush1.bf16.msra.mxu0 0
        %2790 = vmatprep.subr.bf16.mxu0 0
        %2791 = vmatpush1.bf16.msra.mxu0 0
        %2792 = vmatprep.subr.bf16.mxu0 0
        %2793 = vmatpush1.bf16.msra.mxu0 0
        %2794 = vmatprep.subr.bf16.mxu0 0
        %2795 = vmatpush1.bf16.msra.mxu0 0
        %2796 = vmatprep.subr.bf16.mxu0 0
        %2797 = vmatpush1.bf16.msra.mxu0 0
        %2798 = vmatprep.subr.bf16.mxu0 0
        %2799 = vmatpush1.bf16.msra.mxu0 0
        %2800 = vmatprep.subr.bf16.mxu0 0
        %2801 = vmatpush1.bf16.msra.mxu0 0
        %2802 = vmatprep.mubr.bf16.mxu0 0
        %2803 = vmatmul.mubr.bf16.gmra.mrb[0].mxu0 %v2747
        %v2804 = vpop.f32.mrb[0].mxu0
        %v2805 = vadd.f32 %v2732, %v2804
        %v2806 = vpop.f32.mrb[0].mxu0
        %v2807 = vpop.f32.mrb[0].mxu0
        %v2808 = vadd.f32 %v2732, %v2807
        %v2809 = vpop.f32.mrb[0].mxu0
        %2810 = vmatprep.mubr.bf16.mxu0 0
        %2811 = vmatmul.mubr.bf16.gmra.mrb[0].mxu0 %v2750
        %v2812 = vpop.f32.mrb[0].mxu0
        %v2813 = vadd.f32 %v2732, %v2812
        %v2814 = vpop.f32.mrb[0].mxu0
        %v2815 = vpop.f32.mrb[0].mxu0
        %v2816 = vadd.f32 %v2732, %v2815
        %v2817 = vpop.f32.mrb[0].mxu0
        %2818 = vmatprep.mubr.bf16.mxu0 0
        %2819 = vmatmul.mubr.bf16.gmra.mrb[0].mxu0 %v2753
        %v2820 = vpop.f32.mrb[0].mxu0
        %v2821 = vadd.f32 %v2732, %v2820
        %v2822 = vpop.f32.mrb[0].mxu0
        %v2823 = vpop.f32.mrb[0].mxu0
        %v2824 = vadd.f32 %v2732, %v2823
        %v2825 = vpop.f32.mrb[0].mxu0
        %2826 = vmatprep.mubr.bf16.mxu0 0
        %2827 = vmatmul.mubr.bf16.gmra.mrb[0].mxu0 %v2756
        %v2828 = vpop.f32.mrb[0].mxu0
        %v2829 = vadd.f32 %v2732, %v2828
        %v2830 = vpop.f32.mrb[0].mxu0
        %v2831 = vpop.f32.mrb[0].mxu0
        %v2832 = vadd.f32 %v2732, %v2831
        %v2833 = vpop.f32.mrb[0].mxu0
        %2834 = vmatprep.mubr.bf16.mxu0 0
        %2835 = vmatmul.mubr.bf16.gmra.mrb[0].mxu0 %v2759
        %v2836 = vpop.f32.mrb[0].mxu0
        %v2837 = vadd.f32 %v2732, %v2836
        %v2838 = vpop.f32.mrb[0].mxu0
        %v2839 = vpop.f32.mrb[0].mxu0
        %v2840 = vadd.f32 %v2732, %v2839
        %v2841 = vpop.f32.mrb[0].mxu0
        %2842 = vmatprep.mubr.bf16.mxu0 0
        %2843 = vmatmul.mubr.bf16.gmra.mrb[0].mxu0 %v2762
        %v2844 = vpop.f32.mrb[0].mxu0
        %v2845 = vadd.f32 %v2732, %v2844
        %v2846 = vpop.f32.mrb[0].mxu0
        %v2847 = vpop.f32.mrb[0].mxu0
        %v2848 = vadd.f32 %v2732, %v2847
        %v2849 = vpop.f32.mrb[0].mxu0
        %2850 = vmatprep.mubr.bf16.mxu0 0
        %2851 = vmatmul.mubr.bf16.gmra.mrb[0].mxu0 %v2765
        %v2852 = vpop.f32.mrb[0].mxu0
        %v2853 = vadd.f32 %v2732, %v2852
        %v2854 = vpop.f32.mrb[0].mxu0
        %v2855 = vpop.f32.mrb[0].mxu0
        %v2856 = vadd.f32 %v2732, %v2855
        %v2857 = vpop.f32.mrb[0].mxu0
        %2858 = vmatprep.mubr.bf16.mxu0 0
        %2859 = vmatmul.mubr.bf16.gmra.mrb[0].mxu0 %v2768
        %v2860 = vpop.f32.mrb[0].mxu0
        %v2861 = vadd.f32 %v2732, %v2860
        %v2862 = vpop.f32.mrb[0].mxu0
        %v2863 = vpop.f32.mrb[0].mxu0
        %v2864 = vadd.f32 %v2732, %v2863
        %v2865 = vpop.f32.mrb[0].mxu0
        %2866 = vdwg.mxu0
        %v2867 = vadd.f32 %v2805, %v1799
        %v2868 = vadd.f32 %v2808, %v1800
        %v2869 = vadd.f32 %v2813, %v1801
        %v2870 = vadd.f32 %v2816, %v1802
        %v2871 = vadd.f32 %v2821, %v1803
        %v2872 = vadd.f32 %v2824, %v1804
        %v2873 = vadd.f32 %v2829, %v1805
        %v2874 = vadd.f32 %v2832, %v1806
        %v2875 = vadd.f32 %v2837, %v1807
        %v2876 = vadd.f32 %v2840, %v1808
        %v2877 = vadd.f32 %v2845, %v1809
        %v2878 = vadd.f32 %v2848, %v1810
        %v2879 = vadd.f32 %v2853, %v1811
        %v2880 = vadd.f32 %v2856, %v1812
        %v2881 = vadd.f32 %v2861, %v1813
        %v2882 = vadd.f32 %v2864, %v1814
        %v2883 = vmax.f32 %v2867, 0.0
        %v2884 = vmax.f32 %v2868, 0.0
        %v2885 = vmax.f32 %v2869, 0.0
        %v2886 = vmax.f32 %v2870, 0.0
        %v2887 = vmax.f32 %v2871, 0.0
        %v2888 = vmax.f32 %v2872, 0.0
        %v2889 = vmax.f32 %v2873, 0.0
        %v2890 = vmax.f32 %v2874, 0.0
        %v2891 = vmax.f32 %v2875, 0.0
        %v2892 = vmax.f32 %v2876, 0.0
        %v2893 = vmax.f32 %v2877, 0.0
        %v2894 = vmax.f32 %v2878, 0.0
        %v2895 = vmax.f32 %v2879, 0.0
        %v2896 = vmax.f32 %v2880, 0.0
        %v2897 = vmax.f32 %v2881, 0.0
        %v2898 = vmax.f32 %v2882, 0.0
        %2899 = vst.msk [vmem:[#allocation2 + $0x8] sm:$0xff] %vm783, %v2883
        %2900 = vst.msk [vmem:[#allocation2 + $0x20] sm:$0xff] %vm783, %v2884
        %2901 = vst.msk [vmem:[#allocation2 + $0x38] sm:$0xff] %vm783, %v2885
        %2902 = vst.msk [vmem:[#allocation2 + $0x50] sm:$0xff] %vm783, %v2886
        %2903 = vst.msk [vmem:[#allocation2 + $0x68] sm:$0xff] %vm783, %v2887
        %2904 = vst.msk [vmem:[#allocation2 + $0x80] sm:$0xff] %vm783, %v2888
        %2905 = vst.msk [vmem:[#allocation2 + $0x98] sm:$0xff] %vm783, %v2889
        %2906 = vst.msk [vmem:[#allocation2 + $0xb0] sm:$0xff] %vm783, %v2890
        %2907 = vst.msk [vmem:[#allocation2 + $0xc8] sm:$0xff] %vm783, %v2891
        %2908 = vst.msk [vmem:[#allocation2 + $0xe0] sm:$0xff] %vm783, %v2892
        %2909 = vst.msk [vmem:[#allocation2 + $0xf8] sm:$0xff] %vm783, %v2893
        %2910 = vst.msk [vmem:[#allocation2 + $0x110] sm:$0xff] %vm783, %v2894
        %2911 = vst.msk [vmem:[#allocation2 + $0x128] sm:$0xff] %vm783, %v2895
        %2912 = vst.msk [vmem:[#allocation2 + $0x140] sm:$0xff] %vm783, %v2896
        %2913 = vst.msk [vmem:[#allocation2 + $0x158] sm:$0xff] %vm783, %v2897
        %2914 = vst.msk [vmem:[#allocation2 + $0x170] sm:$0xff] %vm783, %v2898
        %v2915 = vpack.c.bf16 %v2884, %v2883
        %v2916 = vpack.c.bf16 %v2886, %v2885
        %v2917 = vpack.c.bf16 %v2888, %v2887
        %v2918 = vpack.c.bf16 %v2890, %v2889
        %v2919 = vpack.c.bf16 %v2892, %v2891
        %v2920 = vpack.c.bf16 %v2894, %v2893
        %v2921 = vpack.c.bf16 %v2896, %v2895
        %v2922 = vpack.c.bf16 %v2898, %v2897
        %2923 = vmatprep.subr.bf16.mxu0 0
        %2924 = vmatpush1.bf16.msra.mxu0 %v2915
        %2925 = vmatprep.subr.bf16.mxu0 0
        %2926 = vmatpush1.bf16.msra.mxu0 %v2916
        %2927 = vmatprep.subr.bf16.mxu0 0
        %2928 = vmatpush1.bf16.msra.mxu0 %v2917
        %2929 = vmatprep.subr.bf16.mxu0 0
        %2930 = vmatpush1.bf16.msra.mxu0 %v2918
        %2931 = vmatprep.subr.bf16.mxu0 0
        %2932 = vmatpush1.bf16.msra.mxu0 %v2919
        %2933 = vmatprep.subr.bf16.mxu0 0
        %2934 = vmatpush1.bf16.msra.mxu0 %v2920
        %2935 = vmatprep.subr.bf16.mxu0 0
        %2936 = vmatpush1.bf16.msra.mxu0 %v2921
        %2937 = vmatprep.subr.bf16.mxu0 0
        %2938 = vmatpush1.bf16.msra.mxu0 %v2922
        %2939 = vmatprep.subr.bf16.mxu0 0
        %2940 = vmatpush1.bf16.msra.mxu0 0
        %2941 = vmatprep.subr.bf16.mxu0 0
        %2942 = vmatpush1.bf16.msra.mxu0 0
        %2943 = vmatprep.subr.bf16.mxu0 0
        %2944 = vmatpush1.bf16.msra.mxu0 0
        %2945 = vmatprep.subr.bf16.mxu0 0
        %2946 = vmatpush1.bf16.msra.mxu0 0
        %2947 = vmatprep.subr.bf16.mxu0 0
        %2948 = vmatpush1.bf16.msra.mxu0 0
        %2949 = vmatprep.subr.bf16.mxu0 0
        %2950 = vmatpush1.bf16.msra.mxu0 0
        %2951 = vmatprep.subr.bf16.mxu0 0
        %2952 = vmatpush1.bf16.msra.mxu0 0
        %2953 = vmatprep.subr.bf16.mxu0 0
        %2954 = vmatpush1.bf16.msra.mxu0 0
        %2955 = vmatprep.mubr.bf16.mxu0 0
        %2956 = vmatmul.mubr.bf16.gmra.mrb[0].mxu0 %v840
        %v2957 = vpop.f32.mrb[0].mxu0
        %v2958 = vadd.f32 0.0, %v2957
        %v2959 = vpop.f32.mrb[0].mxu0
        %v2960 = vpop.f32.mrb[0].mxu0
        %v2961 = vadd.f32 0.0, %v2960
        %v2962 = vpop.f32.mrb[0].mxu0
        %2963 = vmatprep.mubr.bf16.mxu0 0
        %2964 = vmatmul.mubr.bf16.gmra.mrb[0].mxu0 %v841
        %v2965 = vpop.f32.mrb[0].mxu0
        %v2966 = vadd.f32 0.0, %v2965
        %v2967 = vpop.f32.mrb[0].mxu0
        %v2968 = vpop.f32.mrb[0].mxu0
        %v2969 = vadd.f32 0.0, %v2968
        %v2970 = vpop.f32.mrb[0].mxu0
        %2971 = vmatprep.mubr.bf16.mxu0 0
        %2972 = vmatmul.mubr.bf16.gmra.mrb[0].mxu0 %v842
        %v2973 = vpop.f32.mrb[0].mxu0
        %v2974 = vadd.f32 0.0, %v2973
        %v2975 = vpop.f32.mrb[0].mxu0
        %v2976 = vpop.f32.mrb[0].mxu0
        %v2977 = vadd.f32 0.0, %v2976
        %v2978 = vpop.f32.mrb[0].mxu0
        %2979 = vmatprep.mubr.bf16.mxu0 0
        %2980 = vmatmul.mubr.bf16.gmra.mrb[0].mxu0 %v843
        %v2981 = vpop.f32.mrb[0].mxu0
        %v2982 = vadd.f32 0.0, %v2981
        %v2983 = vpop.f32.mrb[0].mxu0
        %v2984 = vpop.f32.mrb[0].mxu0
        %v2985 = vadd.f32 0.0, %v2984
        %v2986 = vpop.f32.mrb[0].mxu0
        %2987 = vmatprep.mubr.bf16.mxu0 0
        %2988 = vmatmul.mubr.bf16.gmra.mrb[0].mxu0 %v844
        %v2989 = vpop.f32.mrb[0].mxu0
        %v2990 = vadd.f32 0.0, %v2989
        %v2991 = vpop.f32.mrb[0].mxu0
        %v2992 = vpop.f32.mrb[0].mxu0
        %v2993 = vadd.f32 0.0, %v2992
        %v2994 = vpop.f32.mrb[0].mxu0
        %2995 = vmatprep.mubr.bf16.mxu0 0
        %2996 = vmatmul.mubr.bf16.gmra.mrb[0].mxu0 %v845
        %v2997 = vpop.f32.mrb[0].mxu0
        %v2998 = vadd.f32 0.0, %v2997
        %v2999 = vpop.f32.mrb[0].mxu0
        %v3000 = vpop.f32.mrb[0].mxu0
        %v3001 = vadd.f32 0.0, %v3000
        %v3002 = vpop.f32.mrb[0].mxu0
        %3003 = vmatprep.mubr.bf16.mxu0 0
        %3004 = vmatmul.mubr.bf16.gmra.mrb[0].mxu0 %v846
        %v3005 = vpop.f32.mrb[0].mxu0
        %v3006 = vadd.f32 0.0, %v3005
        %v3007 = vpop.f32.mrb[0].mxu0
        %v3008 = vpop.f32.mrb[0].mxu0
        %v3009 = vadd.f32 0.0, %v3008
        %v3010 = vpop.f32.mrb[0].mxu0
        %3011 = vmatprep.mubr.bf16.mxu0 0
        %3012 = vmatmul.mubr.bf16.gmra.mrb[0].mxu0 %v847
        %v3013 = vpop.f32.mrb[0].mxu0
        %v3014 = vadd.f32 0.0, %v3013
        %v3015 = vpop.f32.mrb[0].mxu0
        %v3016 = vpop.f32.mrb[0].mxu0
        %v3017 = vadd.f32 0.0, %v3016
        %v3018 = vpop.f32.mrb[0].mxu0
        %3019 = vdwg.mxu0
        %v3020 = vpack.c.bf16 %v2961, %v2958
        %v3021 = vpack.c.bf16 %v2969, %v2966
        %v3022 = vpack.c.bf16 %v2977, %v2974
        %v3023 = vpack.c.bf16 %v2985, %v2982
        %v3024 = vpack.c.bf16 %v2993, %v2990
        %v3025 = vpack.c.bf16 %v3001, %v2998
        %v3026 = vpack.c.bf16 %v3009, %v3006
        %v3027 = vpack.c.bf16 %v3017, %v3014
        %s3028 = scalar_lea.vmem %s6, 64
        %v3029 = vld [vmem:[%s3028] sm:$0xf]
        %v3030 = vld [vmem:[%s3028 + $0x4] sm:$0xf]
        %v3031 = vld [vmem:[%s3028 + $0x8] sm:$0xf]
        %v3032 = vld [vmem:[%s3028 + $0xc] sm:$0xf]
        %s3033 = scalar_lea.vmem %s7, 4
        %v3034 = vld [vmem:[%s3033] sm:$0x1]
        %v3036 = vlaneseq
        %v3037 = vshrl.u32 %v3036, 7
        %v3038 = vsub.s32 0, %v3037
        %v3039 = vrot.slane %v3034, %v3038
        %v3045 = vunpack.c.l.b16 %v3029
        %v3046 = vunpack.c.l.b16 %v3030
        %v3047 = vunpack.c.l.b16 %v3031
        %v3048 = vunpack.c.l.b16 %v3032
        %v3049 = vpack.c.b16 %v3046, %v3045
        %v3050 = vpack.c.b16 %v3048, %v3047
        %v3054 = vsel %vm783, %v3020, 0
        %v3057 = vsel %vm783, %v3021, 0
        %v3060 = vsel %vm783, %v3022, 0
        %v3063 = vsel %vm783, %v3023, 0
        %v3066 = vsel %vm783, %v3024, 0
        %v3069 = vsel %vm783, %v3025, 0
        %v3072 = vsel %vm783, %v3026, 0
        %v3075 = vsel %vm783, %v3027, 0
        %3077 = vmatprep.subr.bf16.mxu0 0
        %3078 = vmatpush1.bf16.msra.mxu0 %v3049
        %3079 = vmatprep.subr.bf16.mxu0 0
        %3080 = vmatpush1.bf16.msra.mxu0 %v3050
        %3081 = vmatprep.subr.bf16.mxu0 0
        %3082 = vmatpush1.bf16.msra.mxu0 0
        %3083 = vmatprep.subr.bf16.mxu0 0
        %3084 = vmatpush1.bf16.msra.mxu0 0
        %3085 = vmatprep.subr.bf16.mxu0 0
        %3086 = vmatpush1.bf16.msra.mxu0 0
        %3087 = vmatprep.subr.bf16.mxu0 0
        %3088 = vmatpush1.bf16.msra.mxu0 0
        %3089 = vmatprep.subr.bf16.mxu0 0
        %3090 = vmatpush1.bf16.msra.mxu0 0
        %3091 = vmatprep.subr.bf16.mxu0 0
        %3092 = vmatpush1.bf16.msra.mxu0 0
        %3093 = vmatprep.subr.bf16.mxu0 0
        %3094 = vmatpush1.bf16.msra.mxu0 0
        %3095 = vmatprep.subr.bf16.mxu0 0
        %3096 = vmatpush1.bf16.msra.mxu0 0
        %3097 = vmatprep.subr.bf16.mxu0 0
        %3098 = vmatpush1.bf16.msra.mxu0 0
        %3099 = vmatprep.subr.bf16.mxu0 0
        %3100 = vmatpush1.bf16.msra.mxu0 0
        %3101 = vmatprep.subr.bf16.mxu0 0
        %3102 = vmatpush1.bf16.msra.mxu0 0
        %3103 = vmatprep.subr.bf16.mxu0 0
        %3104 = vmatpush1.bf16.msra.mxu0 0
        %3105 = vmatprep.subr.bf16.mxu0 0
        %3106 = vmatpush1.bf16.msra.mxu0 0
        %3107 = vmatprep.subr.bf16.mxu0 0
        %3108 = vmatpush1.bf16.msra.mxu0 0
        %3109 = vmatprep.mubr.bf16.mxu0 0
        %3110 = vmatmul.mubr.bf16.gmra.mrb[0].mxu0 %v3054
        %v3111 = vpop.f32.mrb[0].mxu0
        %v3112 = vadd.f32 %v3039, %v3111
        %v3113 = vpop.f32.mrb[0].mxu0
        %v3114 = vpop.f32.mrb[0].mxu0
        %v3115 = vadd.f32 %v3039, %v3114
        %v3116 = vpop.f32.mrb[0].mxu0
        %3117 = vmatprep.mubr.bf16.mxu0 0
        %3118 = vmatmul.mubr.bf16.gmra.mrb[0].mxu0 %v3057
        %v3119 = vpop.f32.mrb[0].mxu0
        %v3120 = vadd.f32 %v3039, %v3119
        %v3121 = vpop.f32.mrb[0].mxu0
        %v3122 = vpop.f32.mrb[0].mxu0
        %v3123 = vadd.f32 %v3039, %v3122
        %v3124 = vpop.f32.mrb[0].mxu0
        %3125 = vmatprep.mubr.bf16.mxu0 0
        %3126 = vmatmul.mubr.bf16.gmra.mrb[0].mxu0 %v3060
        %v3127 = vpop.f32.mrb[0].mxu0
        %v3128 = vadd.f32 %v3039, %v3127
        %v3129 = vpop.f32.mrb[0].mxu0
        %v3130 = vpop.f32.mrb[0].mxu0
        %v3131 = vadd.f32 %v3039, %v3130
        %v3132 = vpop.f32.mrb[0].mxu0
        %3133 = vmatprep.mubr.bf16.mxu0 0
        %3134 = vmatmul.mubr.bf16.gmra.mrb[0].mxu0 %v3063
        %v3135 = vpop.f32.mrb[0].mxu0
        %v3136 = vadd.f32 %v3039, %v3135
        %v3137 = vpop.f32.mrb[0].mxu0
        %v3138 = vpop.f32.mrb[0].mxu0
        %v3139 = vadd.f32 %v3039, %v3138
        %v3140 = vpop.f32.mrb[0].mxu0
        %3141 = vmatprep.mubr.bf16.mxu0 0
        %3142 = vmatmul.mubr.bf16.gmra.mrb[0].mxu0 %v3066
        %v3143 = vpop.f32.mrb[0].mxu0
        %v3144 = vadd.f32 %v3039, %v3143
        %v3145 = vpop.f32.mrb[0].mxu0
        %v3146 = vpop.f32.mrb[0].mxu0
        %v3147 = vadd.f32 %v3039, %v3146
        %v3148 = vpop.f32.mrb[0].mxu0
        %3149 = vmatprep.mubr.bf16.mxu0 0
        %3150 = vmatmul.mubr.bf16.gmra.mrb[0].mxu0 %v3069
        %v3151 = vpop.f32.mrb[0].mxu0
        %v3152 = vadd.f32 %v3039, %v3151
        %v3153 = vpop.f32.mrb[0].mxu0
        %v3154 = vpop.f32.mrb[0].mxu0
        %v3155 = vadd.f32 %v3039, %v3154
        %v3156 = vpop.f32.mrb[0].mxu0
        %3157 = vmatprep.mubr.bf16.mxu0 0
        %3158 = vmatmul.mubr.bf16.gmra.mrb[0].mxu0 %v3072
        %v3159 = vpop.f32.mrb[0].mxu0
        %v3160 = vadd.f32 %v3039, %v3159
        %v3161 = vpop.f32.mrb[0].mxu0
        %v3162 = vpop.f32.mrb[0].mxu0
        %v3163 = vadd.f32 %v3039, %v3162
        %v3164 = vpop.f32.mrb[0].mxu0
        %3165 = vmatprep.mubr.bf16.mxu0 0
        %3166 = vmatmul.mubr.bf16.gmra.mrb[0].mxu0 %v3075
        %v3167 = vpop.f32.mrb[0].mxu0
        %v3168 = vadd.f32 %v3039, %v3167
        %v3169 = vpop.f32.mrb[0].mxu0
        %v3170 = vpop.f32.mrb[0].mxu0
        %v3171 = vadd.f32 %v3039, %v3170
        %v3172 = vpop.f32.mrb[0].mxu0
        %3173 = vdwg.mxu0
        %v3174 = vmax.f32 %v3112, 0.0
        %v3175 = vmax.f32 %v3115, 0.0
        %v3176 = vmax.f32 %v3120, 0.0
        %v3177 = vmax.f32 %v3123, 0.0
        %v3178 = vmax.f32 %v3128, 0.0
        %v3179 = vmax.f32 %v3131, 0.0
        %v3180 = vmax.f32 %v3136, 0.0
        %v3181 = vmax.f32 %v3139, 0.0
        %v3182 = vmax.f32 %v3144, 0.0
        %v3183 = vmax.f32 %v3147, 0.0
        %v3184 = vmax.f32 %v3152, 0.0
        %v3185 = vmax.f32 %v3155, 0.0
        %v3186 = vmax.f32 %v3160, 0.0
        %v3187 = vmax.f32 %v3163, 0.0
        %v3188 = vmax.f32 %v3168, 0.0
        %v3189 = vmax.f32 %v3171, 0.0
        %v3190 = vpack.c.bf16 %v3175, %v3174
        %v3191 = vpack.c.bf16 %v3177, %v3176
        %v3192 = vpack.c.bf16 %v3179, %v3178
        %v3193 = vpack.c.bf16 %v3181, %v3180
        %v3194 = vpack.c.bf16 %v3183, %v3182
        %v3195 = vpack.c.bf16 %v3185, %v3184
        %v3196 = vpack.c.bf16 %v3187, %v3186
        %v3197 = vpack.c.bf16 %v3189, %v3188
        %s3198 = scalar_lea.vmem [#allocation3], 64
        %v3199 = vld [vmem:[%s3198] sm:$0xf]
        %v3200 = vld [vmem:[%s3198 + $0x4] sm:$0xf]
        %v3201 = vld [vmem:[%s3198 + $0x8] sm:$0xf]
        %v3202 = vld [vmem:[%s3198 + $0xc] sm:$0xf]
        %s3203 = scalar_lea.vmem %s9, 4
        %v3204 = vld [vmem:[%s3203] sm:$0x1]
        %v3206 = vlaneseq
        %v3207 = vshrl.u32 %v3206, 7
        %v3208 = vsub.s32 0, %v3207
        %v3209 = vrot.slane %v3204, %v3208
        %v3215 = vunpack.c.l.b16 %v3199
        %v3216 = vunpack.c.l.b16 %v3200
        %v3217 = vunpack.c.l.b16 %v3201
        %v3218 = vunpack.c.l.b16 %v3202
        %v3219 = vpack.c.b16 %v3216, %v3215
        %v3220 = vpack.c.b16 %v3218, %v3217
        %v3224 = vsel %vm783, %v3190, 0
        %v3227 = vsel %vm783, %v3191, 0
        %v3230 = vsel %vm783, %v3192, 0
        %v3233 = vsel %vm783, %v3193, 0
        %v3236 = vsel %vm783, %v3194, 0
        %v3239 = vsel %vm783, %v3195, 0
        %v3242 = vsel %vm783, %v3196, 0
        %v3245 = vsel %vm783, %v3197, 0
        %3247 = vmatprep.subr.bf16.mxu0 0
        %3248 = vmatpush1.bf16.msra.mxu0 %v3219
        %3249 = vmatprep.subr.bf16.mxu0 0
        %3250 = vmatpush1.bf16.msra.mxu0 %v3220
        %3251 = vmatprep.subr.bf16.mxu0 0
        %3252 = vmatpush1.bf16.msra.mxu0 0
        %3253 = vmatprep.subr.bf16.mxu0 0
        %3254 = vmatpush1.bf16.msra.mxu0 0
        %3255 = vmatprep.subr.bf16.mxu0 0
        %3256 = vmatpush1.bf16.msra.mxu0 0
        %3257 = vmatprep.subr.bf16.mxu0 0
        %3258 = vmatpush1.bf16.msra.mxu0 0
        %3259 = vmatprep.subr.bf16.mxu0 0
        %3260 = vmatpush1.bf16.msra.mxu0 0
        %3261 = vmatprep.subr.bf16.mxu0 0
        %3262 = vmatpush1.bf16.msra.mxu0 0
        %3263 = vmatprep.subr.bf16.mxu0 0
        %3264 = vmatpush1.bf16.msra.mxu0 0
        %3265 = vmatprep.subr.bf16.mxu0 0
        %3266 = vmatpush1.bf16.msra.mxu0 0
        %3267 = vmatprep.subr.bf16.mxu0 0
        %3268 = vmatpush1.bf16.msra.mxu0 0
        %3269 = vmatprep.subr.bf16.mxu0 0
        %3270 = vmatpush1.bf16.msra.mxu0 0
        %3271 = vmatprep.subr.bf16.mxu0 0
        %3272 = vmatpush1.bf16.msra.mxu0 0
        %3273 = vmatprep.subr.bf16.mxu0 0
        %3274 = vmatpush1.bf16.msra.mxu0 0
        %3275 = vmatprep.subr.bf16.mxu0 0
        %3276 = vmatpush1.bf16.msra.mxu0 0
        %3277 = vmatprep.subr.bf16.mxu0 0
        %3278 = vmatpush1.bf16.msra.mxu0 0
        %3279 = vmatprep.mubr.bf16.mxu0 0
        %3280 = vmatmul.mubr.bf16.gmra.mrb[0].mxu0 %v3224
        %v3281 = vpop.f32.mrb[0].mxu0
        %v3282 = vadd.f32 %v3209, %v3281
        %v3283 = vpop.f32.mrb[0].mxu0
        %v3284 = vpop.f32.mrb[0].mxu0
        %v3285 = vadd.f32 %v3209, %v3284
        %v3286 = vpop.f32.mrb[0].mxu0
        %3287 = vmatprep.mubr.bf16.mxu0 0
        %3288 = vmatmul.mubr.bf16.gmra.mrb[0].mxu0 %v3227
        %v3289 = vpop.f32.mrb[0].mxu0
        %v3290 = vadd.f32 %v3209, %v3289
        %v3291 = vpop.f32.mrb[0].mxu0
        %v3292 = vpop.f32.mrb[0].mxu0
        %v3293 = vadd.f32 %v3209, %v3292
        %v3294 = vpop.f32.mrb[0].mxu0
        %3295 = vmatprep.mubr.bf16.mxu0 0
        %3296 = vmatmul.mubr.bf16.gmra.mrb[0].mxu0 %v3230
        %v3297 = vpop.f32.mrb[0].mxu0
        %v3298 = vadd.f32 %v3209, %v3297
        %v3299 = vpop.f32.mrb[0].mxu0
        %v3300 = vpop.f32.mrb[0].mxu0
        %v3301 = vadd.f32 %v3209, %v3300
        %v3302 = vpop.f32.mrb[0].mxu0
        %3303 = vmatprep.mubr.bf16.mxu0 0
        %3304 = vmatmul.mubr.bf16.gmra.mrb[0].mxu0 %v3233
        %v3305 = vpop.f32.mrb[0].mxu0
        %v3306 = vadd.f32 %v3209, %v3305
        %v3307 = vpop.f32.mrb[0].mxu0
        %v3308 = vpop.f32.mrb[0].mxu0
        %v3309 = vadd.f32 %v3209, %v3308
        %v3310 = vpop.f32.mrb[0].mxu0
        %3311 = vmatprep.mubr.bf16.mxu0 0
        %3312 = vmatmul.mubr.bf16.gmra.mrb[0].mxu0 %v3236
        %v3313 = vpop.f32.mrb[0].mxu0
        %v3314 = vadd.f32 %v3209, %v3313
        %v3315 = vpop.f32.mrb[0].mxu0
        %v3316 = vpop.f32.mrb[0].mxu0
        %v3317 = vadd.f32 %v3209, %v3316
        %v3318 = vpop.f32.mrb[0].mxu0
        %3319 = vmatprep.mubr.bf16.mxu0 0
        %3320 = vmatmul.mubr.bf16.gmra.mrb[0].mxu0 %v3239
        %v3321 = vpop.f32.mrb[0].mxu0
        %v3322 = vadd.f32 %v3209, %v3321
        %v3323 = vpop.f32.mrb[0].mxu0
        %v3324 = vpop.f32.mrb[0].mxu0
        %v3325 = vadd.f32 %v3209, %v3324
        %v3326 = vpop.f32.mrb[0].mxu0
        %3327 = vmatprep.mubr.bf16.mxu0 0
        %3328 = vmatmul.mubr.bf16.gmra.mrb[0].mxu0 %v3242
        %v3329 = vpop.f32.mrb[0].mxu0
        %v3330 = vadd.f32 %v3209, %v3329
        %v3331 = vpop.f32.mrb[0].mxu0
        %v3332 = vpop.f32.mrb[0].mxu0
        %v3333 = vadd.f32 %v3209, %v3332
        %v3334 = vpop.f32.mrb[0].mxu0
        %3335 = vmatprep.mubr.bf16.mxu0 0
        %3336 = vmatmul.mubr.bf16.gmra.mrb[0].mxu0 %v3245
        %v3337 = vpop.f32.mrb[0].mxu0
        %v3338 = vadd.f32 %v3209, %v3337
        %v3339 = vpop.f32.mrb[0].mxu0
        %v3340 = vpop.f32.mrb[0].mxu0
        %v3341 = vadd.f32 %v3209, %v3340
        %v3342 = vpop.f32.mrb[0].mxu0
        %3343 = vdwg.mxu0
        %v3344 = vmax.f32 %v3282, 0.0
        %v3345 = vmax.f32 %v3285, 0.0
        %v3346 = vmax.f32 %v3290, 0.0
        %v3347 = vmax.f32 %v3293, 0.0
        %v3348 = vmax.f32 %v3298, 0.0
        %v3349 = vmax.f32 %v3301, 0.0
        %v3350 = vmax.f32 %v3306, 0.0
        %v3351 = vmax.f32 %v3309, 0.0
        %v3352 = vmax.f32 %v3314, 0.0
        %v3353 = vmax.f32 %v3317, 0.0
        %v3354 = vmax.f32 %v3322, 0.0
        %v3355 = vmax.f32 %v3325, 0.0
        %v3356 = vmax.f32 %v3330, 0.0
        %v3357 = vmax.f32 %v3333, 0.0
        %v3358 = vmax.f32 %v3338, 0.0
        %v3359 = vmax.f32 %v3341, 0.0
        %3376 = vrot.lane.b32.xlu0 %v3344, 32
        %v3377 = vpop.permute.xlu0 %3376
        %3378 = vrot.lane.b32.xlu0 %v3345, 32
        %v3379 = vpop.permute.xlu0 %3378
        %3380 = vrot.lane.b32.xlu0 %v3346, 32
        %v3381 = vpop.permute.xlu0 %3380
        %3382 = vrot.lane.b32.xlu0 %v3347, 32
        %v3383 = vpop.permute.xlu0 %3382
        %3384 = vrot.lane.b32.xlu0 %v3348, 32
        %v3385 = vpop.permute.xlu0 %3384
        %3386 = vrot.lane.b32.xlu0 %v3349, 32
        %v3387 = vpop.permute.xlu0 %3386
        %3388 = vrot.lane.b32.xlu0 %v3350, 32
        %v3389 = vpop.permute.xlu0 %3388
        %3390 = vrot.lane.b32.xlu0 %v3351, 32
        %v3391 = vpop.permute.xlu0 %3390
        %3392 = vrot.lane.b32.xlu0 %v3352, 32
        %v3393 = vpop.permute.xlu0 %3392
        %3394 = vrot.lane.b32.xlu0 %v3353, 32
        %v3395 = vpop.permute.xlu0 %3394
        %3396 = vrot.lane.b32.xlu0 %v3354, 32
        %v3397 = vpop.permute.xlu0 %3396
        %3398 = vrot.lane.b32.xlu0 %v3355, 32
        %v3399 = vpop.permute.xlu0 %3398
        %3400 = vrot.lane.b32.xlu0 %v3356, 32
        %v3401 = vpop.permute.xlu0 %3400
        %3402 = vrot.lane.b32.xlu0 %v3357, 32
        %v3403 = vpop.permute.xlu0 %3402
        %3404 = vrot.lane.b32.xlu0 %v3358, 32
        %v3405 = vpop.permute.xlu0 %3404
        %3406 = vrot.lane.b32.xlu0 %v3359, 32
        %v3407 = vpop.permute.xlu0 %3406
        %3424 = vst.msk [vmem:[#allocation2 + $0x8] sm:$0xff] %vm1353, %v3377
        %3425 = vst.msk [vmem:[#allocation2 + $0x20] sm:$0xff] %vm1353, %v3379
        %3426 = vst.msk [vmem:[#allocation2 + $0x38] sm:$0xff] %vm1353, %v3381
        %3427 = vst.msk [vmem:[#allocation2 + $0x50] sm:$0xff] %vm1353, %v3383
        %3428 = vst.msk [vmem:[#allocation2 + $0x68] sm:$0xff] %vm1353, %v3385
        %3429 = vst.msk [vmem:[#allocation2 + $0x80] sm:$0xff] %vm1353, %v3387
        %3430 = vst.msk [vmem:[#allocation2 + $0x98] sm:$0xff] %vm1353, %v3389
        %3431 = vst.msk [vmem:[#allocation2 + $0xb0] sm:$0xff] %vm1353, %v3391
        %3432 = vst.msk [vmem:[#allocation2 + $0xc8] sm:$0xff] %vm1353, %v3393
        %3433 = vst.msk [vmem:[#allocation2 + $0xe0] sm:$0xff] %vm1353, %v3395
        %3434 = vst.msk [vmem:[#allocation2 + $0xf8] sm:$0xff] %vm1353, %v3397
        %3435 = vst.msk [vmem:[#allocation2 + $0x110] sm:$0xff] %vm1353, %v3399
        %3436 = vst.msk [vmem:[#allocation2 + $0x128] sm:$0xff] %vm1353, %v3401
        %3437 = vst.msk [vmem:[#allocation2 + $0x140] sm:$0xff] %vm1353, %v3403
        %3438 = vst.msk [vmem:[#allocation2 + $0x158] sm:$0xff] %vm1353, %v3405
        %3439 = vst.msk [vmem:[#allocation2 + $0x170] sm:$0xff] %vm1353, %v3407
        %v3440 = vpack.c.bf16 %v3345, %v3344
        %v3441 = vpack.c.bf16 %v3347, %v3346
        %v3442 = vpack.c.bf16 %v3349, %v3348
        %v3443 = vpack.c.bf16 %v3351, %v3350
        %v3444 = vpack.c.bf16 %v3353, %v3352
        %v3445 = vpack.c.bf16 %v3355, %v3354
        %v3446 = vpack.c.bf16 %v3357, %v3356
        %v3447 = vpack.c.bf16 %v3359, %v3358
        %3448 = vmatprep.subr.bf16.mxu0 0
        %3449 = vmatpush1.bf16.msra.mxu0 %v3440
        %3450 = vmatprep.subr.bf16.mxu0 0
        %3451 = vmatpush1.bf16.msra.mxu0 %v3441
        %3452 = vmatprep.subr.bf16.mxu0 0
        %3453 = vmatpush1.bf16.msra.mxu0 %v3442
        %3454 = vmatprep.subr.bf16.mxu0 0
        %3455 = vmatpush1.bf16.msra.mxu0 %v3443
        %3456 = vmatprep.subr.bf16.mxu0 0
        %3457 = vmatpush1.bf16.msra.mxu0 %v3444
        %3458 = vmatprep.subr.bf16.mxu0 0
        %3459 = vmatpush1.bf16.msra.mxu0 %v3445
        %3460 = vmatprep.subr.bf16.mxu0 0
        %3461 = vmatpush1.bf16.msra.mxu0 %v3446
        %3462 = vmatprep.subr.bf16.mxu0 0
        %3463 = vmatpush1.bf16.msra.mxu0 %v3447
        %3464 = vmatprep.subr.bf16.mxu0 0
        %3465 = vmatpush1.bf16.msra.mxu0 0
        %3466 = vmatprep.subr.bf16.mxu0 0
        %3467 = vmatpush1.bf16.msra.mxu0 0
        %3468 = vmatprep.subr.bf16.mxu0 0
        %3469 = vmatpush1.bf16.msra.mxu0 0
        %3470 = vmatprep.subr.bf16.mxu0 0
        %3471 = vmatpush1.bf16.msra.mxu0 0
        %3472 = vmatprep.subr.bf16.mxu0 0
        %3473 = vmatpush1.bf16.msra.mxu0 0
        %3474 = vmatprep.subr.bf16.mxu0 0
        %3475 = vmatpush1.bf16.msra.mxu0 0
        %3476 = vmatprep.subr.bf16.mxu0 0
        %3477 = vmatpush1.bf16.msra.mxu0 0
        %3478 = vmatprep.subr.bf16.mxu0 0
        %3479 = vmatpush1.bf16.msra.mxu0 0
        %3480 = vmatprep.mubr.bf16.mxu0 0
        %3481 = vmatmul.mubr.bf16.gmra.mrb[0].mxu0 %v840
        %v3482 = vpop.f32.mrb[0].mxu0
        %v3483 = vadd.f32 0.0, %v3482
        %v3484 = vpop.f32.mrb[0].mxu0
        %v3485 = vpop.f32.mrb[0].mxu0
        %v3486 = vadd.f32 0.0, %v3485
        %v3487 = vpop.f32.mrb[0].mxu0
        %3488 = vmatprep.mubr.bf16.mxu0 0
        %3489 = vmatmul.mubr.bf16.gmra.mrb[0].mxu0 %v841
        %v3490 = vpop.f32.mrb[0].mxu0
        %v3491 = vadd.f32 0.0, %v3490
        %v3492 = vpop.f32.mrb[0].mxu0
        %v3493 = vpop.f32.mrb[0].mxu0
        %v3494 = vadd.f32 0.0, %v3493
        %v3495 = vpop.f32.mrb[0].mxu0
        %3496 = vmatprep.mubr.bf16.mxu0 0
        %3497 = vmatmul.mubr.bf16.gmra.mrb[0].mxu0 %v842
        %v3498 = vpop.f32.mrb[0].mxu0
        %v3499 = vadd.f32 0.0, %v3498
        %v3500 = vpop.f32.mrb[0].mxu0
        %v3501 = vpop.f32.mrb[0].mxu0
        %v3502 = vadd.f32 0.0, %v3501
        %v3503 = vpop.f32.mrb[0].mxu0
        %3504 = vmatprep.mubr.bf16.mxu0 0
        %3505 = vmatmul.mubr.bf16.gmra.mrb[0].mxu0 %v843
        %v3506 = vpop.f32.mrb[0].mxu0
        %v3507 = vadd.f32 0.0, %v3506
        %v3508 = vpop.f32.mrb[0].mxu0
        %v3509 = vpop.f32.mrb[0].mxu0
        %v3510 = vadd.f32 0.0, %v3509
        %v3511 = vpop.f32.mrb[0].mxu0
        %3512 = vmatprep.mubr.bf16.mxu0 0
        %3513 = vmatmul.mubr.bf16.gmra.mrb[0].mxu0 %v844
        %v3514 = vpop.f32.mrb[0].mxu0
        %v3515 = vadd.f32 0.0, %v3514
        %v3516 = vpop.f32.mrb[0].mxu0
        %v3517 = vpop.f32.mrb[0].mxu0
        %v3518 = vadd.f32 0.0, %v3517
        %v3519 = vpop.f32.mrb[0].mxu0
        %3520 = vmatprep.mubr.bf16.mxu0 0
        %3521 = vmatmul.mubr.bf16.gmra.mrb[0].mxu0 %v845
        %v3522 = vpop.f32.mrb[0].mxu0
        %v3523 = vadd.f32 0.0, %v3522
        %v3524 = vpop.f32.mrb[0].mxu0
        %v3525 = vpop.f32.mrb[0].mxu0
        %v3526 = vadd.f32 0.0, %v3525
        %v3527 = vpop.f32.mrb[0].mxu0
        %3528 = vmatprep.mubr.bf16.mxu0 0
        %3529 = vmatmul.mubr.bf16.gmra.mrb[0].mxu0 %v846
        %v3530 = vpop.f32.mrb[0].mxu0
        %v3531 = vadd.f32 0.0, %v3530
        %v3532 = vpop.f32.mrb[0].mxu0
        %v3533 = vpop.f32.mrb[0].mxu0
        %v3534 = vadd.f32 0.0, %v3533
        %v3535 = vpop.f32.mrb[0].mxu0
        %3536 = vmatprep.mubr.bf16.mxu0 0
        %3537 = vmatmul.mubr.bf16.gmra.mrb[0].mxu0 %v847
        %v3538 = vpop.f32.mrb[0].mxu0
        %v3539 = vadd.f32 0.0, %v3538
        %v3540 = vpop.f32.mrb[0].mxu0
        %v3541 = vpop.f32.mrb[0].mxu0
        %v3542 = vadd.f32 0.0, %v3541
        %v3543 = vpop.f32.mrb[0].mxu0
        %3544 = vdwg.mxu0
        %v3545 = vpack.c.bf16 %v3486, %v3483
        %v3546 = vpack.c.bf16 %v3494, %v3491
        %v3547 = vpack.c.bf16 %v3502, %v3499
        %v3548 = vpack.c.bf16 %v3510, %v3507
        %v3549 = vpack.c.bf16 %v3518, %v3515
        %v3550 = vpack.c.bf16 %v3526, %v3523
        %v3551 = vpack.c.bf16 %v3534, %v3531
        %v3552 = vpack.c.bf16 %v3542, %v3539
        %s3553 = scalar_lea.vmem %s6, 80
        %v3554 = vld [vmem:[%s3553] sm:$0xf]
        %v3555 = vld [vmem:[%s3553 + $0x4] sm:$0xf]
        %v3556 = vld [vmem:[%s3553 + $0x8] sm:$0xf]
        %v3557 = vld [vmem:[%s3553 + $0xc] sm:$0xf]
        %s3558 = scalar_lea.vmem %s7, 5
        %v3559 = vld [vmem:[%s3558] sm:$0x1]
        %v3561 = vlaneseq
        %v3562 = vshrl.u32 %v3561, 7
        %v3563 = vsub.s32 0, %v3562
        %v3564 = vrot.slane %v3559, %v3563
        %v3570 = vunpack.c.l.b16 %v3554
        %v3571 = vunpack.c.l.b16 %v3555
        %v3572 = vunpack.c.l.b16 %v3556
        %v3573 = vunpack.c.l.b16 %v3557
        %v3574 = vpack.c.b16 %v3571, %v3570
        %v3575 = vpack.c.b16 %v3573, %v3572
        %v3579 = vsel %vm783, %v3545, 0
        %v3582 = vsel %vm783, %v3546, 0
        %v3585 = vsel %vm783, %v3547, 0
        %v3588 = vsel %vm783, %v3548, 0
        %v3591 = vsel %vm783, %v3549, 0
        %v3594 = vsel %vm783, %v3550, 0
        %v3597 = vsel %vm783, %v3551, 0
        %v3600 = vsel %vm783, %v3552, 0
        %3602 = vmatprep.subr.bf16.mxu0 0
        %3603 = vmatpush1.bf16.msra.mxu0 %v3574
        %3604 = vmatprep.subr.bf16.mxu0 0
        %3605 = vmatpush1.bf16.msra.mxu0 %v3575
        %3606 = vmatprep.subr.bf16.mxu0 0
        %3607 = vmatpush1.bf16.msra.mxu0 0
        %3608 = vmatprep.subr.bf16.mxu0 0
        %3609 = vmatpush1.bf16.msra.mxu0 0
        %3610 = vmatprep.subr.bf16.mxu0 0
        %3611 = vmatpush1.bf16.msra.mxu0 0
        %3612 = vmatprep.subr.bf16.mxu0 0
        %3613 = vmatpush1.bf16.msra.mxu0 0
        %3614 = vmatprep.subr.bf16.mxu0 0
        %3615 = vmatpush1.bf16.msra.mxu0 0
        %3616 = vmatprep.subr.bf16.mxu0 0
        %3617 = vmatpush1.bf16.msra.mxu0 0
        %3618 = vmatprep.subr.bf16.mxu0 0
        %3619 = vmatpush1.bf16.msra.mxu0 0
        %3620 = vmatprep.subr.bf16.mxu0 0
        %3621 = vmatpush1.bf16.msra.mxu0 0
        %3622 = vmatprep.subr.bf16.mxu0 0
        %3623 = vmatpush1.bf16.msra.mxu0 0
        %3624 = vmatprep.subr.bf16.mxu0 0
        %3625 = vmatpush1.bf16.msra.mxu0 0
        %3626 = vmatprep.subr.bf16.mxu0 0
        %3627 = vmatpush1.bf16.msra.mxu0 0
        %3628 = vmatprep.subr.bf16.mxu0 0
        %3629 = vmatpush1.bf16.msra.mxu0 0
        %3630 = vmatprep.subr.bf16.mxu0 0
        %3631 = vmatpush1.bf16.msra.mxu0 0
        %3632 = vmatprep.subr.bf16.mxu0 0
        %3633 = vmatpush1.bf16.msra.mxu0 0
        %3634 = vmatprep.mubr.bf16.mxu0 0
        %3635 = vmatmul.mubr.bf16.gmra.mrb[0].mxu0 %v3579
        %v3636 = vpop.f32.mrb[0].mxu0
        %v3637 = vadd.f32 %v3564, %v3636
        %v3638 = vpop.f32.mrb[0].mxu0
        %v3639 = vpop.f32.mrb[0].mxu0
        %v3640 = vadd.f32 %v3564, %v3639
        %v3641 = vpop.f32.mrb[0].mxu0
        %3642 = vmatprep.mubr.bf16.mxu0 0
        %3643 = vmatmul.mubr.bf16.gmra.mrb[0].mxu0 %v3582
        %v3644 = vpop.f32.mrb[0].mxu0
        %v3645 = vadd.f32 %v3564, %v3644
        %v3646 = vpop.f32.mrb[0].mxu0
        %v3647 = vpop.f32.mrb[0].mxu0
        %v3648 = vadd.f32 %v3564, %v3647
        %v3649 = vpop.f32.mrb[0].mxu0
        %3650 = vmatprep.mubr.bf16.mxu0 0
        %3651 = vmatmul.mubr.bf16.gmra.mrb[0].mxu0 %v3585
        %v3652 = vpop.f32.mrb[0].mxu0
        %v3653 = vadd.f32 %v3564, %v3652
        %v3654 = vpop.f32.mrb[0].mxu0
        %v3655 = vpop.f32.mrb[0].mxu0
        %v3656 = vadd.f32 %v3564, %v3655
        %v3657 = vpop.f32.mrb[0].mxu0
        %3658 = vmatprep.mubr.bf16.mxu0 0
        %3659 = vmatmul.mubr.bf16.gmra.mrb[0].mxu0 %v3588
        %v3660 = vpop.f32.mrb[0].mxu0
        %v3661 = vadd.f32 %v3564, %v3660
        %v3662 = vpop.f32.mrb[0].mxu0
        %v3663 = vpop.f32.mrb[0].mxu0
        %v3664 = vadd.f32 %v3564, %v3663
        %v3665 = vpop.f32.mrb[0].mxu0
        %3666 = vmatprep.mubr.bf16.mxu0 0
        %3667 = vmatmul.mubr.bf16.gmra.mrb[0].mxu0 %v3591
        %v3668 = vpop.f32.mrb[0].mxu0
        %v3669 = vadd.f32 %v3564, %v3668
        %v3670 = vpop.f32.mrb[0].mxu0
        %v3671 = vpop.f32.mrb[0].mxu0
        %v3672 = vadd.f32 %v3564, %v3671
        %v3673 = vpop.f32.mrb[0].mxu0
        %3674 = vmatprep.mubr.bf16.mxu0 0
        %3675 = vmatmul.mubr.bf16.gmra.mrb[0].mxu0 %v3594
        %v3676 = vpop.f32.mrb[0].mxu0
        %v3677 = vadd.f32 %v3564, %v3676
        %v3678 = vpop.f32.mrb[0].mxu0
        %v3679 = vpop.f32.mrb[0].mxu0
        %v3680 = vadd.f32 %v3564, %v3679
        %v3681 = vpop.f32.mrb[0].mxu0
        %3682 = vmatprep.mubr.bf16.mxu0 0
        %3683 = vmatmul.mubr.bf16.gmra.mrb[0].mxu0 %v3597
        %v3684 = vpop.f32.mrb[0].mxu0
        %v3685 = vadd.f32 %v3564, %v3684
        %v3686 = vpop.f32.mrb[0].mxu0
        %v3687 = vpop.f32.mrb[0].mxu0
        %v3688 = vadd.f32 %v3564, %v3687
        %v3689 = vpop.f32.mrb[0].mxu0
        %3690 = vmatprep.mubr.bf16.mxu0 0
        %3691 = vmatmul.mubr.bf16.gmra.mrb[0].mxu0 %v3600
        %v3692 = vpop.f32.mrb[0].mxu0
        %v3693 = vadd.f32 %v3564, %v3692
        %v3694 = vpop.f32.mrb[0].mxu0
        %v3695 = vpop.f32.mrb[0].mxu0
        %v3696 = vadd.f32 %v3564, %v3695
        %v3697 = vpop.f32.mrb[0].mxu0
        %3698 = vdwg.mxu0
        %v3699 = vmax.f32 %v3637, 0.0
        %v3700 = vmax.f32 %v3640, 0.0
        %v3701 = vmax.f32 %v3645, 0.0
        %v3702 = vmax.f32 %v3648, 0.0
        %v3703 = vmax.f32 %v3653, 0.0
        %v3704 = vmax.f32 %v3656, 0.0
        %v3705 = vmax.f32 %v3661, 0.0
        %v3706 = vmax.f32 %v3664, 0.0
        %v3707 = vmax.f32 %v3669, 0.0
        %v3708 = vmax.f32 %v3672, 0.0
        %v3709 = vmax.f32 %v3677, 0.0
        %v3710 = vmax.f32 %v3680, 0.0
        %v3711 = vmax.f32 %v3685, 0.0
        %v3712 = vmax.f32 %v3688, 0.0
        %v3713 = vmax.f32 %v3693, 0.0
        %v3714 = vmax.f32 %v3696, 0.0
        %v3715 = vpack.c.bf16 %v3700, %v3699
        %v3716 = vpack.c.bf16 %v3702, %v3701
        %v3717 = vpack.c.bf16 %v3704, %v3703
        %v3718 = vpack.c.bf16 %v3706, %v3705
        %v3719 = vpack.c.bf16 %v3708, %v3707
        %v3720 = vpack.c.bf16 %v3710, %v3709
        %v3721 = vpack.c.bf16 %v3712, %v3711
        %v3722 = vpack.c.bf16 %v3714, %v3713
        %s3723 = scalar_lea.vmem [#allocation3], 80
        %v3724 = vld [vmem:[%s3723] sm:$0xf]
        %v3725 = vld [vmem:[%s3723 + $0x4] sm:$0xf]
        %v3726 = vld [vmem:[%s3723 + $0x8] sm:$0xf]
        %v3727 = vld [vmem:[%s3723 + $0xc] sm:$0xf]
        %s3728 = scalar_lea.vmem %s9, 5
        %v3729 = vld [vmem:[%s3728] sm:$0x1]
        %v3731 = vlaneseq
        %v3732 = vshrl.u32 %v3731, 7
        %v3733 = vsub.s32 0, %v3732
        %v3734 = vrot.slane %v3729, %v3733
        %v3740 = vunpack.c.l.b16 %v3724
        %v3741 = vunpack.c.l.b16 %v3725
        %v3742 = vunpack.c.l.b16 %v3726
        %v3743 = vunpack.c.l.b16 %v3727
        %v3744 = vpack.c.b16 %v3741, %v3740
        %v3745 = vpack.c.b16 %v3743, %v3742
        %v3749 = vsel %vm783, %v3715, 0
        %v3752 = vsel %vm783, %v3716, 0
        %v3755 = vsel %vm783, %v3717, 0
        %v3758 = vsel %vm783, %v3718, 0
        %v3761 = vsel %vm783, %v3719, 0
        %v3764 = vsel %vm783, %v3720, 0
        %v3767 = vsel %vm783, %v3721, 0
        %v3770 = vsel %vm783, %v3722, 0
        %3772 = vmatprep.subr.bf16.mxu0 0
        %3773 = vmatpush1.bf16.msra.mxu0 %v3744
        %3774 = vmatprep.subr.bf16.mxu0 0
        %3775 = vmatpush1.bf16.msra.mxu0 %v3745
        %3776 = vmatprep.subr.bf16.mxu0 0
        %3777 = vmatpush1.bf16.msra.mxu0 0
        %3778 = vmatprep.subr.bf16.mxu0 0
        %3779 = vmatpush1.bf16.msra.mxu0 0
        %3780 = vmatprep.subr.bf16.mxu0 0
        %3781 = vmatpush1.bf16.msra.mxu0 0
        %3782 = vmatprep.subr.bf16.mxu0 0
        %3783 = vmatpush1.bf16.msra.mxu0 0
        %3784 = vmatprep.subr.bf16.mxu0 0
        %3785 = vmatpush1.bf16.msra.mxu0 0
        %3786 = vmatprep.subr.bf16.mxu0 0
        %3787 = vmatpush1.bf16.msra.mxu0 0
        %3788 = vmatprep.subr.bf16.mxu0 0
        %3789 = vmatpush1.bf16.msra.mxu0 0
        %3790 = vmatprep.subr.bf16.mxu0 0
        %3791 = vmatpush1.bf16.msra.mxu0 0
        %3792 = vmatprep.subr.bf16.mxu0 0
        %3793 = vmatpush1.bf16.msra.mxu0 0
        %3794 = vmatprep.subr.bf16.mxu0 0
        %3795 = vmatpush1.bf16.msra.mxu0 0
        %3796 = vmatprep.subr.bf16.mxu0 0
        %3797 = vmatpush1.bf16.msra.mxu0 0
        %3798 = vmatprep.subr.bf16.mxu0 0
        %3799 = vmatpush1.bf16.msra.mxu0 0
        %3800 = vmatprep.subr.bf16.mxu0 0
        %3801 = vmatpush1.bf16.msra.mxu0 0
        %3802 = vmatprep.subr.bf16.mxu0 0
        %3803 = vmatpush1.bf16.msra.mxu0 0
        %3804 = vmatprep.mubr.bf16.mxu0 0
        %3805 = vmatmul.mubr.bf16.gmra.mrb[0].mxu0 %v3749
        %v3806 = vpop.f32.mrb[0].mxu0
        %v3807 = vadd.f32 %v3734, %v3806
        %v3808 = vpop.f32.mrb[0].mxu0
        %v3809 = vpop.f32.mrb[0].mxu0
        %v3810 = vadd.f32 %v3734, %v3809
        %v3811 = vpop.f32.mrb[0].mxu0
        %3812 = vmatprep.mubr.bf16.mxu0 0
        %3813 = vmatmul.mubr.bf16.gmra.mrb[0].mxu0 %v3752
        %v3814 = vpop.f32.mrb[0].mxu0
        %v3815 = vadd.f32 %v3734, %v3814
        %v3816 = vpop.f32.mrb[0].mxu0
        %v3817 = vpop.f32.mrb[0].mxu0
        %v3818 = vadd.f32 %v3734, %v3817
        %v3819 = vpop.f32.mrb[0].mxu0
        %3820 = vmatprep.mubr.bf16.mxu0 0
        %3821 = vmatmul.mubr.bf16.gmra.mrb[0].mxu0 %v3755
        %v3822 = vpop.f32.mrb[0].mxu0
        %v3823 = vadd.f32 %v3734, %v3822
        %v3824 = vpop.f32.mrb[0].mxu0
        %v3825 = vpop.f32.mrb[0].mxu0
        %v3826 = vadd.f32 %v3734, %v3825
        %v3827 = vpop.f32.mrb[0].mxu0
        %3828 = vmatprep.mubr.bf16.mxu0 0
        %3829 = vmatmul.mubr.bf16.gmra.mrb[0].mxu0 %v3758
        %v3830 = vpop.f32.mrb[0].mxu0
        %v3831 = vadd.f32 %v3734, %v3830
        %v3832 = vpop.f32.mrb[0].mxu0
        %v3833 = vpop.f32.mrb[0].mxu0
        %v3834 = vadd.f32 %v3734, %v3833
        %v3835 = vpop.f32.mrb[0].mxu0
        %3836 = vmatprep.mubr.bf16.mxu0 0
        %3837 = vmatmul.mubr.bf16.gmra.mrb[0].mxu0 %v3761
        %v3838 = vpop.f32.mrb[0].mxu0
        %v3839 = vadd.f32 %v3734, %v3838
        %v3840 = vpop.f32.mrb[0].mxu0
        %v3841 = vpop.f32.mrb[0].mxu0
        %v3842 = vadd.f32 %v3734, %v3841
        %v3843 = vpop.f32.mrb[0].mxu0
        %3844 = vmatprep.mubr.bf16.mxu0 0
        %3845 = vmatmul.mubr.bf16.gmra.mrb[0].mxu0 %v3764
        %v3846 = vpop.f32.mrb[0].mxu0
        %v3847 = vadd.f32 %v3734, %v3846
        %v3848 = vpop.f32.mrb[0].mxu0
        %v3849 = vpop.f32.mrb[0].mxu0
        %v3850 = vadd.f32 %v3734, %v3849
        %v3851 = vpop.f32.mrb[0].mxu0
        %3852 = vmatprep.mubr.bf16.mxu0 0
        %3853 = vmatmul.mubr.bf16.gmra.mrb[0].mxu0 %v3767
        %v3854 = vpop.f32.mrb[0].mxu0
        %v3855 = vadd.f32 %v3734, %v3854
        %v3856 = vpop.f32.mrb[0].mxu0
        %v3857 = vpop.f32.mrb[0].mxu0
        %v3858 = vadd.f32 %v3734, %v3857
        %v3859 = vpop.f32.mrb[0].mxu0
        %3860 = vmatprep.mubr.bf16.mxu0 0
        %3861 = vmatmul.mubr.bf16.gmra.mrb[0].mxu0 %v3770
        %v3862 = vpop.f32.mrb[0].mxu0
        %v3863 = vadd.f32 %v3734, %v3862
        %v3864 = vpop.f32.mrb[0].mxu0
        %v3865 = vpop.f32.mrb[0].mxu0
        %v3866 = vadd.f32 %v3734, %v3865
        %v3867 = vpop.f32.mrb[0].mxu0
        %3868 = vdwg.mxu0
        %v3869 = vadd.f32 %v3807, %v2867
        %v3870 = vadd.f32 %v3810, %v2868
        %v3871 = vadd.f32 %v3815, %v2869
        %v3872 = vadd.f32 %v3818, %v2870
        %v3873 = vadd.f32 %v3823, %v2871
        %v3874 = vadd.f32 %v3826, %v2872
        %v3875 = vadd.f32 %v3831, %v2873
        %v3876 = vadd.f32 %v3834, %v2874
        %v3877 = vadd.f32 %v3839, %v2875
        %v3878 = vadd.f32 %v3842, %v2876
        %v3879 = vadd.f32 %v3847, %v2877
        %v3880 = vadd.f32 %v3850, %v2878
        %v3881 = vadd.f32 %v3855, %v2879
        %v3882 = vadd.f32 %v3858, %v2880
        %v3883 = vadd.f32 %v3863, %v2881
        %v3884 = vadd.f32 %v3866, %v2882
        %v3885 = vmax.f32 %v3869, 0.0
        %v3886 = vmax.f32 %v3870, 0.0
        %v3887 = vmax.f32 %v3871, 0.0
        %v3888 = vmax.f32 %v3872, 0.0
        %v3889 = vmax.f32 %v3873, 0.0
        %v3890 = vmax.f32 %v3874, 0.0
        %v3891 = vmax.f32 %v3875, 0.0
        %v3892 = vmax.f32 %v3876, 0.0
        %v3893 = vmax.f32 %v3877, 0.0
        %v3894 = vmax.f32 %v3878, 0.0
        %v3895 = vmax.f32 %v3879, 0.0
        %v3896 = vmax.f32 %v3880, 0.0
        %v3897 = vmax.f32 %v3881, 0.0
        %v3898 = vmax.f32 %v3882, 0.0
        %v3899 = vmax.f32 %v3883, 0.0
        %v3900 = vmax.f32 %v3884, 0.0
        %3917 = vrot.lane.b32.xlu0 %v3885, 64
        %v3918 = vpop.permute.xlu0 %3917
        %3919 = vrot.lane.b32.xlu0 %v3886, 64
        %v3920 = vpop.permute.xlu0 %3919
        %3921 = vrot.lane.b32.xlu0 %v3887, 64
        %v3922 = vpop.permute.xlu0 %3921
        %3923 = vrot.lane.b32.xlu0 %v3888, 64
        %v3924 = vpop.permute.xlu0 %3923
        %3925 = vrot.lane.b32.xlu0 %v3889, 64
        %v3926 = vpop.permute.xlu0 %3925
        %3927 = vrot.lane.b32.xlu0 %v3890, 64
        %v3928 = vpop.permute.xlu0 %3927
        %3929 = vrot.lane.b32.xlu0 %v3891, 64
        %v3930 = vpop.permute.xlu0 %3929
        %3931 = vrot.lane.b32.xlu0 %v3892, 64
        %v3932 = vpop.permute.xlu0 %3931
        %3933 = vrot.lane.b32.xlu0 %v3893, 64
        %v3934 = vpop.permute.xlu0 %3933
        %3935 = vrot.lane.b32.xlu0 %v3894, 64
        %v3936 = vpop.permute.xlu0 %3935
        %3937 = vrot.lane.b32.xlu0 %v3895, 64
        %v3938 = vpop.permute.xlu0 %3937
        %3939 = vrot.lane.b32.xlu0 %v3896, 64
        %v3940 = vpop.permute.xlu0 %3939
        %3941 = vrot.lane.b32.xlu0 %v3897, 64
        %v3942 = vpop.permute.xlu0 %3941
        %3943 = vrot.lane.b32.xlu0 %v3898, 64
        %v3944 = vpop.permute.xlu0 %3943
        %3945 = vrot.lane.b32.xlu0 %v3899, 64
        %v3946 = vpop.permute.xlu0 %3945
        %3947 = vrot.lane.b32.xlu0 %v3900, 64
        %v3948 = vpop.permute.xlu0 %3947
        %3965 = vst.msk [vmem:[#allocation2 + $0x8] sm:$0xff] %vm1895, %v3918
        %3966 = vst.msk [vmem:[#allocation2 + $0x20] sm:$0xff] %vm1895, %v3920
        %3967 = vst.msk [vmem:[#allocation2 + $0x38] sm:$0xff] %vm1895, %v3922
        %3968 = vst.msk [vmem:[#allocation2 + $0x50] sm:$0xff] %vm1895, %v3924
        %3969 = vst.msk [vmem:[#allocation2 + $0x68] sm:$0xff] %vm1895, %v3926
        %3970 = vst.msk [vmem:[#allocation2 + $0x80] sm:$0xff] %vm1895, %v3928
        %3971 = vst.msk [vmem:[#allocation2 + $0x98] sm:$0xff] %vm1895, %v3930
        %3972 = vst.msk [vmem:[#allocation2 + $0xb0] sm:$0xff] %vm1895, %v3932
        %3973 = vst.msk [vmem:[#allocation2 + $0xc8] sm:$0xff] %vm1895, %v3934
        %3974 = vst.msk [vmem:[#allocation2 + $0xe0] sm:$0xff] %vm1895, %v3936
        %3975 = vst.msk [vmem:[#allocation2 + $0xf8] sm:$0xff] %vm1895, %v3938
        %3976 = vst.msk [vmem:[#allocation2 + $0x110] sm:$0xff] %vm1895, %v3940
        %3977 = vst.msk [vmem:[#allocation2 + $0x128] sm:$0xff] %vm1895, %v3942
        %3978 = vst.msk [vmem:[#allocation2 + $0x140] sm:$0xff] %vm1895, %v3944
        %3979 = vst.msk [vmem:[#allocation2 + $0x158] sm:$0xff] %vm1895, %v3946
        %3980 = vst.msk [vmem:[#allocation2 + $0x170] sm:$0xff] %vm1895, %v3948
        %v3981 = vpack.c.bf16 %v3886, %v3885
        %v3982 = vpack.c.bf16 %v3888, %v3887
        %v3983 = vpack.c.bf16 %v3890, %v3889
        %v3984 = vpack.c.bf16 %v3892, %v3891
        %v3985 = vpack.c.bf16 %v3894, %v3893
        %v3986 = vpack.c.bf16 %v3896, %v3895
        %v3987 = vpack.c.bf16 %v3898, %v3897
        %v3988 = vpack.c.bf16 %v3900, %v3899
        %3989 = vmatprep.subr.bf16.mxu0 0
        %3990 = vmatpush1.bf16.msra.mxu0 %v3981
        %3991 = vmatprep.subr.bf16.mxu0 0
        %3992 = vmatpush1.bf16.msra.mxu0 %v3982
        %3993 = vmatprep.subr.bf16.mxu0 0
        %3994 = vmatpush1.bf16.msra.mxu0 %v3983
        %3995 = vmatprep.subr.bf16.mxu0 0
        %3996 = vmatpush1.bf16.msra.mxu0 %v3984
        %3997 = vmatprep.subr.bf16.mxu0 0
        %3998 = vmatpush1.bf16.msra.mxu0 %v3985
        %3999 = vmatprep.subr.bf16.mxu0 0
        %4000 = vmatpush1.bf16.msra.mxu0 %v3986
        %4001 = vmatprep.subr.bf16.mxu0 0
        %4002 = vmatpush1.bf16.msra.mxu0 %v3987
        %4003 = vmatprep.subr.bf16.mxu0 0
        %4004 = vmatpush1.bf16.msra.mxu0 %v3988
        %4005 = vmatprep.subr.bf16.mxu0 0
        %4006 = vmatpush1.bf16.msra.mxu0 0
        %4007 = vmatprep.subr.bf16.mxu0 0
        %4008 = vmatpush1.bf16.msra.mxu0 0
        %4009 = vmatprep.subr.bf16.mxu0 0
        %4010 = vmatpush1.bf16.msra.mxu0 0
        %4011 = vmatprep.subr.bf16.mxu0 0
        %4012 = vmatpush1.bf16.msra.mxu0 0
        %4013 = vmatprep.subr.bf16.mxu0 0
        %4014 = vmatpush1.bf16.msra.mxu0 0
        %4015 = vmatprep.subr.bf16.mxu0 0
        %4016 = vmatpush1.bf16.msra.mxu0 0
        %4017 = vmatprep.subr.bf16.mxu0 0
        %4018 = vmatpush1.bf16.msra.mxu0 0
        %4019 = vmatprep.subr.bf16.mxu0 0
        %4020 = vmatpush1.bf16.msra.mxu0 0
        %4021 = vmatprep.mubr.bf16.mxu0 0
        %4022 = vmatmul.mubr.bf16.gmra.mrb[0].mxu0 %v840
        %v4023 = vpop.f32.mrb[0].mxu0
        %v4024 = vadd.f32 0.0, %v4023
        %v4025 = vpop.f32.mrb[0].mxu0
        %v4026 = vpop.f32.mrb[0].mxu0
        %v4027 = vadd.f32 0.0, %v4026
        %v4028 = vpop.f32.mrb[0].mxu0
        %4029 = vmatprep.mubr.bf16.mxu0 0
        %4030 = vmatmul.mubr.bf16.gmra.mrb[0].mxu0 %v841
        %v4031 = vpop.f32.mrb[0].mxu0
        %v4032 = vadd.f32 0.0, %v4031
        %v4033 = vpop.f32.mrb[0].mxu0
        %v4034 = vpop.f32.mrb[0].mxu0
        %v4035 = vadd.f32 0.0, %v4034
        %v4036 = vpop.f32.mrb[0].mxu0
        %4037 = vmatprep.mubr.bf16.mxu0 0
        %4038 = vmatmul.mubr.bf16.gmra.mrb[0].mxu0 %v842
        %v4039 = vpop.f32.mrb[0].mxu0
        %v4040 = vadd.f32 0.0, %v4039
        %v4041 = vpop.f32.mrb[0].mxu0
        %v4042 = vpop.f32.mrb[0].mxu0
        %v4043 = vadd.f32 0.0, %v4042
        %v4044 = vpop.f32.mrb[0].mxu0
        %4045 = vmatprep.mubr.bf16.mxu0 0
        %4046 = vmatmul.mubr.bf16.gmra.mrb[0].mxu0 %v843
        %v4047 = vpop.f32.mrb[0].mxu0
        %v4048 = vadd.f32 0.0, %v4047
        %v4049 = vpop.f32.mrb[0].mxu0
        %v4050 = vpop.f32.mrb[0].mxu0
        %v4051 = vadd.f32 0.0, %v4050
        %v4052 = vpop.f32.mrb[0].mxu0
        %4053 = vmatprep.mubr.bf16.mxu0 0
        %4054 = vmatmul.mubr.bf16.gmra.mrb[0].mxu0 %v844
        %v4055 = vpop.f32.mrb[0].mxu0
        %v4056 = vadd.f32 0.0, %v4055
        %v4057 = vpop.f32.mrb[0].mxu0
        %v4058 = vpop.f32.mrb[0].mxu0
        %v4059 = vadd.f32 0.0, %v4058
        %v4060 = vpop.f32.mrb[0].mxu0
        %4061 = vmatprep.mubr.bf16.mxu0 0
        %4062 = vmatmul.mubr.bf16.gmra.mrb[0].mxu0 %v845
        %v4063 = vpop.f32.mrb[0].mxu0
        %v4064 = vadd.f32 0.0, %v4063
        %v4065 = vpop.f32.mrb[0].mxu0
        %v4066 = vpop.f32.mrb[0].mxu0
        %v4067 = vadd.f32 0.0, %v4066
        %v4068 = vpop.f32.mrb[0].mxu0
        %4069 = vmatprep.mubr.bf16.mxu0 0
        %4070 = vmatmul.mubr.bf16.gmra.mrb[0].mxu0 %v846
        %v4071 = vpop.f32.mrb[0].mxu0
        %v4072 = vadd.f32 0.0, %v4071
        %v4073 = vpop.f32.mrb[0].mxu0
        %v4074 = vpop.f32.mrb[0].mxu0
        %v4075 = vadd.f32 0.0, %v4074
        %v4076 = vpop.f32.mrb[0].mxu0
        %4077 = vmatprep.mubr.bf16.mxu0 0
        %4078 = vmatmul.mubr.bf16.gmra.mrb[0].mxu0 %v847
        %v4079 = vpop.f32.mrb[0].mxu0
        %v4080 = vadd.f32 0.0, %v4079
        %v4081 = vpop.f32.mrb[0].mxu0
        %v4082 = vpop.f32.mrb[0].mxu0
        %v4083 = vadd.f32 0.0, %v4082
        %v4084 = vpop.f32.mrb[0].mxu0
        %4085 = vdwg.mxu0
        %v4086 = vpack.c.bf16 %v4027, %v4024
        %v4087 = vpack.c.bf16 %v4035, %v4032
        %v4088 = vpack.c.bf16 %v4043, %v4040
        %v4089 = vpack.c.bf16 %v4051, %v4048
        %v4090 = vpack.c.bf16 %v4059, %v4056
        %v4091 = vpack.c.bf16 %v4067, %v4064
        %v4092 = vpack.c.bf16 %v4075, %v4072
        %v4093 = vpack.c.bf16 %v4083, %v4080
        %s4094 = scalar_lea.vmem %s6, 96
        %v4095 = vld [vmem:[%s4094] sm:$0xf]
        %v4096 = vld [vmem:[%s4094 + $0x4] sm:$0xf]
        %v4097 = vld [vmem:[%s4094 + $0x8] sm:$0xf]
        %v4098 = vld [vmem:[%s4094 + $0xc] sm:$0xf]
        %s4099 = scalar_lea.vmem %s7, 6
        %v4100 = vld [vmem:[%s4099] sm:$0x1]
        %v4102 = vlaneseq
        %v4103 = vshrl.u32 %v4102, 7
        %v4104 = vsub.s32 0, %v4103
        %v4105 = vrot.slane %v4100, %v4104
        %v4111 = vunpack.c.l.b16 %v4095
        %v4112 = vunpack.c.l.b16 %v4096
        %v4113 = vunpack.c.l.b16 %v4097
        %v4114 = vunpack.c.l.b16 %v4098
        %v4115 = vpack.c.b16 %v4112, %v4111
        %v4116 = vpack.c.b16 %v4114, %v4113
        %v4120 = vsel %vm783, %v4086, 0
        %v4123 = vsel %vm783, %v4087, 0
        %v4126 = vsel %vm783, %v4088, 0
        %v4129 = vsel %vm783, %v4089, 0
        %v4132 = vsel %vm783, %v4090, 0
        %v4135 = vsel %vm783, %v4091, 0
        %v4138 = vsel %vm783, %v4092, 0
        %v4141 = vsel %vm783, %v4093, 0
        %4143 = vmatprep.subr.bf16.mxu0 0
        %4144 = vmatpush1.bf16.msra.mxu0 %v4115
        %4145 = vmatprep.subr.bf16.mxu0 0
        %4146 = vmatpush1.bf16.msra.mxu0 %v4116
        %4147 = vmatprep.subr.bf16.mxu0 0
        %4148 = vmatpush1.bf16.msra.mxu0 0
        %4149 = vmatprep.subr.bf16.mxu0 0
        %4150 = vmatpush1.bf16.msra.mxu0 0
        %4151 = vmatprep.subr.bf16.mxu0 0
        %4152 = vmatpush1.bf16.msra.mxu0 0
        %4153 = vmatprep.subr.bf16.mxu0 0
        %4154 = vmatpush1.bf16.msra.mxu0 0
        %4155 = vmatprep.subr.bf16.mxu0 0
        %4156 = vmatpush1.bf16.msra.mxu0 0
        %4157 = vmatprep.subr.bf16.mxu0 0
        %4158 = vmatpush1.bf16.msra.mxu0 0
        %4159 = vmatprep.subr.bf16.mxu0 0
        %4160 = vmatpush1.bf16.msra.mxu0 0
        %4161 = vmatprep.subr.bf16.mxu0 0
        %4162 = vmatpush1.bf16.msra.mxu0 0
        %4163 = vmatprep.subr.bf16.mxu0 0
        %4164 = vmatpush1.bf16.msra.mxu0 0
        %4165 = vmatprep.subr.bf16.mxu0 0
        %4166 = vmatpush1.bf16.msra.mxu0 0
        %4167 = vmatprep.subr.bf16.mxu0 0
        %4168 = vmatpush1.bf16.msra.mxu0 0
        %4169 = vmatprep.subr.bf16.mxu0 0
        %4170 = vmatpush1.bf16.msra.mxu0 0
        %4171 = vmatprep.subr.bf16.mxu0 0
        %4172 = vmatpush1.bf16.msra.mxu0 0
        %4173 = vmatprep.subr.bf16.mxu0 0
        %4174 = vmatpush1.bf16.msra.mxu0 0
        %4175 = vmatprep.mubr.bf16.mxu0 0
        %4176 = vmatmul.mubr.bf16.gmra.mrb[0].mxu0 %v4120
        %v4177 = vpop.f32.mrb[0].mxu0
        %v4178 = vadd.f32 %v4105, %v4177
        %v4179 = vpop.f32.mrb[0].mxu0
        %v4180 = vpop.f32.mrb[0].mxu0
        %v4181 = vadd.f32 %v4105, %v4180
        %v4182 = vpop.f32.mrb[0].mxu0
        %4183 = vmatprep.mubr.bf16.mxu0 0
        %4184 = vmatmul.mubr.bf16.gmra.mrb[0].mxu0 %v4123
        %v4185 = vpop.f32.mrb[0].mxu0
        %v4186 = vadd.f32 %v4105, %v4185
        %v4187 = vpop.f32.mrb[0].mxu0
        %v4188 = vpop.f32.mrb[0].mxu0
        %v4189 = vadd.f32 %v4105, %v4188
        %v4190 = vpop.f32.mrb[0].mxu0
        %4191 = vmatprep.mubr.bf16.mxu0 0
        %4192 = vmatmul.mubr.bf16.gmra.mrb[0].mxu0 %v4126
        %v4193 = vpop.f32.mrb[0].mxu0
        %v4194 = vadd.f32 %v4105, %v4193
        %v4195 = vpop.f32.mrb[0].mxu0
        %v4196 = vpop.f32.mrb[0].mxu0
        %v4197 = vadd.f32 %v4105, %v4196
        %v4198 = vpop.f32.mrb[0].mxu0
        %4199 = vmatprep.mubr.bf16.mxu0 0
        %4200 = vmatmul.mubr.bf16.gmra.mrb[0].mxu0 %v4129
        %v4201 = vpop.f32.mrb[0].mxu0
        %v4202 = vadd.f32 %v4105, %v4201
        %v4203 = vpop.f32.mrb[0].mxu0
        %v4204 = vpop.f32.mrb[0].mxu0
        %v4205 = vadd.f32 %v4105, %v4204
        %v4206 = vpop.f32.mrb[0].mxu0
        %4207 = vmatprep.mubr.bf16.mxu0 0
        %4208 = vmatmul.mubr.bf16.gmra.mrb[0].mxu0 %v4132
        %v4209 = vpop.f32.mrb[0].mxu0
        %v4210 = vadd.f32 %v4105, %v4209
        %v4211 = vpop.f32.mrb[0].mxu0
        %v4212 = vpop.f32.mrb[0].mxu0
        %v4213 = vadd.f32 %v4105, %v4212
        %v4214 = vpop.f32.mrb[0].mxu0
        %4215 = vmatprep.mubr.bf16.mxu0 0
        %4216 = vmatmul.mubr.bf16.gmra.mrb[0].mxu0 %v4135
        %v4217 = vpop.f32.mrb[0].mxu0
        %v4218 = vadd.f32 %v4105, %v4217
        %v4219 = vpop.f32.mrb[0].mxu0
        %v4220 = vpop.f32.mrb[0].mxu0
        %v4221 = vadd.f32 %v4105, %v4220
        %v4222 = vpop.f32.mrb[0].mxu0
        %4223 = vmatprep.mubr.bf16.mxu0 0
        %4224 = vmatmul.mubr.bf16.gmra.mrb[0].mxu0 %v4138
        %v4225 = vpop.f32.mrb[0].mxu0
        %v4226 = vadd.f32 %v4105, %v4225
        %v4227 = vpop.f32.mrb[0].mxu0
        %v4228 = vpop.f32.mrb[0].mxu0
        %v4229 = vadd.f32 %v4105, %v4228
        %v4230 = vpop.f32.mrb[0].mxu0
        %4231 = vmatprep.mubr.bf16.mxu0 0
        %4232 = vmatmul.mubr.bf16.gmra.mrb[0].mxu0 %v4141
        %v4233 = vpop.f32.mrb[0].mxu0
        %v4234 = vadd.f32 %v4105, %v4233
        %v4235 = vpop.f32.mrb[0].mxu0
        %v4236 = vpop.f32.mrb[0].mxu0
        %v4237 = vadd.f32 %v4105, %v4236
        %v4238 = vpop.f32.mrb[0].mxu0
        %4239 = vdwg.mxu0
        %v4240 = vmax.f32 %v4178, 0.0
        %v4241 = vmax.f32 %v4181, 0.0
        %v4242 = vmax.f32 %v4186, 0.0
        %v4243 = vmax.f32 %v4189, 0.0
        %v4244 = vmax.f32 %v4194, 0.0
        %v4245 = vmax.f32 %v4197, 0.0
        %v4246 = vmax.f32 %v4202, 0.0
        %v4247 = vmax.f32 %v4205, 0.0
        %v4248 = vmax.f32 %v4210, 0.0
        %v4249 = vmax.f32 %v4213, 0.0
        %v4250 = vmax.f32 %v4218, 0.0
        %v4251 = vmax.f32 %v4221, 0.0
        %v4252 = vmax.f32 %v4226, 0.0
        %v4253 = vmax.f32 %v4229, 0.0
        %v4254 = vmax.f32 %v4234, 0.0
        %v4255 = vmax.f32 %v4237, 0.0
        %v4256 = vpack.c.bf16 %v4241, %v4240
        %v4257 = vpack.c.bf16 %v4243, %v4242
        %v4258 = vpack.c.bf16 %v4245, %v4244
        %v4259 = vpack.c.bf16 %v4247, %v4246
        %v4260 = vpack.c.bf16 %v4249, %v4248
        %v4261 = vpack.c.bf16 %v4251, %v4250
        %v4262 = vpack.c.bf16 %v4253, %v4252
        %v4263 = vpack.c.bf16 %v4255, %v4254
        %s4264 = scalar_lea.vmem [#allocation3], 96
        %v4265 = vld [vmem:[%s4264] sm:$0xf]
        %v4266 = vld [vmem:[%s4264 + $0x4] sm:$0xf]
        %v4267 = vld [vmem:[%s4264 + $0x8] sm:$0xf]
        %v4268 = vld [vmem:[%s4264 + $0xc] sm:$0xf]
        %s4269 = scalar_lea.vmem %s9, 6
        %v4270 = vld [vmem:[%s4269] sm:$0x1]
        %v4272 = vlaneseq
        %v4273 = vshrl.u32 %v4272, 7
        %v4274 = vsub.s32 0, %v4273
        %v4275 = vrot.slane %v4270, %v4274
        %v4281 = vunpack.c.l.b16 %v4265
        %v4282 = vunpack.c.l.b16 %v4266
        %v4283 = vunpack.c.l.b16 %v4267
        %v4284 = vunpack.c.l.b16 %v4268
        %v4285 = vpack.c.b16 %v4282, %v4281
        %v4286 = vpack.c.b16 %v4284, %v4283
        %v4290 = vsel %vm783, %v4256, 0
        %v4293 = vsel %vm783, %v4257, 0
        %v4296 = vsel %vm783, %v4258, 0
        %v4299 = vsel %vm783, %v4259, 0
        %v4302 = vsel %vm783, %v4260, 0
        %v4305 = vsel %vm783, %v4261, 0
        %v4308 = vsel %vm783, %v4262, 0
        %v4311 = vsel %vm783, %v4263, 0
        %4313 = vmatprep.subr.bf16.mxu0 0
        %4314 = vmatpush1.bf16.msra.mxu0 %v4285
        %4315 = vmatprep.subr.bf16.mxu0 0
        %4316 = vmatpush1.bf16.msra.mxu0 %v4286
        %4317 = vmatprep.subr.bf16.mxu0 0
        %4318 = vmatpush1.bf16.msra.mxu0 0
        %4319 = vmatprep.subr.bf16.mxu0 0
        %4320 = vmatpush1.bf16.msra.mxu0 0
        %4321 = vmatprep.subr.bf16.mxu0 0
        %4322 = vmatpush1.bf16.msra.mxu0 0
        %4323 = vmatprep.subr.bf16.mxu0 0
        %4324 = vmatpush1.bf16.msra.mxu0 0
        %4325 = vmatprep.subr.bf16.mxu0 0
        %4326 = vmatpush1.bf16.msra.mxu0 0
        %4327 = vmatprep.subr.bf16.mxu0 0
        %4328 = vmatpush1.bf16.msra.mxu0 0
        %4329 = vmatprep.subr.bf16.mxu0 0
        %4330 = vmatpush1.bf16.msra.mxu0 0
        %4331 = vmatprep.subr.bf16.mxu0 0
        %4332 = vmatpush1.bf16.msra.mxu0 0
        %4333 = vmatprep.subr.bf16.mxu0 0
        %4334 = vmatpush1.bf16.msra.mxu0 0
        %4335 = vmatprep.subr.bf16.mxu0 0
        %4336 = vmatpush1.bf16.msra.mxu0 0
        %4337 = vmatprep.subr.bf16.mxu0 0
        %4338 = vmatpush1.bf16.msra.mxu0 0
        %4339 = vmatprep.subr.bf16.mxu0 0
        %4340 = vmatpush1.bf16.msra.mxu0 0
        %4341 = vmatprep.subr.bf16.mxu0 0
        %4342 = vmatpush1.bf16.msra.mxu0 0
        %4343 = vmatprep.subr.bf16.mxu0 0
        %4344 = vmatpush1.bf16.msra.mxu0 0
        %4345 = vmatprep.mubr.bf16.mxu0 0
        %4346 = vmatmul.mubr.bf16.gmra.mrb[0].mxu0 %v4290
        %v4347 = vpop.f32.mrb[0].mxu0
        %v4348 = vadd.f32 %v4275, %v4347
        %v4349 = vpop.f32.mrb[0].mxu0
        %v4350 = vpop.f32.mrb[0].mxu0
        %v4351 = vadd.f32 %v4275, %v4350
        %v4352 = vpop.f32.mrb[0].mxu0
        %4353 = vmatprep.mubr.bf16.mxu0 0
        %4354 = vmatmul.mubr.bf16.gmra.mrb[0].mxu0 %v4293
        %v4355 = vpop.f32.mrb[0].mxu0
        %v4356 = vadd.f32 %v4275, %v4355
        %v4357 = vpop.f32.mrb[0].mxu0
        %v4358 = vpop.f32.mrb[0].mxu0
        %v4359 = vadd.f32 %v4275, %v4358
        %v4360 = vpop.f32.mrb[0].mxu0
        %4361 = vmatprep.mubr.bf16.mxu0 0
        %4362 = vmatmul.mubr.bf16.gmra.mrb[0].mxu0 %v4296
        %v4363 = vpop.f32.mrb[0].mxu0
        %v4364 = vadd.f32 %v4275, %v4363
        %v4365 = vpop.f32.mrb[0].mxu0
        %v4366 = vpop.f32.mrb[0].mxu0
        %v4367 = vadd.f32 %v4275, %v4366
        %v4368 = vpop.f32.mrb[0].mxu0
        %4369 = vmatprep.mubr.bf16.mxu0 0
        %4370 = vmatmul.mubr.bf16.gmra.mrb[0].mxu0 %v4299
        %v4371 = vpop.f32.mrb[0].mxu0
        %v4372 = vadd.f32 %v4275, %v4371
        %v4373 = vpop.f32.mrb[0].mxu0
        %v4374 = vpop.f32.mrb[0].mxu0
        %v4375 = vadd.f32 %v4275, %v4374
        %v4376 = vpop.f32.mrb[0].mxu0
        %4377 = vmatprep.mubr.bf16.mxu0 0
        %4378 = vmatmul.mubr.bf16.gmra.mrb[0].mxu0 %v4302
        %v4379 = vpop.f32.mrb[0].mxu0
        %v4380 = vadd.f32 %v4275, %v4379
        %v4381 = vpop.f32.mrb[0].mxu0
        %v4382 = vpop.f32.mrb[0].mxu0
        %v4383 = vadd.f32 %v4275, %v4382
        %v4384 = vpop.f32.mrb[0].mxu0
        %4385 = vmatprep.mubr.bf16.mxu0 0
        %4386 = vmatmul.mubr.bf16.gmra.mrb[0].mxu0 %v4305
        %v4387 = vpop.f32.mrb[0].mxu0
        %v4388 = vadd.f32 %v4275, %v4387
        %v4389 = vpop.f32.mrb[0].mxu0
        %v4390 = vpop.f32.mrb[0].mxu0
        %v4391 = vadd.f32 %v4275, %v4390
        %v4392 = vpop.f32.mrb[0].mxu0
        %4393 = vmatprep.mubr.bf16.mxu0 0
        %4394 = vmatmul.mubr.bf16.gmra.mrb[0].mxu0 %v4308
        %v4395 = vpop.f32.mrb[0].mxu0
        %v4396 = vadd.f32 %v4275, %v4395
        %v4397 = vpop.f32.mrb[0].mxu0
        %v4398 = vpop.f32.mrb[0].mxu0
        %v4399 = vadd.f32 %v4275, %v4398
        %v4400 = vpop.f32.mrb[0].mxu0
        %4401 = vmatprep.mubr.bf16.mxu0 0
        %4402 = vmatmul.mubr.bf16.gmra.mrb[0].mxu0 %v4311
        %v4403 = vpop.f32.mrb[0].mxu0
        %v4404 = vadd.f32 %v4275, %v4403
        %v4405 = vpop.f32.mrb[0].mxu0
        %v4406 = vpop.f32.mrb[0].mxu0
        %v4407 = vadd.f32 %v4275, %v4406
        %v4408 = vpop.f32.mrb[0].mxu0
        %4409 = vdwg.mxu0
        %v4410 = vmax.f32 %v4348, 0.0
        %v4411 = vmax.f32 %v4351, 0.0
        %v4412 = vmax.f32 %v4356, 0.0
        %v4413 = vmax.f32 %v4359, 0.0
        %v4414 = vmax.f32 %v4364, 0.0
        %v4415 = vmax.f32 %v4367, 0.0
        %v4416 = vmax.f32 %v4372, 0.0
        %v4417 = vmax.f32 %v4375, 0.0
        %v4418 = vmax.f32 %v4380, 0.0
        %v4419 = vmax.f32 %v4383, 0.0
        %v4420 = vmax.f32 %v4388, 0.0
        %v4421 = vmax.f32 %v4391, 0.0
        %v4422 = vmax.f32 %v4396, 0.0
        %v4423 = vmax.f32 %v4399, 0.0
        %v4424 = vmax.f32 %v4404, 0.0
        %v4425 = vmax.f32 %v4407, 0.0
        %4442 = vrot.lane.b32.xlu0 %v4410, 96
        %v4443 = vpop.permute.xlu0 %4442
        %4444 = vrot.lane.b32.xlu0 %v4411, 96
        %v4445 = vpop.permute.xlu0 %4444
        %4446 = vrot.lane.b32.xlu0 %v4412, 96
        %v4447 = vpop.permute.xlu0 %4446
        %4448 = vrot.lane.b32.xlu0 %v4413, 96
        %v4449 = vpop.permute.xlu0 %4448
        %4450 = vrot.lane.b32.xlu0 %v4414, 96
        %v4451 = vpop.permute.xlu0 %4450
        %4452 = vrot.lane.b32.xlu0 %v4415, 96
        %v4453 = vpop.permute.xlu0 %4452
        %4454 = vrot.lane.b32.xlu0 %v4416, 96
        %v4455 = vpop.permute.xlu0 %4454
        %4456 = vrot.lane.b32.xlu0 %v4417, 96
        %v4457 = vpop.permute.xlu0 %4456
        %4458 = vrot.lane.b32.xlu0 %v4418, 96
        %v4459 = vpop.permute.xlu0 %4458
        %4460 = vrot.lane.b32.xlu0 %v4419, 96
        %v4461 = vpop.permute.xlu0 %4460
        %4462 = vrot.lane.b32.xlu0 %v4420, 96
        %v4463 = vpop.permute.xlu0 %4462
        %4464 = vrot.lane.b32.xlu0 %v4421, 96
        %v4465 = vpop.permute.xlu0 %4464
        %4466 = vrot.lane.b32.xlu0 %v4422, 96
        %v4467 = vpop.permute.xlu0 %4466
        %4468 = vrot.lane.b32.xlu0 %v4423, 96
        %v4469 = vpop.permute.xlu0 %4468
        %4470 = vrot.lane.b32.xlu0 %v4424, 96
        %v4471 = vpop.permute.xlu0 %4470
        %4472 = vrot.lane.b32.xlu0 %v4425, 96
        %v4473 = vpop.permute.xlu0 %4472
        %4490 = vst.msk [vmem:[#allocation2 + $0x8] sm:$0xff] %vm2421, %v4443
        %4491 = vst.msk [vmem:[#allocation2 + $0x20] sm:$0xff] %vm2421, %v4445
        %4492 = vst.msk [vmem:[#allocation2 + $0x38] sm:$0xff] %vm2421, %v4447
        %4493 = vst.msk [vmem:[#allocation2 + $0x50] sm:$0xff] %vm2421, %v4449
        %4494 = vst.msk [vmem:[#allocation2 + $0x68] sm:$0xff] %vm2421, %v4451
        %4495 = vst.msk [vmem:[#allocation2 + $0x80] sm:$0xff] %vm2421, %v4453
        %4496 = vst.msk [vmem:[#allocation2 + $0x98] sm:$0xff] %vm2421, %v4455
        %4497 = vst.msk [vmem:[#allocation2 + $0xb0] sm:$0xff] %vm2421, %v4457
        %4498 = vst.msk [vmem:[#allocation2 + $0xc8] sm:$0xff] %vm2421, %v4459
        %4499 = vst.msk [vmem:[#allocation2 + $0xe0] sm:$0xff] %vm2421, %v4461
        %4500 = vst.msk [vmem:[#allocation2 + $0xf8] sm:$0xff] %vm2421, %v4463
        %4501 = vst.msk [vmem:[#allocation2 + $0x110] sm:$0xff] %vm2421, %v4465
        %4502 = vst.msk [vmem:[#allocation2 + $0x128] sm:$0xff] %vm2421, %v4467
        %4503 = vst.msk [vmem:[#allocation2 + $0x140] sm:$0xff] %vm2421, %v4469
        %4504 = vst.msk [vmem:[#allocation2 + $0x158] sm:$0xff] %vm2421, %v4471
        %4505 = vst.msk [vmem:[#allocation2 + $0x170] sm:$0xff] %vm2421, %v4473
        %v4506 = vpack.c.bf16 %v4411, %v4410
        %v4507 = vpack.c.bf16 %v4413, %v4412
        %v4508 = vpack.c.bf16 %v4415, %v4414
        %v4509 = vpack.c.bf16 %v4417, %v4416
        %v4510 = vpack.c.bf16 %v4419, %v4418
        %v4511 = vpack.c.bf16 %v4421, %v4420
        %v4512 = vpack.c.bf16 %v4423, %v4422
        %v4513 = vpack.c.bf16 %v4425, %v4424
        %4514 = vmatprep.subr.bf16.mxu0 0
        %4515 = vmatpush1.bf16.msra.mxu0 %v4506
        %4516 = vmatprep.subr.bf16.mxu0 0
        %4517 = vmatpush1.bf16.msra.mxu0 %v4507
        %4518 = vmatprep.subr.bf16.mxu0 0
        %4519 = vmatpush1.bf16.msra.mxu0 %v4508
        %4520 = vmatprep.subr.bf16.mxu0 0
        %4521 = vmatpush1.bf16.msra.mxu0 %v4509
        %4522 = vmatprep.subr.bf16.mxu0 0
        %4523 = vmatpush1.bf16.msra.mxu0 %v4510
        %4524 = vmatprep.subr.bf16.mxu0 0
        %4525 = vmatpush1.bf16.msra.mxu0 %v4511
        %4526 = vmatprep.subr.bf16.mxu0 0
        %4527 = vmatpush1.bf16.msra.mxu0 %v4512
        %4528 = vmatprep.subr.bf16.mxu0 0
        %4529 = vmatpush1.bf16.msra.mxu0 %v4513
        %4530 = vmatprep.subr.bf16.mxu0 0
        %4531 = vmatpush1.bf16.msra.mxu0 0
        %4532 = vmatprep.subr.bf16.mxu0 0
        %4533 = vmatpush1.bf16.msra.mxu0 0
        %4534 = vmatprep.subr.bf16.mxu0 0
        %4535 = vmatpush1.bf16.msra.mxu0 0
        %4536 = vmatprep.subr.bf16.mxu0 0
        %4537 = vmatpush1.bf16.msra.mxu0 0
        %4538 = vmatprep.subr.bf16.mxu0 0
        %4539 = vmatpush1.bf16.msra.mxu0 0
        %4540 = vmatprep.subr.bf16.mxu0 0
        %4541 = vmatpush1.bf16.msra.mxu0 0
        %4542 = vmatprep.subr.bf16.mxu0 0
        %4543 = vmatpush1.bf16.msra.mxu0 0
        %4544 = vmatprep.subr.bf16.mxu0 0
        %4545 = vmatpush1.bf16.msra.mxu0 0
        %4546 = vmatprep.mubr.bf16.mxu0 0
        %4547 = vmatmul.mubr.bf16.gmra.mrb[0].mxu0 %v840
        %v4548 = vpop.f32.mrb[0].mxu0
        %v4549 = vadd.f32 0.0, %v4548
        %v4550 = vpop.f32.mrb[0].mxu0
        %v4551 = vpop.f32.mrb[0].mxu0
        %v4552 = vadd.f32 0.0, %v4551
        %v4553 = vpop.f32.mrb[0].mxu0
        %4554 = vmatprep.mubr.bf16.mxu0 0
        %4555 = vmatmul.mubr.bf16.gmra.mrb[0].mxu0 %v841
        %v4556 = vpop.f32.mrb[0].mxu0
        %v4557 = vadd.f32 0.0, %v4556
        %v4558 = vpop.f32.mrb[0].mxu0
        %v4559 = vpop.f32.mrb[0].mxu0
        %v4560 = vadd.f32 0.0, %v4559
        %v4561 = vpop.f32.mrb[0].mxu0
        %4562 = vmatprep.mubr.bf16.mxu0 0
        %4563 = vmatmul.mubr.bf16.gmra.mrb[0].mxu0 %v842
        %v4564 = vpop.f32.mrb[0].mxu0
        %v4565 = vadd.f32 0.0, %v4564
        %v4566 = vpop.f32.mrb[0].mxu0
        %v4567 = vpop.f32.mrb[0].mxu0
        %v4568 = vadd.f32 0.0, %v4567
        %v4569 = vpop.f32.mrb[0].mxu0
        %4570 = vmatprep.mubr.bf16.mxu0 0
        %4571 = vmatmul.mubr.bf16.gmra.mrb[0].mxu0 %v843
        %v4572 = vpop.f32.mrb[0].mxu0
        %v4573 = vadd.f32 0.0, %v4572
        %v4574 = vpop.f32.mrb[0].mxu0
        %v4575 = vpop.f32.mrb[0].mxu0
        %v4576 = vadd.f32 0.0, %v4575
        %v4577 = vpop.f32.mrb[0].mxu0
        %4578 = vmatprep.mubr.bf16.mxu0 0
        %4579 = vmatmul.mubr.bf16.gmra.mrb[0].mxu0 %v844
        %v4580 = vpop.f32.mrb[0].mxu0
        %v4581 = vadd.f32 0.0, %v4580
        %v4582 = vpop.f32.mrb[0].mxu0
        %v4583 = vpop.f32.mrb[0].mxu0
        %v4584 = vadd.f32 0.0, %v4583
        %v4585 = vpop.f32.mrb[0].mxu0
        %4586 = vmatprep.mubr.bf16.mxu0 0
        %4587 = vmatmul.mubr.bf16.gmra.mrb[0].mxu0 %v845
        %v4588 = vpop.f32.mrb[0].mxu0
        %v4589 = vadd.f32 0.0, %v4588
        %v4590 = vpop.f32.mrb[0].mxu0
        %v4591 = vpop.f32.mrb[0].mxu0
        %v4592 = vadd.f32 0.0, %v4591
        %v4593 = vpop.f32.mrb[0].mxu0
        %4594 = vmatprep.mubr.bf16.mxu0 0
        %4595 = vmatmul.mubr.bf16.gmra.mrb[0].mxu0 %v846
        %v4596 = vpop.f32.mrb[0].mxu0
        %v4597 = vadd.f32 0.0, %v4596
        %v4598 = vpop.f32.mrb[0].mxu0
        %v4599 = vpop.f32.mrb[0].mxu0
        %v4600 = vadd.f32 0.0, %v4599
        %v4601 = vpop.f32.mrb[0].mxu0
        %4602 = vmatprep.mubr.bf16.mxu0 0
        %4603 = vmatmul.mubr.bf16.gmra.mrb[0].mxu0 %v847
        %v4604 = vpop.f32.mrb[0].mxu0
        %v4605 = vadd.f32 0.0, %v4604
        %v4606 = vpop.f32.mrb[0].mxu0
        %v4607 = vpop.f32.mrb[0].mxu0
        %v4608 = vadd.f32 0.0, %v4607
        %v4609 = vpop.f32.mrb[0].mxu0
        %4610 = vdwg.mxu0
        %v4611 = vpack.c.bf16 %v4552, %v4549
        %v4612 = vpack.c.bf16 %v4560, %v4557
        %v4613 = vpack.c.bf16 %v4568, %v4565
        %v4614 = vpack.c.bf16 %v4576, %v4573
        %v4615 = vpack.c.bf16 %v4584, %v4581
        %v4616 = vpack.c.bf16 %v4592, %v4589
        %v4617 = vpack.c.bf16 %v4600, %v4597
        %v4618 = vpack.c.bf16 %v4608, %v4605
        %s4619 = scalar_lea.vmem %s6, 112
        %v4620 = vld [vmem:[%s4619] sm:$0xf]
        %v4621 = vld [vmem:[%s4619 + $0x4] sm:$0xf]
        %v4622 = vld [vmem:[%s4619 + $0x8] sm:$0xf]
        %v4623 = vld [vmem:[%s4619 + $0xc] sm:$0xf]
        %s4624 = scalar_lea.vmem %s7, 7
        %v4625 = vld [vmem:[%s4624] sm:$0x1]
        %v4627 = vlaneseq
        %v4628 = vshrl.u32 %v4627, 7
        %v4629 = vsub.s32 0, %v4628
        %v4630 = vrot.slane %v4625, %v4629
        %v4636 = vunpack.c.l.b16 %v4620
        %v4637 = vunpack.c.l.b16 %v4621
        %v4638 = vunpack.c.l.b16 %v4622
        %v4639 = vunpack.c.l.b16 %v4623
        %v4640 = vpack.c.b16 %v4637, %v4636
        %v4641 = vpack.c.b16 %v4639, %v4638
        %v4645 = vsel %vm783, %v4611, 0
        %v4648 = vsel %vm783, %v4612, 0
        %v4651 = vsel %vm783, %v4613, 0
        %v4654 = vsel %vm783, %v4614, 0
        %v4657 = vsel %vm783, %v4615, 0
        %v4660 = vsel %vm783, %v4616, 0
        %v4663 = vsel %vm783, %v4617, 0
        %v4666 = vsel %vm783, %v4618, 0
        %4668 = vmatprep.subr.bf16.mxu0 0
        %4669 = vmatpush1.bf16.msra.mxu0 %v4640
        %4670 = vmatprep.subr.bf16.mxu0 0
        %4671 = vmatpush1.bf16.msra.mxu0 %v4641
        %4672 = vmatprep.subr.bf16.mxu0 0
        %4673 = vmatpush1.bf16.msra.mxu0 0
        %4674 = vmatprep.subr.bf16.mxu0 0
        %4675 = vmatpush1.bf16.msra.mxu0 0
        %4676 = vmatprep.subr.bf16.mxu0 0
        %4677 = vmatpush1.bf16.msra.mxu0 0
        %4678 = vmatprep.subr.bf16.mxu0 0
        %4679 = vmatpush1.bf16.msra.mxu0 0
        %4680 = vmatprep.subr.bf16.mxu0 0
        %4681 = vmatpush1.bf16.msra.mxu0 0
        %4682 = vmatprep.subr.bf16.mxu0 0
        %4683 = vmatpush1.bf16.msra.mxu0 0
        %4684 = vmatprep.subr.bf16.mxu0 0
        %4685 = vmatpush1.bf16.msra.mxu0 0
        %4686 = vmatprep.subr.bf16.mxu0 0
        %4687 = vmatpush1.bf16.msra.mxu0 0
        %4688 = vmatprep.subr.bf16.mxu0 0
        %4689 = vmatpush1.bf16.msra.mxu0 0
        %4690 = vmatprep.subr.bf16.mxu0 0
        %4691 = vmatpush1.bf16.msra.mxu0 0
        %4692 = vmatprep.subr.bf16.mxu0 0
        %4693 = vmatpush1.bf16.msra.mxu0 0
        %4694 = vmatprep.subr.bf16.mxu0 0
        %4695 = vmatpush1.bf16.msra.mxu0 0
        %4696 = vmatprep.subr.bf16.mxu0 0
        %4697 = vmatpush1.bf16.msra.mxu0 0
        %4698 = vmatprep.subr.bf16.mxu0 0
        %4699 = vmatpush1.bf16.msra.mxu0 0
        %4700 = vmatprep.mubr.bf16.mxu0 0
        %4701 = vmatmul.mubr.bf16.gmra.mrb[0].mxu0 %v4645
        %v4702 = vpop.f32.mrb[0].mxu0
        %v4703 = vadd.f32 %v4630, %v4702
        %v4704 = vpop.f32.mrb[0].mxu0
        %v4705 = vpop.f32.mrb[0].mxu0
        %v4706 = vadd.f32 %v4630, %v4705
        %v4707 = vpop.f32.mrb[0].mxu0
        %4708 = vmatprep.mubr.bf16.mxu0 0
        %4709 = vmatmul.mubr.bf16.gmra.mrb[0].mxu0 %v4648
        %v4710 = vpop.f32.mrb[0].mxu0
        %v4711 = vadd.f32 %v4630, %v4710
        %v4712 = vpop.f32.mrb[0].mxu0
        %v4713 = vpop.f32.mrb[0].mxu0
        %v4714 = vadd.f32 %v4630, %v4713
        %v4715 = vpop.f32.mrb[0].mxu0
        %4716 = vmatprep.mubr.bf16.mxu0 0
        %4717 = vmatmul.mubr.bf16.gmra.mrb[0].mxu0 %v4651
        %v4718 = vpop.f32.mrb[0].mxu0
        %v4719 = vadd.f32 %v4630, %v4718
        %v4720 = vpop.f32.mrb[0].mxu0
        %v4721 = vpop.f32.mrb[0].mxu0
        %v4722 = vadd.f32 %v4630, %v4721
        %v4723 = vpop.f32.mrb[0].mxu0
        %4724 = vmatprep.mubr.bf16.mxu0 0
        %4725 = vmatmul.mubr.bf16.gmra.mrb[0].mxu0 %v4654
        %v4726 = vpop.f32.mrb[0].mxu0
        %v4727 = vadd.f32 %v4630, %v4726
        %v4728 = vpop.f32.mrb[0].mxu0
        %v4729 = vpop.f32.mrb[0].mxu0
        %v4730 = vadd.f32 %v4630, %v4729
        %v4731 = vpop.f32.mrb[0].mxu0
        %4732 = vmatprep.mubr.bf16.mxu0 0
        %4733 = vmatmul.mubr.bf16.gmra.mrb[0].mxu0 %v4657
        %v4734 = vpop.f32.mrb[0].mxu0
        %v4735 = vadd.f32 %v4630, %v4734
        %v4736 = vpop.f32.mrb[0].mxu0
        %v4737 = vpop.f32.mrb[0].mxu0
        %v4738 = vadd.f32 %v4630, %v4737
        %v4739 = vpop.f32.mrb[0].mxu0
        %4740 = vmatprep.mubr.bf16.mxu0 0
        %4741 = vmatmul.mubr.bf16.gmra.mrb[0].mxu0 %v4660
        %v4742 = vpop.f32.mrb[0].mxu0
        %v4743 = vadd.f32 %v4630, %v4742
        %v4744 = vpop.f32.mrb[0].mxu0
        %v4745 = vpop.f32.mrb[0].mxu0
        %v4746 = vadd.f32 %v4630, %v4745
        %v4747 = vpop.f32.mrb[0].mxu0
        %4748 = vmatprep.mubr.bf16.mxu0 0
        %4749 = vmatmul.mubr.bf16.gmra.mrb[0].mxu0 %v4663
        %v4750 = vpop.f32.mrb[0].mxu0
        %v4751 = vadd.f32 %v4630, %v4750
        %v4752 = vpop.f32.mrb[0].mxu0
        %v4753 = vpop.f32.mrb[0].mxu0
        %v4754 = vadd.f32 %v4630, %v4753
        %v4755 = vpop.f32.mrb[0].mxu0
        %4756 = vmatprep.mubr.bf16.mxu0 0
        %4757 = vmatmul.mubr.bf16.gmra.mrb[0].mxu0 %v4666
        %v4758 = vpop.f32.mrb[0].mxu0
        %v4759 = vadd.f32 %v4630, %v4758
        %v4760 = vpop.f32.mrb[0].mxu0
        %v4761 = vpop.f32.mrb[0].mxu0
        %v4762 = vadd.f32 %v4630, %v4761
        %v4763 = vpop.f32.mrb[0].mxu0
        %4764 = vdwg.mxu0
        %v4765 = vmax.f32 %v4703, 0.0
        %v4766 = vmax.f32 %v4706, 0.0
        %v4767 = vmax.f32 %v4711, 0.0
        %v4768 = vmax.f32 %v4714, 0.0
        %v4769 = vmax.f32 %v4719, 0.0
        %v4770 = vmax.f32 %v4722, 0.0
        %v4771 = vmax.f32 %v4727, 0.0
        %v4772 = vmax.f32 %v4730, 0.0
        %v4773 = vmax.f32 %v4735, 0.0
        %v4774 = vmax.f32 %v4738, 0.0
        %v4775 = vmax.f32 %v4743, 0.0
        %v4776 = vmax.f32 %v4746, 0.0
        %v4777 = vmax.f32 %v4751, 0.0
        %v4778 = vmax.f32 %v4754, 0.0
        %v4779 = vmax.f32 %v4759, 0.0
        %v4780 = vmax.f32 %v4762, 0.0
        %v4781 = vpack.c.bf16 %v4766, %v4765
        %v4782 = vpack.c.bf16 %v4768, %v4767
        %v4783 = vpack.c.bf16 %v4770, %v4769
        %v4784 = vpack.c.bf16 %v4772, %v4771
        %v4785 = vpack.c.bf16 %v4774, %v4773
        %v4786 = vpack.c.bf16 %v4776, %v4775
        %v4787 = vpack.c.bf16 %v4778, %v4777
        %v4788 = vpack.c.bf16 %v4780, %v4779
        %s4789 = scalar_lea.vmem [#allocation3], 112
        %v4790 = vld [vmem:[%s4789] sm:$0xf]
        %v4791 = vld [vmem:[%s4789 + $0x4] sm:$0xf]
        %v4792 = vld [vmem:[%s4789 + $0x8] sm:$0xf]
        %v4793 = vld [vmem:[%s4789 + $0xc] sm:$0xf]
        %s4794 = scalar_lea.vmem %s9, 7
        %v4795 = vld [vmem:[%s4794] sm:$0x1]
        %v4797 = vlaneseq
        %v4798 = vshrl.u32 %v4797, 7
        %v4799 = vsub.s32 0, %v4798
        %v4800 = vrot.slane %v4795, %v4799
        %v4806 = vunpack.c.l.b16 %v4790
        %v4807 = vunpack.c.l.b16 %v4791
        %v4808 = vunpack.c.l.b16 %v4792
        %v4809 = vunpack.c.l.b16 %v4793
        %v4810 = vpack.c.b16 %v4807, %v4806
        %v4811 = vpack.c.b16 %v4809, %v4808
        %v4815 = vsel %vm783, %v4781, 0
        %v4818 = vsel %vm783, %v4782, 0
        %v4821 = vsel %vm783, %v4783, 0
        %v4824 = vsel %vm783, %v4784, 0
        %v4827 = vsel %vm783, %v4785, 0
        %v4830 = vsel %vm783, %v4786, 0
        %v4833 = vsel %vm783, %v4787, 0
        %v4836 = vsel %vm783, %v4788, 0
        %4838 = vmatprep.subr.bf16.mxu0 0
        %4839 = vmatpush1.bf16.msra.mxu0 %v4810
        %4840 = vmatprep.subr.bf16.mxu0 0
        %4841 = vmatpush1.bf16.msra.mxu0 %v4811
        %4842 = vmatprep.subr.bf16.mxu0 0
        %4843 = vmatpush1.bf16.msra.mxu0 0
        %4844 = vmatprep.subr.bf16.mxu0 0
        %4845 = vmatpush1.bf16.msra.mxu0 0
        %4846 = vmatprep.subr.bf16.mxu0 0
        %4847 = vmatpush1.bf16.msra.mxu0 0
        %4848 = vmatprep.subr.bf16.mxu0 0
        %4849 = vmatpush1.bf16.msra.mxu0 0
        %4850 = vmatprep.subr.bf16.mxu0 0
        %4851 = vmatpush1.bf16.msra.mxu0 0
        %4852 = vmatprep.subr.bf16.mxu0 0
        %4853 = vmatpush1.bf16.msra.mxu0 0
        %4854 = vmatprep.subr.bf16.mxu0 0
        %4855 = vmatpush1.bf16.msra.mxu0 0
        %4856 = vmatprep.subr.bf16.mxu0 0
        %4857 = vmatpush1.bf16.msra.mxu0 0
        %4858 = vmatprep.subr.bf16.mxu0 0
        %4859 = vmatpush1.bf16.msra.mxu0 0
        %4860 = vmatprep.subr.bf16.mxu0 0
        %4861 = vmatpush1.bf16.msra.mxu0 0
        %4862 = vmatprep.subr.bf16.mxu0 0
        %4863 = vmatpush1.bf16.msra.mxu0 0
        %4864 = vmatprep.subr.bf16.mxu0 0
        %4865 = vmatpush1.bf16.msra.mxu0 0
        %4866 = vmatprep.subr.bf16.mxu0 0
        %4867 = vmatpush1.bf16.msra.mxu0 0
        %4868 = vmatprep.subr.bf16.mxu0 0
        %4869 = vmatpush1.bf16.msra.mxu0 0
        %4870 = vmatprep.mubr.bf16.mxu0 0
        %4871 = vmatmul.mubr.bf16.gmra.mrb[0].mxu0 %v4815
        %v4872 = vpop.f32.mrb[0].mxu0
        %v4873 = vadd.f32 %v4800, %v4872
        %v4874 = vpop.f32.mrb[0].mxu0
        %v4875 = vpop.f32.mrb[0].mxu0
        %v4876 = vadd.f32 %v4800, %v4875
        %v4877 = vpop.f32.mrb[0].mxu0
        %4878 = vmatprep.mubr.bf16.mxu0 0
        %4879 = vmatmul.mubr.bf16.gmra.mrb[0].mxu0 %v4818
        %v4880 = vpop.f32.mrb[0].mxu0
        %v4881 = vadd.f32 %v4800, %v4880
        %v4882 = vpop.f32.mrb[0].mxu0
        %v4883 = vpop.f32.mrb[0].mxu0
        %v4884 = vadd.f32 %v4800, %v4883
        %v4885 = vpop.f32.mrb[0].mxu0
        %4886 = vmatprep.mubr.bf16.mxu0 0
        %4887 = vmatmul.mubr.bf16.gmra.mrb[0].mxu0 %v4821
        %v4888 = vpop.f32.mrb[0].mxu0
        %v4889 = vadd.f32 %v4800, %v4888
        %v4890 = vpop.f32.mrb[0].mxu0
        %v4891 = vpop.f32.mrb[0].mxu0
        %v4892 = vadd.f32 %v4800, %v4891
        %v4893 = vpop.f32.mrb[0].mxu0
        %4894 = vmatprep.mubr.bf16.mxu0 0
        %4895 = vmatmul.mubr.bf16.gmra.mrb[0].mxu0 %v4824
        %v4896 = vpop.f32.mrb[0].mxu0
        %v4897 = vadd.f32 %v4800, %v4896
        %v4898 = vpop.f32.mrb[0].mxu0
        %v4899 = vpop.f32.mrb[0].mxu0
        %v4900 = vadd.f32 %v4800, %v4899
        %v4901 = vpop.f32.mrb[0].mxu0
        %4902 = vmatprep.mubr.bf16.mxu0 0
        %4903 = vmatmul.mubr.bf16.gmra.mrb[0].mxu0 %v4827
        %v4904 = vpop.f32.mrb[0].mxu0
        %v4905 = vadd.f32 %v4800, %v4904
        %v4906 = vpop.f32.mrb[0].mxu0
        %v4907 = vpop.f32.mrb[0].mxu0
        %v4908 = vadd.f32 %v4800, %v4907
        %v4909 = vpop.f32.mrb[0].mxu0
        %4910 = vmatprep.mubr.bf16.mxu0 0
        %4911 = vmatmul.mubr.bf16.gmra.mrb[0].mxu0 %v4830
        %v4912 = vpop.f32.mrb[0].mxu0
        %v4913 = vadd.f32 %v4800, %v4912
        %v4914 = vpop.f32.mrb[0].mxu0
        %v4915 = vpop.f32.mrb[0].mxu0
        %v4916 = vadd.f32 %v4800, %v4915
        %v4917 = vpop.f32.mrb[0].mxu0
        %4918 = vmatprep.mubr.bf16.mxu0 0
        %4919 = vmatmul.mubr.bf16.gmra.mrb[0].mxu0 %v4833
        %v4920 = vpop.f32.mrb[0].mxu0
        %v4921 = vadd.f32 %v4800, %v4920
        %v4922 = vpop.f32.mrb[0].mxu0
        %v4923 = vpop.f32.mrb[0].mxu0
        %v4924 = vadd.f32 %v4800, %v4923
        %v4925 = vpop.f32.mrb[0].mxu0
        %4926 = vmatprep.mubr.bf16.mxu0 0
        %4927 = vmatmul.mubr.bf16.gmra.mrb[0].mxu0 %v4836
        %v4928 = vpop.f32.mrb[0].mxu0
        %v4929 = vadd.f32 %v4800, %v4928
        %v4930 = vpop.f32.mrb[0].mxu0
        %v4931 = vpop.f32.mrb[0].mxu0
        %v4932 = vadd.f32 %v4800, %v4931
        %v4933 = vpop.f32.mrb[0].mxu0
        %4934 = vdwg.mxu0
        %v4935 = vadd.f32 %v4873, %v3869
        %v4936 = vadd.f32 %v4876, %v3870
        %v4937 = vadd.f32 %v4881, %v3871
        %v4938 = vadd.f32 %v4884, %v3872
        %v4939 = vadd.f32 %v4889, %v3873
        %v4940 = vadd.f32 %v4892, %v3874
        %v4941 = vadd.f32 %v4897, %v3875
        %v4942 = vadd.f32 %v4900, %v3876
        %v4943 = vadd.f32 %v4905, %v3877
        %v4944 = vadd.f32 %v4908, %v3878
        %v4945 = vadd.f32 %v4913, %v3879
        %v4946 = vadd.f32 %v4916, %v3880
        %v4947 = vadd.f32 %v4921, %v3881
        %v4948 = vadd.f32 %v4924, %v3882
        %v4949 = vadd.f32 %v4929, %v3883
        %v4950 = vadd.f32 %v4932, %v3884
        %v4951 = vmax.f32 %v4935, 0.0
        %v4952 = vmax.f32 %v4936, 0.0
        %v4953 = vmax.f32 %v4937, 0.0
        %v4954 = vmax.f32 %v4938, 0.0
        %v4955 = vmax.f32 %v4939, 0.0
        %v4956 = vmax.f32 %v4940, 0.0
        %v4957 = vmax.f32 %v4941, 0.0
        %v4958 = vmax.f32 %v4942, 0.0
        %v4959 = vmax.f32 %v4943, 0.0
        %v4960 = vmax.f32 %v4944, 0.0
        %v4961 = vmax.f32 %v4945, 0.0
        %v4962 = vmax.f32 %v4946, 0.0
        %v4963 = vmax.f32 %v4947, 0.0
        %v4964 = vmax.f32 %v4948, 0.0
        %v4965 = vmax.f32 %v4949, 0.0
        %v4966 = vmax.f32 %v4950, 0.0
        %4967 = vst.msk [vmem:[#allocation2 + $0x10] sm:$0xff] %vm783, %v4951
        %4968 = vst.msk [vmem:[#allocation2 + $0x28] sm:$0xff] %vm783, %v4952
        %4969 = vst.msk [vmem:[#allocation2 + $0x40] sm:$0xff] %vm783, %v4953
        %4970 = vst.msk [vmem:[#allocation2 + $0x58] sm:$0xff] %vm783, %v4954
        %4971 = vst.msk [vmem:[#allocation2 + $0x70] sm:$0xff] %vm783, %v4955
        %4972 = vst.msk [vmem:[#allocation2 + $0x88] sm:$0xff] %vm783, %v4956
        %4973 = vst.msk [vmem:[#allocation2 + $0xa0] sm:$0xff] %vm783, %v4957
        %4974 = vst.msk [vmem:[#allocation2 + $0xb8] sm:$0xff] %vm783, %v4958
        %4975 = vst.msk [vmem:[#allocation2 + $0xd0] sm:$0xff] %vm783, %v4959
        %4976 = vst.msk [vmem:[#allocation2 + $0xe8] sm:$0xff] %vm783, %v4960
        %4977 = vst.msk [vmem:[#allocation2 + $0x100] sm:$0xff] %vm783, %v4961
        %4978 = vst.msk [vmem:[#allocation2 + $0x118] sm:$0xff] %vm783, %v4962
        %4979 = vst.msk [vmem:[#allocation2 + $0x130] sm:$0xff] %vm783, %v4963
        %4980 = vst.msk [vmem:[#allocation2 + $0x148] sm:$0xff] %vm783, %v4964
        %4981 = vst.msk [vmem:[#allocation2 + $0x160] sm:$0xff] %vm783, %v4965
        %4982 = vst.msk [vmem:[#allocation2 + $0x178] sm:$0xff] %vm783, %v4966
        %v4983 = vld [vmem:[#allocation2] sm:$0xff]
        %v4984 = vld [vmem:[#allocation2 + $0x8] sm:$0xff]
        %v4985 = vld [vmem:[#allocation2 + $0x10] sm:$0xff]
        %v4986 = vld [vmem:[#allocation2 + $0x18] sm:$0xff]
        %v4987 = vld [vmem:[#allocation2 + $0x20] sm:$0xff]
        %v4988 = vld [vmem:[#allocation2 + $0x28] sm:$0xff]
        %v4989 = vld [vmem:[#allocation2 + $0x30] sm:$0xff]
        %v4990 = vld [vmem:[#allocation2 + $0x38] sm:$0xff]
        %v4991 = vld [vmem:[#allocation2 + $0x40] sm:$0xff]
        %v4992 = vld [vmem:[#allocation2 + $0x48] sm:$0xff]
        %v4993 = vld [vmem:[#allocation2 + $0x50] sm:$0xff]
        %v4994 = vld [vmem:[#allocation2 + $0x58] sm:$0xff]
        %v4995 = vld [vmem:[#allocation2 + $0x60] sm:$0xff]
        %v4996 = vld [vmem:[#allocation2 + $0x68] sm:$0xff]
        %v4997 = vld [vmem:[#allocation2 + $0x70] sm:$0xff]
        %v4998 = vld [vmem:[#allocation2 + $0x78] sm:$0xff]
        %v4999 = vld [vmem:[#allocation2 + $0x80] sm:$0xff]
        %v5000 = vld [vmem:[#allocation2 + $0x88] sm:$0xff]
        %v5001 = vld [vmem:[#allocation2 + $0x90] sm:$0xff]
        %v5002 = vld [vmem:[#allocation2 + $0x98] sm:$0xff]
        %v5003 = vld [vmem:[#allocation2 + $0xa0] sm:$0xff]
        %v5004 = vld [vmem:[#allocation2 + $0xa8] sm:$0xff]
        %v5005 = vld [vmem:[#allocation2 + $0xb0] sm:$0xff]
        %v5006 = vld [vmem:[#allocation2 + $0xb8] sm:$0xff]
        %v5007 = vld [vmem:[#allocation2 + $0xc0] sm:$0xff]
        %v5008 = vld [vmem:[#allocation2 + $0xc8] sm:$0xff]
        %v5009 = vld [vmem:[#allocation2 + $0xd0] sm:$0xff]
        %v5010 = vld [vmem:[#allocation2 + $0xd8] sm:$0xff]
        %v5011 = vld [vmem:[#allocation2 + $0xe0] sm:$0xff]
        %v5012 = vld [vmem:[#allocation2 + $0xe8] sm:$0xff]
        %v5013 = vld [vmem:[#allocation2 + $0xf0] sm:$0xff]
        %v5014 = vld [vmem:[#allocation2 + $0xf8] sm:$0xff]
        %v5015 = vld [vmem:[#allocation2 + $0x100] sm:$0xff]
        %v5016 = vld [vmem:[#allocation2 + $0x108] sm:$0xff]
        %v5017 = vld [vmem:[#allocation2 + $0x110] sm:$0xff]
        %v5018 = vld [vmem:[#allocation2 + $0x118] sm:$0xff]
        %v5019 = vld [vmem:[#allocation2 + $0x120] sm:$0xff]
        %v5020 = vld [vmem:[#allocation2 + $0x128] sm:$0xff]
        %v5021 = vld [vmem:[#allocation2 + $0x130] sm:$0xff]
        %v5022 = vld [vmem:[#allocation2 + $0x138] sm:$0xff]
        %v5023 = vld [vmem:[#allocation2 + $0x140] sm:$0xff]
        %v5024 = vld [vmem:[#allocation2 + $0x148] sm:$0xff]
        %v5025 = vld [vmem:[#allocation2 + $0x150] sm:$0xff]
        %v5026 = vld [vmem:[#allocation2 + $0x158] sm:$0xff]
        %v5027 = vld [vmem:[#allocation2 + $0x160] sm:$0xff]
        %v5028 = vld [vmem:[#allocation2 + $0x168] sm:$0xff]
        %v5029 = vld [vmem:[#allocation2 + $0x170] sm:$0xff]
        %v5030 = vld [vmem:[#allocation2 + $0x178] sm:$0xff]
        %v5031 = vpack.c.bf16 %v4986, %v4983
        %v5032 = vpack.c.bf16 %v4987, %v4984
        %v5033 = vpack.c.bf16 %v4988, %v4985
        %v5034 = vpack.c.bf16 %v4992, %v4989
        %v5035 = vpack.c.bf16 %v4993, %v4990
        %v5036 = vpack.c.bf16 %v4994, %v4991
        %v5037 = vpack.c.bf16 %v4998, %v4995
        %v5038 = vpack.c.bf16 %v4999, %v4996
        %v5039 = vpack.c.bf16 %v5000, %v4997
        %v5040 = vpack.c.bf16 %v5004, %v5001
        %v5041 = vpack.c.bf16 %v5005, %v5002
        %v5042 = vpack.c.bf16 %v5006, %v5003
        %v5043 = vpack.c.bf16 %v5010, %v5007
        %v5044 = vpack.c.bf16 %v5011, %v5008
        %v5045 = vpack.c.bf16 %v5012, %v5009
        %v5046 = vpack.c.bf16 %v5016, %v5013
        %v5047 = vpack.c.bf16 %v5017, %v5014
        %v5048 = vpack.c.bf16 %v5018, %v5015
        %v5049 = vpack.c.bf16 %v5022, %v5019
        %v5050 = vpack.c.bf16 %v5023, %v5020
        %v5051 = vpack.c.bf16 %v5024, %v5021
        %v5052 = vpack.c.bf16 %v5028, %v5025
        %v5053 = vpack.c.bf16 %v5029, %v5026
        %v5054 = vpack.c.bf16 %v5030, %v5027
        %v5057 = vunpack.c.l.b16 %v604
        %v5058 = vunpack.c.l.b16 %v605
        %v5059 = vpack.c.b16 %v5058, %v5057
        %5061 = vmatprep.subr.bf16.mxu0 %v5032
        %5062 = vmatpush1.bf16.msra.mxu0 %v5031
        %5063 = vmatprep.subr.bf16.mxu0 %v5035
        %5064 = vmatpush1.bf16.msra.mxu0 %v5034
        %5065 = vmatprep.subr.bf16.mxu0 %v5038
        %5066 = vmatpush1.bf16.msra.mxu0 %v5037
        %5067 = vmatprep.subr.bf16.mxu0 %v5041
        %5068 = vmatpush1.bf16.msra.mxu0 %v5040
        %5069 = vmatprep.subr.bf16.mxu0 %v5044
        %5070 = vmatpush1.bf16.msra.mxu0 %v5043
        %5071 = vmatprep.subr.bf16.mxu0 %v5047
        %5072 = vmatpush1.bf16.msra.mxu0 %v5046
        %5073 = vmatprep.subr.bf16.mxu0 %v5050
        %5074 = vmatpush1.bf16.msra.mxu0 %v5049
        %5075 = vmatprep.subr.bf16.mxu0 %v5053
        %5076 = vmatpush1.bf16.msra.mxu0 %v5052
        %5077 = vmatprep.subr.bf16.mxu0 0
        %5078 = vmatpush1.bf16.msra.mxu0 0
        %5079 = vmatprep.subr.bf16.mxu0 0
        %5080 = vmatpush1.bf16.msra.mxu0 0
        %5081 = vmatprep.subr.bf16.mxu0 0
        %5082 = vmatpush1.bf16.msra.mxu0 0
        %5083 = vmatprep.subr.bf16.mxu0 0
        %5084 = vmatpush1.bf16.msra.mxu0 0
        %5085 = vmatprep.subr.bf16.mxu0 0
        %5086 = vmatpush1.bf16.msra.mxu0 0
        %5087 = vmatprep.subr.bf16.mxu0 0
        %5088 = vmatpush1.bf16.msra.mxu0 0
        %5089 = vmatprep.subr.bf16.mxu0 0
        %5090 = vmatpush1.bf16.msra.mxu0 0
        %5091 = vmatprep.subr.bf16.mxu0 0
        %5092 = vmatpush1.bf16.msra.mxu0 0
        %5093 = vmatprep.mubr.bf16.mxu0 0
        %5094 = vmatmul.mubr.bf16.gmra.mrb[0].mxu0 %v5059
        %v5095 = vpop.f32.mrb[0].mxu0
        %v5096 = vadd.f32 0.0, %v5095
        %v5097 = vpop.f32.mrb[0].mxu0
        %v5098 = vadd.f32 0.0, %v5097
        %v5099 = vpop.f32.mrb[0].mxu0
        %v5100 = vadd.f32 0.0, %v5099
        %v5101 = vpop.f32.mrb[0].mxu0
        %v5102 = vadd.f32 0.0, %v5101
        %5103 = vdwg.mxu0
        %5104 = vmatprep.subr.bf16.mxu0 0
        %5105 = vmatpush1.bf16.msra.mxu0 %v5033
        %5106 = vmatprep.subr.bf16.mxu0 0
        %5107 = vmatpush1.bf16.msra.mxu0 %v5036
        %5108 = vmatprep.subr.bf16.mxu0 0
        %5109 = vmatpush1.bf16.msra.mxu0 %v5039
        %5110 = vmatprep.subr.bf16.mxu0 0
        %5111 = vmatpush1.bf16.msra.mxu0 %v5042
        %5112 = vmatprep.subr.bf16.mxu0 0
        %5113 = vmatpush1.bf16.msra.mxu0 %v5045
        %5114 = vmatprep.subr.bf16.mxu0 0
        %5115 = vmatpush1.bf16.msra.mxu0 %v5048
        %5116 = vmatprep.subr.bf16.mxu0 0
        %5117 = vmatpush1.bf16.msra.mxu0 %v5051
        %5118 = vmatprep.subr.bf16.mxu0 0
        %5119 = vmatpush1.bf16.msra.mxu0 %v5054
        %5120 = vmatprep.subr.bf16.mxu0 0
        %5121 = vmatpush1.bf16.msra.mxu0 0
        %5122 = vmatprep.subr.bf16.mxu0 0
        %5123 = vmatpush1.bf16.msra.mxu0 0
        %5124 = vmatprep.subr.bf16.mxu0 0
        %5125 = vmatpush1.bf16.msra.mxu0 0
        %5126 = vmatprep.subr.bf16.mxu0 0
        %5127 = vmatpush1.bf16.msra.mxu0 0
        %5128 = vmatprep.subr.bf16.mxu0 0
        %5129 = vmatpush1.bf16.msra.mxu0 0
        %5130 = vmatprep.subr.bf16.mxu0 0
        %5131 = vmatpush1.bf16.msra.mxu0 0
        %5132 = vmatprep.subr.bf16.mxu0 0
        %5133 = vmatpush1.bf16.msra.mxu0 0
        %5134 = vmatprep.subr.bf16.mxu0 0
        %5135 = vmatpush1.bf16.msra.mxu0 0
        %5136 = vmatprep.mubr.bf16.mxu0 0
        %5137 = vmatmul.mubr.bf16.gmra.mrb[0].mxu0 %v5059
        %v5138 = vpop.f32.mrb[0].mxu0
        %v5139 = vadd.f32 0.0, %v5138
        %v5140 = vpop.f32.mrb[0].mxu0
        %v5141 = vpop.f32.mrb[0].mxu0
        %v5142 = vadd.f32 0.0, %v5141
        %v5143 = vpop.f32.mrb[0].mxu0
        %5144 = vdwg.mxu0
        %v5145 = vpack.c.bf16 %v5100, %v5096
        %v5146 = vpack.c.bf16 %v5102, %v5098
        %v5147 = vpack.c.bf16 %v5142, %v5139
        %v5148 = vld [vmem:[%s10] sm:$0xf]
        %v5149 = vld [vmem:[%s10 + $0x4] sm:$0xf]
        %v5150 = vld [vmem:[%s10 + $0x8] sm:$0xf]
        %v5151 = vld [vmem:[%s10 + $0xc] sm:$0xf]
        %v5152 = vld [vmem:[%s10 + $0x10] sm:$0xf]
        %v5153 = vld [vmem:[%s10 + $0x14] sm:$0xf]
        %v5154 = vld [vmem:[%s10 + $0x18] sm:$0xf]
        %v5155 = vld [vmem:[%s10 + $0x1c] sm:$0xf]
        %v5156 = vld [vmem:[%s10 + $0x20] sm:$0xf]
        %v5157 = vld [vmem:[%s10 + $0x24] sm:$0xf]
        %v5158 = vld [vmem:[%s10 + $0x28] sm:$0xf]
        %v5159 = vld [vmem:[%s10 + $0x2c] sm:$0xf]
        %v5160 = vld [vmem:[%s10 + $0x30] sm:$0xf]
        %v5161 = vld [vmem:[%s10 + $0x34] sm:$0xf]
        %v5162 = vld [vmem:[%s10 + $0x38] sm:$0xf]
        %v5163 = vld [vmem:[%s10 + $0x3c] sm:$0xf]
        %v5164 = vld [vmem:[%s10 + $0x40] sm:$0xf]
        %v5165 = vld [vmem:[%s10 + $0x44] sm:$0xf]
        %v5166 = vld [vmem:[%s10 + $0x48] sm:$0xf]
        %v5167 = vld [vmem:[%s10 + $0x4c] sm:$0xf]
        %v5168 = vld [vmem:[%s10 + $0x50] sm:$0xf]
        %v5169 = vld [vmem:[%s10 + $0x54] sm:$0xf]
        %v5170 = vld [vmem:[%s10 + $0x58] sm:$0xf]
        %v5171 = vld [vmem:[%s10 + $0x5c] sm:$0xf]
        %v5172 = vld [vmem:[%s10 + $0x60] sm:$0xf]
        %v5173 = vld [vmem:[%s10 + $0x64] sm:$0xf]
        %v5174 = vld [vmem:[%s10 + $0x68] sm:$0xf]
        %v5175 = vld [vmem:[%s10 + $0x6c] sm:$0xf]
        %v5176 = vld [vmem:[%s10 + $0x70] sm:$0xf]
        %v5177 = vld [vmem:[%s10 + $0x74] sm:$0xf]
        %v5178 = vld [vmem:[%s10 + $0x78] sm:$0xf]
        %v5179 = vld [vmem:[%s10 + $0x7c] sm:$0xf]
        %v5180 = vld [vmem:[%s10 + $0x80] sm:$0xf]
        %v5181 = vld [vmem:[%s10 + $0x84] sm:$0xf]
        %v5182 = vld [vmem:[%s10 + $0x88] sm:$0xf]
        %v5183 = vld [vmem:[%s10 + $0x8c] sm:$0xf]
        %v5184 = vld [vmem:[%s11] sm:$0x1]
        %v5186 = vlaneseq
        %v5187 = vshrl.u32 %v5186, 7
        %v5188 = vsub.s32 0, %v5187
        %v5189 = vrot.slane %v5184, %v5188
        %v5227 = vunpack.c.l.b16 %v5148
        %v5228 = vunpack.c.l.b16 %v5149
        %v5229 = vunpack.c.l.b16 %v5150
        %v5230 = vunpack.c.l.b16 %v5151
        %v5231 = vunpack.c.l.b16 %v5152
        %v5232 = vunpack.c.l.b16 %v5153
        %v5233 = vunpack.c.l.b16 %v5154
        %v5234 = vunpack.c.l.b16 %v5155
        %v5235 = vunpack.c.l.b16 %v5156
        %v5236 = vunpack.c.l.b16 %v5157
        %v5237 = vunpack.c.l.b16 %v5158
        %v5238 = vunpack.c.l.b16 %v5159
        %v5239 = vunpack.c.l.b16 %v5160
        %v5240 = vunpack.c.l.b16 %v5161
        %v5241 = vunpack.c.l.b16 %v5162
        %v5242 = vunpack.c.l.b16 %v5163
        %v5243 = vunpack.c.l.b16 %v5164
        %v5244 = vunpack.c.l.b16 %v5165
        %v5245 = vunpack.c.l.b16 %v5166
        %v5246 = vunpack.c.l.b16 %v5167
        %v5247 = vunpack.c.l.b16 %v5168
        %v5248 = vunpack.c.l.b16 %v5169
        %v5249 = vunpack.c.l.b16 %v5170
        %v5250 = vunpack.c.l.b16 %v5171
        %v5251 = vunpack.c.l.b16 %v5172
        %v5252 = vunpack.c.l.b16 %v5173
        %v5253 = vunpack.c.l.b16 %v5174
        %v5254 = vunpack.c.l.b16 %v5175
        %v5255 = vunpack.c.l.b16 %v5176
        %v5256 = vunpack.c.l.b16 %v5177
        %v5257 = vunpack.c.l.b16 %v5178
        %v5258 = vunpack.c.l.b16 %v5179
        %v5259 = vunpack.c.l.b16 %v5180
        %v5260 = vunpack.c.l.b16 %v5181
        %v5261 = vunpack.c.l.b16 %v5182
        %v5262 = vunpack.c.l.b16 %v5183
        %v5263 = vpack.c.b16 %v5228, %v5227
        %v5264 = vpack.c.b16 %v5230, %v5229
        %v5265 = vpack.c.b16 %v5232, %v5231
        %v5266 = vpack.c.b16 %v5234, %v5233
        %v5267 = vpack.c.b16 %v5236, %v5235
        %v5268 = vpack.c.b16 %v5238, %v5237
        %v5269 = vpack.c.b16 %v5240, %v5239
        %v5270 = vpack.c.b16 %v5242, %v5241
        %v5271 = vpack.c.b16 %v5244, %v5243
        %v5272 = vpack.c.b16 %v5246, %v5245
        %v5273 = vpack.c.b16 %v5248, %v5247
        %v5274 = vpack.c.b16 %v5250, %v5249
        %v5275 = vpack.c.b16 %v5252, %v5251
        %v5276 = vpack.c.b16 %v5254, %v5253
        %v5277 = vpack.c.b16 %v5256, %v5255
        %v5278 = vpack.c.b16 %v5258, %v5257
        %v5279 = vpack.c.b16 %v5260, %v5259
        %v5280 = vpack.c.b16 %v5262, %v5261
        %v5300 = vsel %vm783, %v5147, 0
        %5302 = vmatprep.subr.bf16.mxu0 0
        %5303 = vmatpush1.bf16.msra.mxu0 %v5263
        %5304 = vmatprep.subr.bf16.mxu0 0
        %5305 = vmatpush1.bf16.msra.mxu0 %v5264
        %5306 = vmatprep.subr.bf16.mxu0 0
        %5307 = vmatpush1.bf16.msra.mxu0 %v5265
        %5308 = vmatprep.subr.bf16.mxu0 0
        %5309 = vmatpush1.bf16.msra.mxu0 %v5266
        %5310 = vmatprep.subr.bf16.mxu0 0
        %5311 = vmatpush1.bf16.msra.mxu0 %v5267
        %5312 = vmatprep.subr.bf16.mxu0 0
        %5313 = vmatpush1.bf16.msra.mxu0 %v5268
        %5314 = vmatprep.subr.bf16.mxu0 0
        %5315 = vmatpush1.bf16.msra.mxu0 %v5269
        %5316 = vmatprep.subr.bf16.mxu0 0
        %5317 = vmatpush1.bf16.msra.mxu0 %v5270
        %5318 = vmatprep.subr.bf16.mxu0 0
        %5319 = vmatpush1.bf16.msra.mxu0 %v5271
        %5320 = vmatprep.subr.bf16.mxu0 0
        %5321 = vmatpush1.bf16.msra.mxu0 %v5272
        %5322 = vmatprep.subr.bf16.mxu0 0
        %5323 = vmatpush1.bf16.msra.mxu0 %v5273
        %5324 = vmatprep.subr.bf16.mxu0 0
        %5325 = vmatpush1.bf16.msra.mxu0 %v5274
        %5326 = vmatprep.subr.bf16.mxu0 0
        %5327 = vmatpush1.bf16.msra.mxu0 %v5275
        %5328 = vmatprep.subr.bf16.mxu0 0
        %5329 = vmatpush1.bf16.msra.mxu0 %v5276
        %5330 = vmatprep.subr.bf16.mxu0 0
        %5331 = vmatpush1.bf16.msra.mxu0 %v5277
        %5332 = vmatprep.subr.bf16.mxu0 0
        %5333 = vmatpush1.bf16.msra.mxu0 %v5278
        %5334 = vmatprep.mubr.bf16.mxu0 %v5146
        %5335 = vmatmul.mubr.bf16.gmra.mrb[0].mxu0 %v5145
        %v5336 = vpop.f32.mrb[0].mxu0
        %v5337 = vadd.f32 %v5189, %v5336
        %v5338 = vpop.f32.mrb[0].mxu0
        %v5339 = vpop.f32.mrb[0].mxu0
        %v5340 = vadd.f32 %v5189, %v5339
        %v5341 = vpop.f32.mrb[0].mxu0
        %5342 = vdwg.mxu0
        %5343 = vmatprep.subr.bf16.mxu0 0
        %5344 = vmatpush1.bf16.msra.mxu0 %v5279
        %5345 = vmatprep.subr.bf16.mxu0 0
        %5346 = vmatpush1.bf16.msra.mxu0 %v5280
        %5347 = vmatprep.subr.bf16.mxu0 0
        %5348 = vmatpush1.bf16.msra.mxu0 0
        %5349 = vmatprep.subr.bf16.mxu0 0
        %5350 = vmatpush1.bf16.msra.mxu0 0
        %5351 = vmatprep.subr.bf16.mxu0 0
        %5352 = vmatpush1.bf16.msra.mxu0 0
        %5353 = vmatprep.subr.bf16.mxu0 0
        %5354 = vmatpush1.bf16.msra.mxu0 0
        %5355 = vmatprep.subr.bf16.mxu0 0
        %5356 = vmatpush1.bf16.msra.mxu0 0
        %5357 = vmatprep.subr.bf16.mxu0 0
        %5358 = vmatpush1.bf16.msra.mxu0 0
        %5359 = vmatprep.subr.bf16.mxu0 0
        %5360 = vmatpush1.bf16.msra.mxu0 0
        %5361 = vmatprep.subr.bf16.mxu0 0
        %5362 = vmatpush1.bf16.msra.mxu0 0
        %5363 = vmatprep.subr.bf16.mxu0 0
        %5364 = vmatpush1.bf16.msra.mxu0 0
        %5365 = vmatprep.subr.bf16.mxu0 0
        %5366 = vmatpush1.bf16.msra.mxu0 0
        %5367 = vmatprep.subr.bf16.mxu0 0
        %5368 = vmatpush1.bf16.msra.mxu0 0
        %5369 = vmatprep.subr.bf16.mxu0 0
        %5370 = vmatpush1.bf16.msra.mxu0 0
        %5371 = vmatprep.subr.bf16.mxu0 0
        %5372 = vmatpush1.bf16.msra.mxu0 0
        %5373 = vmatprep.subr.bf16.mxu0 0
        %5374 = vmatpush1.bf16.msra.mxu0 0
        %5375 = vmatprep.mubr.bf16.mxu0 0
        %5376 = vmatmul.mubr.bf16.gmra.mrb[0].mxu0 %v5300
        %v5377 = vpop.f32.mrb[0].mxu0
        %v5378 = vadd.f32 %v5337, %v5377
        %v5379 = vpop.f32.mrb[0].mxu0
        %v5380 = vpop.f32.mrb[0].mxu0
        %v5381 = vadd.f32 %v5340, %v5380
        %v5382 = vpop.f32.mrb[0].mxu0
        %5383 = vdwg.mxu0
        %v5384 = vmax.f32 %v5378, 0.0
        %v5385 = vmax.f32 %v5381, 0.0
        %v5386 = vpack.c.bf16 %v5385, %v5384
        %v5387 = vld [vmem:[%s12] sm:$0xf]
        %v5388 = vld [vmem:[%s12 + $0x4] sm:$0xf]
        %v5389 = vld [vmem:[%s12 + $0x8] sm:$0xf]
        %v5390 = vld [vmem:[%s12 + $0xc] sm:$0xf]
        %v5391 = vld [vmem:[%s13] sm:$0x1]
        %v5393 = vlaneseq
        %v5394 = vshrl.u32 %v5393, 7
        %v5395 = vsub.s32 0, %v5394
        %v5396 = vrot.slane %v5391, %v5395
        %v5402 = vunpack.c.l.b16 %v5387
        %v5403 = vunpack.c.l.b16 %v5388
        %v5404 = vunpack.c.l.b16 %v5389
        %v5405 = vunpack.c.l.b16 %v5390
        %v5406 = vpack.c.b16 %v5403, %v5402
        %v5407 = vpack.c.b16 %v5405, %v5404
        %v5411 = vsel %vm783, %v5386, 0
        %5413 = vmatprep.subr.bf16.mxu0 0
        %5414 = vmatpush1.bf16.msra.mxu0 %v5406
        %5415 = vmatprep.subr.bf16.mxu0 0
        %5416 = vmatpush1.bf16.msra.mxu0 %v5407
        %5417 = vmatprep.subr.bf16.mxu0 0
        %5418 = vmatpush1.bf16.msra.mxu0 0
        %5419 = vmatprep.subr.bf16.mxu0 0
        %5420 = vmatpush1.bf16.msra.mxu0 0
        %5421 = vmatprep.subr.bf16.mxu0 0
        %5422 = vmatpush1.bf16.msra.mxu0 0
        %5423 = vmatprep.subr.bf16.mxu0 0
        %5424 = vmatpush1.bf16.msra.mxu0 0
        %5425 = vmatprep.subr.bf16.mxu0 0
        %5426 = vmatpush1.bf16.msra.mxu0 0
        %5427 = vmatprep.subr.bf16.mxu0 0
        %5428 = vmatpush1.bf16.msra.mxu0 0
        %5429 = vmatprep.subr.bf16.mxu0 0
        %5430 = vmatpush1.bf16.msra.mxu0 0
        %5431 = vmatprep.subr.bf16.mxu0 0
        %5432 = vmatpush1.bf16.msra.mxu0 0
        %5433 = vmatprep.subr.bf16.mxu0 0
        %5434 = vmatpush1.bf16.msra.mxu0 0
        %5435 = vmatprep.subr.bf16.mxu0 0
        %5436 = vmatpush1.bf16.msra.mxu0 0
        %5437 = vmatprep.subr.bf16.mxu0 0
        %5438 = vmatpush1.bf16.msra.mxu0 0
        %5439 = vmatprep.subr.bf16.mxu0 0
        %5440 = vmatpush1.bf16.msra.mxu0 0
        %5441 = vmatprep.subr.bf16.mxu0 0
        %5442 = vmatpush1.bf16.msra.mxu0 0
        %5443 = vmatprep.subr.bf16.mxu0 0
        %5444 = vmatpush1.bf16.msra.mxu0 0
        %5445 = vmatprep.mubr.bf16.mxu0 0
        %5446 = vmatmul.mubr.bf16.gmra.mrb[0].mxu0 %v5411
        %v5447 = vpop.f32.mrb[0].mxu0
        %v5448 = vadd.f32 %v5396, %v5447
        %v5449 = vpop.f32.mrb[0].mxu0
        %v5450 = vpop.f32.mrb[0].mxu0
        %v5451 = vadd.f32 %v5396, %v5450
        %v5452 = vpop.f32.mrb[0].mxu0
        %5453 = vdwg.mxu0
        %v5454 = vsub.f32 %v5448, %v5451
        %v5456 = vsel %vm783, %v5454, 0
        %5458 = vmatprep.subr.mxu0 0.0
        %5459 = vmatpush1.xpose.msra.mxu0 %v5456
        %5460 = vmatprep.subr.mxu0 0.0
        %5461 = vmatpush1.xpose.msra.mxu0 0.0
        %5462 = vmatprep.subr.mxu0 0.0
        %5463 = vmatpush1.xpose.msra.mxu0 0.0
        %5464 = vmatprep.subr.mxu0 0.0
        %5465 = vmatpush1.xpose.msra.mxu0 0.0
        %5466 = vmatprep.subr.mxu0 0.0
        %5467 = vmatpush1.xpose.msra.mxu0 0.0
        %5468 = vmatprep.subr.mxu0 0.0
        %5469 = vmatpush1.xpose.msra.mxu0 0.0
        %5470 = vmatprep.subr.mxu0 0.0
        %5471 = vmatpush1.xpose.msra.mxu0 0.0
        %5472 = vmatprep.subr.mxu0 0.0
        %5473 = vmatpush1.xpose.msra.mxu0 0.0
        %5474 = vmatprep.subr.mxu0 0.0
        %5475 = vmatpush1.xpose.msra.mxu0 0.0
        %5476 = vmatprep.subr.mxu0 0.0
        %5477 = vmatpush1.xpose.msra.mxu0 0.0
        %5478 = vmatprep.subr.mxu0 0.0
        %5479 = vmatpush1.xpose.msra.mxu0 0.0
        %5480 = vmatprep.subr.mxu0 0.0
        %5481 = vmatpush1.xpose.msra.mxu0 0.0
        %5482 = vmatprep.subr.mxu0 0.0
        %5483 = vmatpush1.xpose.msra.mxu0 0.0
        %5484 = vmatprep.subr.mxu0 0.0
        %5485 = vmatpush1.xpose.msra.mxu0 0.0
        %5486 = vmatprep.subr.mxu0 0.0
        %5487 = vmatpush1.xpose.msra.mxu0 0.0
        %5488 = vmatprep.subr.mxu0 0.0
        %5489 = vmatpush1.xpose.msra.mxu0 0.0
        %5490 = vmatprep.subr.mxu0 0.0
        %5491 = vmatpush1.xpose.msra.mxu0 0.0
        %5492 = vmatprep.subr.mxu0 0.0
        %5493 = vmatpush1.xpose.msra.mxu0 0.0
        %5494 = vmatprep.subr.mxu0 0.0
        %5495 = vmatpush1.xpose.msra.mxu0 0.0
        %5496 = vmatprep.subr.mxu0 0.0
        %5497 = vmatpush1.xpose.msra.mxu0 0.0
        %5498 = vmatprep.subr.mxu0 0.0
        %5499 = vmatpush1.xpose.msra.mxu0 0.0
        %5500 = vmatprep.subr.mxu0 0.0
        %5501 = vmatpush1.xpose.msra.mxu0 0.0
        %5502 = vmatprep.subr.mxu0 0.0
        %5503 = vmatpush1.xpose.msra.mxu0 0.0
        %5504 = vmatprep.subr.mxu0 0.0
        %5505 = vmatpush1.xpose.msra.mxu0 0.0
        %5506 = vmatprep.subr.mxu0 0.0
        %5507 = vmatpush1.xpose.msra.mxu0 0.0
        %5508 = vmatprep.subr.mxu0 0.0
        %5509 = vmatpush1.xpose.msra.mxu0 0.0
        %5510 = vmatprep.subr.mxu0 0.0
        %5511 = vmatpush1.xpose.msra.mxu0 0.0
        %5512 = vmatprep.subr.mxu0 0.0
        %5513 = vmatpush1.xpose.msra.mxu0 0.0
        %5514 = vmatprep.subr.mxu0 0.0
        %5515 = vmatpush1.xpose.msra.mxu0 0.0
        %5516 = vmatprep.subr.mxu0 0.0
        %5517 = vmatpush1.xpose.msra.mxu0 0.0
        %5518 = vmatprep.subr.mxu0 0.0
        %5519 = vmatpush1.xpose.msra.mxu0 0.0
        %5520 = vmatprep.subr.mxu0 0.0
        %5521 = vmatpush1.xpose.msra.mxu0 0.0
        %5522 = vmatprep.mubr.f32.mxu0 0.0
        %5523 = vmatmul.mubr.f32.gmra.mrb[0].mxu0 %v5456
        %v5524 = vpop.f32.mrb[0].mxu0
        %v5525 = vadd.f32 0.0, %v5524
        %v5526 = vpop.f32.mrb[0].mxu0
        %5527 = vdwg.mxu0
        %v5528 = vlaneseq
        %v5529 = vshrl.u32 %v5528, 7
        %v5530 = vlaneseq
        %v5531 = vand.u32 %v5530, 127
        %vm5532 = vcmp.eq.s32.totalorder %v5529, %v5531
        %v5533 = vsel %vm5532, 1, 0
        %v5534 = vcvt.s32.f32 %v5533
        %v5535 = vmul.f32 %v5525, %v5534
        %vm5536 = vcmask 64512
        %v5537 = vsel %vm5536, %v5535, 0.0
        %v5538 = vrot.slane %v5537, 4
        %v5539 = vadd.f32 %v5537, %v5538
        %v5540 = vrot.slane %v5539, 2
        %v5541 = vadd.f32 %v5539, %v5540
        %v5542 = vrot.slane %v5541, 1
        %v5543 = vadd.f32 %v5541, %v5542
        %v5544 = vrsqrt.pop %v5543
        %v5545 = vmul.f32 %v5543, %v5544
        %vm5546 = vcmp.eq.f32.partialorder %v5543, inf
        %v5547 = vsel %vm5546, %v5543, %v5545
        %vm5548 = vcmp.eq.f32.partialorder %v5543, 0.0
        %v5549 = vand.u32 %v5543, 2147483648
        %v5550 = vsel %vm5548, %v5549, %v5547
        %vm5551 = vcmask 57344
        %5552 = vst.msk [vmem:[%s546] sm:$0x1] %vm5551, %v5550
        %v5553 = vlog2.pop %v5550
        %v5554 = vmul.f32 %v5553, 0.6931472
        %v5555 = vsub.f32 0.0, %v5554
        %v5556 = vld [vmem:[%s570] sm:$0x1]
        %v5557 = vmul.f32 %v5555, %v5556
        %5558 = vst.msk [vmem:[%s552] sm:$0x1] %vm5551, %v5557
        %s5559 = sand.u32 %s356, 1
        %s5560 = scalar_lea.sflag [#allocation5], %s5559
        %s5561 = sand.u32 %s356, 1
        %s5562 = scalar_lea.vmem [#allocation6], %s5561
        %s5563 = sand.u32 %s382, 1
        %s5564 = scalar_lea.sflag [#allocation8], %s5563
        %s5565 = sand.u32 %s382, 1
        %s5566 = scalar_lea.vmem [#allocation7], %s5565
        // Predicated region
        $region81: #{tpu_custom_call.1} parent=75 // pred_check
          %p5567 = pneg %p366
        $region82: #{tpu_custom_call.1} parent=75 // pred_check_branch
          %5569 = sbr.rel (%p5567) target = $region84
        $region83: #{tpu_custom_call.1} parent=75 // pred_region
          %s5571 = ssub.s32 16, 16
          %5572 = vsyncadd %s5560, %s5571
          %s5573 = smul.addr %s34, 16
          %s5574 = scalar_lea.hbm %s14, %s5573
          %s5576 = sshll.u32 %s5562, 4
          %s5577 = int_to_ptr.vmem [resolvable:$true] %s5576
          %5579 = dma.vmem_to_hbm [thread:$0]  %s5577, 16, %s5574, %s5560
        $region84: #{tpu_custom_call.1} parent=75 // pred_fallthru
          _
        // Predicated region
        $region85: #{tpu_custom_call.1} parent=75 // pred_check
          %p5580 = pneg %p392
        $region86: #{tpu_custom_call.1} parent=75 // pred_check_branch
          %5582 = sbr.rel (%p5580) target = $region88
        $region87: #{tpu_custom_call.1} parent=75 // pred_region
          %s5584 = ssub.s32 16, 16
          %5585 = vsyncadd %s5564, %s5584
          %s5586 = smul.addr %s34, 16
          %s5587 = scalar_lea.hbm %s15, %s5586
          %s5589 = sshll.u32 %s5566, 4
          %s5590 = int_to_ptr.vmem [resolvable:$true] %s5589
          %5592 = dma.vmem_to_hbm [thread:$0]  %s5590, 16, %s5587, %s5564
        $region88: #{tpu_custom_call.1} parent=75 // pred_fallthru
          _
      $region76: #{tpu_custom_call.1} parent=5 // pred_fallthru
        _
      %p5593 = scmp.le.s32.totalorder 2, %s29
      // Predicated region
      $region89: #{tpu_custom_call.1} parent=5 // pred_check
        %p5594 = pneg %p5593
      $region90: #{tpu_custom_call.1} parent=5 // pred_check_branch
        %5596 = sbr.rel (%p5594) target = $region92
      $region91: #{tpu_custom_call.1} parent=5 // pred_region
        %s5597 = ssub.s32 %s29, 2
        // Predicated region
        $region93: #{tpu_custom_call.1} parent=91 // pred_check
          %p5598 = pneg %p372
        $region94: #{tpu_custom_call.1} parent=91 // pred_check_branch
          %5600 = sbr.rel (%p5598) target = $region96
        $region95: #{tpu_custom_call.1} parent=91 // pred_region
          %s5601 = sand.u32 %s357, 1
          %s5602 = scalar_lea.sflag [#allocation5], %s5601
          %s5603 = sand.u32 %s357, 1
          %s5604 = scalar_lea.vmem [#allocation6], %s5603
          %5605 = dma.done %s5602, 16
        $region96: #{tpu_custom_call.1} parent=91 // pred_fallthru
          _
        // Predicated region
        $region97: #{tpu_custom_call.1} parent=91 // pred_check
          %p5606 = pneg %p398
        $region98: #{tpu_custom_call.1} parent=91 // pred_check_branch
          %5608 = sbr.rel (%p5606) target = $region100
        $region99: #{tpu_custom_call.1} parent=91 // pred_region
          %s5609 = sand.u32 %s383, 1
          %s5610 = scalar_lea.sflag [#allocation8], %s5609
          %s5611 = sand.u32 %s383, 1
          %s5612 = scalar_lea.vmem [#allocation7], %s5611
          %5613 = dma.done %s5610, 16
        $region100: #{tpu_custom_call.1} parent=91 // pred_fallthru
          _
      $region92: #{tpu_custom_call.1} parent=5 // pred_fallthru
        _
    $region6: #{tpu_custom_call.1} parent=1 // loop_footer
      %s33 = sadd.s32 1, %s29
    $region7: #{tpu_custom_call.1} parent=1 // loop_footer_branch
      %28 = sbr.rel target = $region3
    $region8: #{tpu_custom_call.1} parent=1 // loop_exit
      _
    %5614 = vsyncpa [#allocation4], 1
    %s5615 = scalar_lea.sflag [#allocation4], 1
    %5616 = vsyncpa %s5615, 1
    %5617 = vsyncpa [#allocation5], 1
    %s5618 = scalar_lea.sflag [#allocation5], 1
    %5619 = vsyncpa %s5618, 1
    %5620 = vsyncpa [#allocation8], 1
    %s5621 = scalar_lea.sflag [#allocation8], 1
    %5622 = vsyncpa %s5621, 1

</llo_original>
